<compile_context>
chip_gen: v7x
topology: tpu7x:2x2x1
jax: 0.10.0
libtpu: 0.0.40
codegen_flags: <defaults>
</compile_context>

<pallas_src>
import functools

import jax
import jax.numpy as jnp
from jax import lax
from jax.experimental import pallas as pl
from jax.experimental.pallas import tpu as pltpu

LANE = 128


def _round_up(x, m):
    return ((x + m - 1) // m) * m


def _dual_tensorcore():
    """Best-effort: does the default device have 2 TensorCores (v7x)?"""
    try:
        kind = jax.devices()[0].device_kind.lower()
    except Exception:
        return False
    return ("v7" in kind) or ("7x" in kind)


def temporal_gnn_kernel(adjk_ref, feat_ref, w1_ref, b1_ref, w2_ref, b2_ref,
                        out_ref, *, sub_t):
    N, TB, Dp = feat_ref.shape
    Hp = w1_ref.shape[1]
    Op = w2_ref.shape[1]
    R = N * sub_t                 # rows per chunk (256 with the defaults)
    num_chunks = TB // sub_t

    # Hoisted loads; constant index_maps keep these VMEM-resident across steps.
    adjk = adjk_ref[...]          # bf16 [R, R]   block-diagonal adj (x) I_sub_t
    w1 = w1_ref[...]              # bf16 [Dp, Hp]
    w2 = w2_ref[...]              # bf16 [Hp, Op]
    b1 = b1_ref[...]              # f32  [1, Hp]
    b2 = b2_ref[...]              # f32  [1, Op]

    def chunk(c, carry):
        ts = pl.ds(pl.multiple_of(c * sub_t, sub_t), sub_t)
        # [N, sub_t, Dp] -> [R, Dp]: leading-dim merge, layout preserving.
        f = feat_ref[:, ts, :].reshape(R, Dp)
        # propagation 1: x[(n,t), :] = sum_m adj[n,m] * f[(m,t), :]
        x = jnp.dot(adjk, f, preferred_element_type=jnp.float32)
        # gcn1 + ReLU
        h = jnp.maximum(
            jnp.dot(x.astype(jnp.bfloat16), w1,
                    preferred_element_type=jnp.float32) + b1, 0.0)
        # propagation 2
        y = jnp.dot(adjk, h.astype(jnp.bfloat16),
                    preferred_element_type=jnp.float32)
        # gcn2
        o = jnp.dot(y.astype(jnp.bfloat16), w2,
                    preferred_element_type=jnp.float32) + b2
        # [R, Op] -> [N, sub_t, Op]: leading-dim split, layout preserving.
        out_ref[:, ts, :] = o.reshape(N, sub_t, Op).astype(out_ref.dtype)
        return carry

    lax.fori_loop(0, num_chunks, chunk, 0, unroll=True)


@functools.partial(jax.jit, static_argnames=("block_t", "sub_t"))
def temporal_gnn_forward(features, adj, w1, b1, w2, b2, *, block_t=None, sub_t=16):
    """features: [T, N, Din] (or [N, Din]), adj: [N, N], w1: [Din, H],
    b1: [1, H], w2: [H, Dout], b2: [1, Dout]  ->  [T, N, Dout] float32."""
    squeeze_t = features.ndim == 2
    if squeeze_t:
        features = features[None]
    T, N, Din = features.shape
    H = w1.shape[1]
    Dout = w2.shape[1]
    assert adj.shape == (N, N)
    assert N % 8 == 0, "node count must be a multiple of 8 (sublane tile)"
    # TODO(synk): zero-pad adj rows/cols (and the feature node axis) if a
    # non-multiple-of-8 node count is ever needed.

    # Inner chunk size (sub_t timesteps -> R = N*sub_t matmul rows per chunk).
    sub_t = max(8, min(sub_t, T))
    while T % sub_t:
        sub_t //= 2
    sub_t = max(sub_t, 1)

    if block_t is None:
        # v7x: 2 TensorCores -> grid of 2 "parallel" blocks shards across
        # cores.  Single-TC v5e/v6e: one grid step (~0.35us per-step overhead).
        half_ok = (T % 2 == 0) and ((T // 2) % sub_t == 0)
        block_t = T // 2 if (_dual_tensorcore() and half_ok) else T
    block_t = min(block_t, T)
    assert T % block_t == 0, "T must be divisible by block_t"
    assert block_t % sub_t == 0, "block_t must be divisible by sub_t"

    Dp = _round_up(Din, LANE)
    Hp = _round_up(H, LANE)
    Op = _round_up(Dout, LANE)
    # TODO(synk): if this kernel ever becomes MXU-cycle-bound (it is overhead
    # bound at these sizes), shrink the contraction-dim padding of Din/H to a
    # 16-multiple instead of 128 to cut wasted MXU passes and feature DMA.

    R = N * sub_t

    # ---- host-side packing (tiny, fused by XLA) ------------------------------
    # Node-major features [N, T, Dp], zero-padded feature axis, bf16 operands.
    feat_p = jnp.pad(jnp.transpose(features, (1, 0, 2)),
                     ((0, 0), (0, 0), (0, Dp - Din))).astype(jnp.bfloat16)
    # Block-diagonal temporal adjacency adj (x) I_sub_t: one dense MXU matmul
    # applies adj to every timestep of a chunk at once (node-major rows).
    adj_kron = jnp.kron(adj, jnp.eye(sub_t, dtype=adj.dtype)).astype(jnp.bfloat16)
    w1_p = jnp.pad(w1, ((0, Dp - Din), (0, Hp - H))).astype(jnp.bfloat16)
    w2_p = jnp.pad(w2, ((0, Hp - H), (0, Op - Dout))).astype(jnp.bfloat16)
    b1_p = jnp.pad(b1.reshape(1, H), ((0, 0), (0, Hp - H))).astype(jnp.float32)
    b2_p = jnp.pad(b2.reshape(1, Dout), ((0, 0), (0, Op - Dout))).astype(jnp.float32)

    const = lambda shape: pl.BlockSpec(shape, lambda t: tuple(0 for _ in shape))

    n_chunks = T // sub_t
    flops = 2 * n_chunks * R * (R * Dp + Dp * Hp + R * Hp + Hp * Op)
    bytes_accessed = (adj_kron.size * 2 + feat_p.size * 2 + w1_p.size * 2 +
                      w2_p.size * 2 + b1_p.size * 4 + b2_p.size * 4 +
                      N * T * Op * 2)

    out_p = pl.pallas_call(
        functools.partial(temporal_gnn_kernel, sub_t=sub_t),
        out_shape=jax.ShapeDtypeStruct((N, T, Op), jnp.bfloat16),
        grid=(T // block_t,),
        in_specs=[
            const((R, R)),                                        # adj (x) I (resident)
            pl.BlockSpec((N, block_t, Dp), lambda t: (0, t, 0)),  # features (pipelined)
            const((Dp, Hp)),                                      # W1 (resident)
            const((1, Hp)),                                       # b1
            const((Hp, Op)),                                      # W2 (resident)
            const((1, Op)),                                       # b2
        ],
        out_specs=pl.BlockSpec((N, block_t, Op), lambda t: (0, t, 0)),
        compiler_params=pltpu.CompilerParams(
            dimension_semantics=("parallel",)),
        cost_estimate=pl.CostEstimate(
            flops=flops, transcendentals=0, bytes_accessed=bytes_accessed),
    )(adj_kron, feat_p, w1_p, b1_p, w2_p, b2_p)

    # Slice off lane padding, restore [T, N, Dout], upcast; only 32 KiB of
    # real data, fused by XLA into one small copy.
    out = jnp.transpose(out_p[:, :, :Dout], (1, 0, 2)).astype(jnp.float32)
    return out[0] if squeeze_t else out


def init_linear(key, in_dim, out_dim):
    # Mimic PyTorch nn.Linear init: U(-1/sqrt(in_dim), 1/sqrt(in_dim)).
    kw, kb = jax.random.split(key)
    bound = 1.0 / jnp.sqrt(jnp.float32(in_dim))
    # weight stored pre-transposed as [in_dim, out_dim]
    w = jax.random.uniform(kw, (in_dim, out_dim), jnp.float32, -bound, bound)
    b = jax.random.uniform(kb, (1, out_dim), jnp.float32, -bound, bound)
    return w, b


if __name__ == "__main__":
    key = jax.random.PRNGKey(0)
    k_feat, k_adj, k_l1, k_l2 = jax.random.split(key, 4)

    # T=64 timesteps batched into one kernel call; N=16 nodes,
    # input_dim=16, hidden_dim=32, output_dim=8 (padded to 128 lanes inside).
    T, N, input_dim, hidden_dim, output_dim = 64, 16, 16, 32, 8

    features = jax.random.normal(k_feat, (T, N, input_dim), jnp.float32)
    adj = jax.random.uniform(k_adj, (N, N), jnp.float32)

    w1, b1 = init_linear(k_l1, input_dim, hidden_dim)
    w2, b2 = init_linear(k_l2, hidden_dim, output_dim)

    out = temporal_gnn_forward(features, adj, w1, b1, w2, b2)
    out = jax.block_until_ready(out)

    # Pure-JAX reference mirroring the kernel numerics (bf16 matmul operands,
    # f32 accumulation, bf16 output store), applied per timestep exactly like
    # the original torch module (adj broadcast over the leading T axis).
    bf = lambda a: a.astype(jnp.bfloat16).astype(jnp.float32)
    hp = jax.lax.Precision.HIGHEST
    adj_r, feat_r, w1_r, w2_r = bf(adj), bf(features), bf(w1), bf(w2)
    x_ref = jnp.einsum("nm,tmd->tnd", adj_r, feat_r, precision=hp)
    h_ref = jnp.maximum(jnp.einsum("tnd,dh->tnh", bf(x_ref), w1_r, precision=hp) + b1, 0.0)
    y_ref = jnp.einsum("nm,tmh->tnh", adj_r, bf(h_ref), precision=hp)
    ref = bf(jnp.einsum("tnh,ho->tno", bf(y_ref), w2_r, precision=hp) + b2)

    assert out.shape == (T, N, output_dim)
    max_err = float(jnp.max(jnp.abs(out - ref)))
    assert jnp.allclose(out, ref, atol=1e-2, rtol=1e-2), f"max abs err={max_err}"
    print("KERNEL_OK")
</pallas_src>

<mosaic_0001>
module attributes {stable_mosaic.version = 11 : i64} {
  func.func @temporal_gnn_kernel(%arg0: i32, %arg1: memref<256x256xbf16, #tpu.memory_space<vmem>>, %arg2: memref<16x64x128xbf16, #tpu.memory_space<vmem>>, %arg3: memref<128x128xbf16, #tpu.memory_space<vmem>>, %arg4: memref<1x128xf32, #tpu.memory_space<vmem>>, %arg5: memref<128x128xbf16, #tpu.memory_space<vmem>>, %arg6: memref<1x128xf32, #tpu.memory_space<vmem>>, %arg7: memref<16x64x128xbf16, #tpu.memory_space<vmem>>) attributes {dimension_semantics = [#tpu.dimension_semantics<parallel>], iteration_bounds = array<i64: 1>, scalar_prefetch = 0 : i64, scratch_operands = 0 : i64, tpu.core_type = #tpu.core_type<tc>, window_params = [{pipeline_mode = #tpu.pipeline_mode<synchronous>, transform_indices = @transform_0, window_bounds = array<i64: 256, 256>}, {transform_indices = @transform_1, window_bounds = array<i64: 16, 64, 128>}, {pipeline_mode = #tpu.pipeline_mode<synchronous>, transform_indices = @transform_2, window_bounds = array<i64: 128, 128>}, {pipeline_mode = #tpu.pipeline_mode<synchronous>, transform_indices = @transform_3, window_bounds = array<i64: 1, 128>}, {pipeline_mode = #tpu.pipeline_mode<synchronous>, transform_indices = @transform_4, window_bounds = array<i64: 128, 128>}, {pipeline_mode = #tpu.pipeline_mode<synchronous>, transform_indices = @transform_5, window_bounds = array<i64: 1, 128>}, {transform_indices = @transform_6, window_bounds = array<i64: 16, 64, 128>}]} {
    %c0 = arith.constant 0 : index
    %c0_0 = arith.constant 0 : index
    %0 = vector.load %arg1[%c0, %c0_0] : memref<256x256xbf16, #tpu.memory_space<vmem>>, vector<256x256xbf16>
    %c0_1 = arith.constant 0 : index
    %c0_2 = arith.constant 0 : index
    %1 = vector.load %arg3[%c0_1, %c0_2] : memref<128x128xbf16, #tpu.memory_space<vmem>>, vector<128x128xbf16>
    %c0_3 = arith.constant 0 : index
    %c0_4 = arith.constant 0 : index
    %2 = vector.load %arg5[%c0_3, %c0_4] : memref<128x128xbf16, #tpu.memory_space<vmem>>, vector<128x128xbf16>
    %c0_5 = arith.constant 0 : index
    %c0_6 = arith.constant 0 : index
    %3 = vector.load %arg4[%c0_5, %c0_6] : memref<1x128xf32, #tpu.memory_space<vmem>>, vector<1x128xf32>
    %c0_7 = arith.constant 0 : index
    %c0_8 = arith.constant 0 : index
    %4 = vector.load %arg6[%c0_7, %c0_8] : memref<1x128xf32, #tpu.memory_space<vmem>>, vector<1x128xf32>
    %c0_i32 = arith.constant 0 : i32
    %c16_i32 = arith.constant 16 : i32
    %5 = arith.muli %c0_i32, %c16_i32 : i32
    %6 = tpu.assume_multiple %5, 16 : i32
    %c0_9 = arith.constant 0 : index
    %7 = arith.index_cast %6 : i32 to index
    %c0_10 = arith.constant 0 : index
    %8 = vector.load %arg2[%c0_9, %7, %c0_10] : memref<16x64x128xbf16, #tpu.memory_space<vmem>>, vector<16x16x128xbf16>
    %9 = vector.shape_cast %8 : vector<16x16x128xbf16> to vector<256x128xbf16>
    %cst = arith.constant dense<0.000000e+00> : vector<256x128xf32>
    %10 = tpu.matmul %0, %9, %cst {dimension_numbers = #tpu.dot_dimension_numbers<[1], [0], [0], [1], [0, 0, 1, 1], [], []>} : vector<256x256xbf16>, vector<256x128xbf16>, vector<256x128xf32> -> vector<256x128xf32>
    %11 = arith.truncf %10 : vector<256x128xf32> to vector<256x128xbf16>
    %cst_11 = arith.constant dense<0.000000e+00> : vector<256x128xf32>
    %12 = tpu.matmul %11, %1, %cst_11 {dimension_numbers = #tpu.dot_dimension_numbers<[1], [0], [0], [1], [0, 0, 1, 1], [], []>} : vector<256x128xbf16>, vector<128x128xbf16>, vector<256x128xf32> -> vector<256x128xf32>
    %13 = vector.broadcast %3 : vector<1x128xf32> to vector<256x128xf32>
    %14 = arith.addf %12, %13 : vector<256x128xf32>
    %cst_12 = arith.constant 0.000000e+00 : f32
    %15 = vector.broadcast %cst_12 : f32 to vector<256x128xf32>
    %16 = arith.maximumf %14, %15 : vector<256x128xf32>
    %17 = arith.truncf %16 : vector<256x128xf32> to vector<256x128xbf16>
    %cst_13 = arith.constant dense<0.000000e+00> : vector<256x128xf32>
    %18 = tpu.matmul %0, %17, %cst_13 {dimension_numbers = #tpu.dot_dimension_numbers<[1], [0], [0], [1], [0, 0, 1, 1], [], []>} : vector<256x256xbf16>, vector<256x128xbf16>, vector<256x128xf32> -> vector<256x128xf32>
    %19 = arith.truncf %18 : vector<256x128xf32> to vector<256x128xbf16>
    %cst_14 = arith.constant dense<0.000000e+00> : vector<256x128xf32>
    %20 = tpu.matmul %19, %2, %cst_14 {dimension_numbers = #tpu.dot_dimension_numbers<[1], [0], [0], [1], [0, 0, 1, 1], [], []>} : vector<256x128xbf16>, vector<128x128xbf16>, vector<256x128xf32> -> vector<256x128xf32>
    %21 = vector.broadcast %4 : vector<1x128xf32> to vector<256x128xf32>
    %22 = arith.addf %20, %21 : vector<256x128xf32>
    %23 = vector.shape_cast %22 : vector<256x128xf32> to vector<16x16x128xf32>
    %24 = arith.truncf %23 : vector<16x16x128xf32> to vector<16x16x128xbf16>
    %c0_15 = arith.constant 0 : index
    %25 = arith.index_cast %6 : i32 to index
    %c0_16 = arith.constant 0 : index
    %26 = vector.load %arg7[%c0_15, %25, %c0_16] : memref<16x64x128xbf16, #tpu.memory_space<vmem>>, vector<16x16x128xbf16>
    tpu.vector_store %arg7[%c0_15, %25, %c0_16], %24 {strides = array<i32>} : memref<16x64x128xbf16, #tpu.memory_space<vmem>>, vector<16x16x128xbf16>,
    %c1_i32 = arith.constant 1 : i32
    %c16_i32_17 = arith.constant 16 : i32
    %27 = arith.muli %c1_i32, %c16_i32_17 : i32
    %28 = tpu.assume_multiple %27, 16 : i32
    %c0_18 = arith.constant 0 : index
    %29 = arith.index_cast %28 : i32 to index
    %c0_19 = arith.constant 0 : index
    %30 = vector.load %arg2[%c0_18, %29, %c0_19] : memref<16x64x128xbf16, #tpu.memory_space<vmem>>, vector<16x16x128xbf16>
    %31 = vector.shape_cast %30 : vector<16x16x128xbf16> to vector<256x128xbf16>
    %cst_20 = arith.constant dense<0.000000e+00> : vector<256x128xf32>
    %32 = tpu.matmul %0, %31, %cst_20 {dimension_numbers = #tpu.dot_dimension_numbers<[1], [0], [0], [1], [0, 0, 1, 1], [], []>} : vector<256x256xbf16>, vector<256x128xbf16>, vector<256x128xf32> -> vector<256x128xf32>
    %33 = arith.truncf %32 : vector<256x128xf32> to vector<256x128xbf16>
    %cst_21 = arith.constant dense<0.000000e+00> : vector<256x128xf32>
    %34 = tpu.matmul %33, %1, %cst_21 {dimension_numbers = #tpu.dot_dimension_numbers<[1], [0], [0], [1], [0, 0, 1, 1], [], []>} : vector<256x128xbf16>, vector<128x128xbf16>, vector<256x128xf32> -> vector<256x128xf32>
    %35 = vector.broadcast %3 : vector<1x128xf32> to vector<256x128xf32>
    %36 = arith.addf %34, %35 : vector<256x128xf32>
    %cst_22 = arith.constant 0.000000e+00 : f32
    %37 = vector.broadcast %cst_22 : f32 to vector<256x128xf32>
    %38 = arith.maximumf %36, %37 : vector<256x128xf32>
    %39 = arith.truncf %38 : vector<256x128xf32> to vector<256x128xbf16>
    %cst_23 = arith.constant dense<0.000000e+00> : vector<256x128xf32>
    %40 = tpu.matmul %0, %39, %cst_23 {dimension_numbers = #tpu.dot_dimension_numbers<[1], [0], [0], [1], [0, 0, 1, 1], [], []>} : vector<256x256xbf16>, vector<256x128xbf16>, vector<256x128xf32> -> vector<256x128xf32>
    %41 = arith.truncf %40 : vector<256x128xf32> to vector<256x128xbf16>
    %cst_24 = arith.constant dense<0.000000e+00> : vector<256x128xf32>
    %42 = tpu.matmul %41, %2, %cst_24 {dimension_numbers = #tpu.dot_dimension_numbers<[1], [0], [0], [1], [0, 0, 1, 1], [], []>} : vector<256x128xbf16>, vector<128x128xbf16>, vector<256x128xf32> -> vector<256x128xf32>
    %43 = vector.broadcast %4 : vector<1x128xf32> to vector<256x128xf32>
    %44 = arith.addf %42, %43 : vector<256x128xf32>
    %45 = vector.shape_cast %44 : vector<256x128xf32> to vector<16x16x128xf32>
    %46 = arith.truncf %45 : vector<16x16x128xf32> to vector<16x16x128xbf16>
    %c0_25 = arith.constant 0 : index
    %47 = arith.index_cast %28 : i32 to index
    %c0_26 = arith.constant 0 : index
    %48 = vector.load %arg7[%c0_25, %47, %c0_26] : memref<16x64x128xbf16, #tpu.memory_space<vmem>>, vector<16x16x128xbf16>
    tpu.vector_store %arg7[%c0_25, %47, %c0_26], %46 {strides = array<i32>} : memref<16x64x128xbf16, #tpu.memory_space<vmem>>, vector<16x16x128xbf16>,
    %c2_i32 = arith.constant 2 : i32
    %c16_i32_27 = arith.constant 16 : i32
    %49 = arith.muli %c2_i32, %c16_i32_27 : i32
    %50 = tpu.assume_multiple %49, 16 : i32
    %c0_28 = arith.constant 0 : index
    %51 = arith.index_cast %50 : i32 to index
    %c0_29 = arith.constant 0 : index
    %52 = vector.load %arg2[%c0_28, %51, %c0_29] : memref<16x64x128xbf16, #tpu.memory_space<vmem>>, vector<16x16x128xbf16>
    %53 = vector.shape_cast %52 : vector<16x16x128xbf16> to vector<256x128xbf16>
    %cst_30 = arith.constant dense<0.000000e+00> : vector<256x128xf32>
    %54 = tpu.matmul %0, %53, %cst_30 {dimension_numbers = #tpu.dot_dimension_numbers<[1], [0], [0], [1], [0, 0, 1, 1], [], []>} : vector<256x256xbf16>, vector<256x128xbf16>, vector<256x128xf32> -> vector<256x128xf32>
    %55 = arith.truncf %54 : vector<256x128xf32> to vector<256x128xbf16>
    %cst_31 = arith.constant dense<0.000000e+00> : vector<256x128xf32>
    %56 = tpu.matmul %55, %1, %cst_31 {dimension_numbers = #tpu.dot_dimension_numbers<[1], [0], [0], [1], [0, 0, 1, 1], [], []>} : vector<256x128xbf16>, vector<128x128xbf16>, vector<256x128xf32> -> vector<256x128xf32>
    %57 = vector.broadcast %3 : vector<1x128xf32> to vector<256x128xf32>
    %58 = arith.addf %56, %57 : vector<256x128xf32>
    %cst_32 = arith.constant 0.000000e+00 : f32
    %59 = vector.broadcast %cst_32 : f32 to vector<256x128xf32>
    %60 = arith.maximumf %58, %59 : vector<256x128xf32>
    %61 = arith.truncf %60 : vector<256x128xf32> to vector<256x128xbf16>
    %cst_33 = arith.constant dense<0.000000e+00> : vector<256x128xf32>
    %62 = tpu.matmul %0, %61, %cst_33 {dimension_numbers = #tpu.dot_dimension_numbers<[1], [0], [0], [1], [0, 0, 1, 1], [], []>} : vector<256x256xbf16>, vector<256x128xbf16>, vector<256x128xf32> -> vector<256x128xf32>
    %63 = arith.truncf %62 : vector<256x128xf32> to vector<256x128xbf16>
    %cst_34 = arith.constant dense<0.000000e+00> : vector<256x128xf32>
    %64 = tpu.matmul %63, %2, %cst_34 {dimension_numbers = #tpu.dot_dimension_numbers<[1], [0], [0], [1], [0, 0, 1, 1], [], []>} : vector<256x128xbf16>, vector<128x128xbf16>, vector<256x128xf32> -> vector<256x128xf32>
    %65 = vector.broadcast %4 : vector<1x128xf32> to vector<256x128xf32>
    %66 = arith.addf %64, %65 : vector<256x128xf32>
    %67 = vector.shape_cast %66 : vector<256x128xf32> to vector<16x16x128xf32>
    %68 = arith.truncf %67 : vector<16x16x128xf32> to vector<16x16x128xbf16>
    %c0_35 = arith.constant 0 : index
    %69 = arith.index_cast %50 : i32 to index
    %c0_36 = arith.constant 0 : index
    %70 = vector.load %arg7[%c0_35, %69, %c0_36] : memref<16x64x128xbf16, #tpu.memory_space<vmem>>, vector<16x16x128xbf16>
    tpu.vector_store %arg7[%c0_35, %69, %c0_36], %68 {strides = array<i32>} : memref<16x64x128xbf16, #tpu.memory_space<vmem>>, vector<16x16x128xbf16>,
    %c3_i32 = arith.constant 3 : i32
    %c16_i32_37 = arith.constant 16 : i32
    %71 = arith.muli %c3_i32, %c16_i32_37 : i32
    %72 = tpu.assume_multiple %71, 16 : i32
    %c0_38 = arith.constant 0 : index
    %73 = arith.index_cast %72 : i32 to index
    %c0_39 = arith.constant 0 : index
    %74 = vector.load %arg2[%c0_38, %73, %c0_39] : memref<16x64x128xbf16, #tpu.memory_space<vmem>>, vector<16x16x128xbf16>
    %75 = vector.shape_cast %74 : vector<16x16x128xbf16> to vector<256x128xbf16>
    %cst_40 = arith.constant dense<0.000000e+00> : vector<256x128xf32>
    %76 = tpu.matmul %0, %75, %cst_40 {dimension_numbers = #tpu.dot_dimension_numbers<[1], [0], [0], [1], [0, 0, 1, 1], [], []>} : vector<256x256xbf16>, vector<256x128xbf16>, vector<256x128xf32> -> vector<256x128xf32>
    %77 = arith.truncf %76 : vector<256x128xf32> to vector<256x128xbf16>
    %cst_41 = arith.constant dense<0.000000e+00> : vector<256x128xf32>
    %78 = tpu.matmul %77, %1, %cst_41 {dimension_numbers = #tpu.dot_dimension_numbers<[1], [0], [0], [1], [0, 0, 1, 1], [], []>} : vector<256x128xbf16>, vector<128x128xbf16>, vector<256x128xf32> -> vector<256x128xf32>
    %79 = vector.broadcast %3 : vector<1x128xf32> to vector<256x128xf32>
    %80 = arith.addf %78, %79 : vector<256x128xf32>
    %cst_42 = arith.constant 0.000000e+00 : f32
    %81 = vector.broadcast %cst_42 : f32 to vector<256x128xf32>
    %82 = arith.maximumf %80, %81 : vector<256x128xf32>
    %83 = arith.truncf %82 : vector<256x128xf32> to vector<256x128xbf16>
    %cst_43 = arith.constant dense<0.000000e+00> : vector<256x128xf32>
    %84 = tpu.matmul %0, %83, %cst_43 {dimension_numbers = #tpu.dot_dimension_numbers<[1], [0], [0], [1], [0, 0, 1, 1], [], []>} : vector<256x256xbf16>, vector<256x128xbf16>, vector<256x128xf32> -> vector<256x128xf32>
    %85 = arith.truncf %84 : vector<256x128xf32> to vector<256x128xbf16>
    %cst_44 = arith.constant dense<0.000000e+00> : vector<256x128xf32>
    %86 = tpu.matmul %85, %2, %cst_44 {dimension_numbers = #tpu.dot_dimension_numbers<[1], [0], [0], [1], [0, 0, 1, 1], [], []>} : vector<256x128xbf16>, vector<128x128xbf16>, vector<256x128xf32> -> vector<256x128xf32>
    %87 = vector.broadcast %4 : vector<1x128xf32> to vector<256x128xf32>
    %88 = arith.addf %86, %87 : vector<256x128xf32>
    %89 = vector.shape_cast %88 : vector<256x128xf32> to vector<16x16x128xf32>
    %90 = arith.truncf %89 : vector<16x16x128xf32> to vector<16x16x128xbf16>
    %c0_45 = arith.constant 0 : index
    %91 = arith.index_cast %72 : i32 to index
    %c0_46 = arith.constant 0 : index
    %92 = vector.load %arg7[%c0_45, %91, %c0_46] : memref<16x64x128xbf16, #tpu.memory_space<vmem>>, vector<16x16x128xbf16>
    tpu.vector_store %arg7[%c0_45, %91, %c0_46], %90 {strides = array<i32>} : memref<16x64x128xbf16, #tpu.memory_space<vmem>>, vector<16x16x128xbf16>,
    %c4_i32 = arith.constant 4 : i32
    return
  }
  func.func @transform_0(%arg0: i32) -> (i32, i32) {
    %c0_i32 = arith.constant 0 : i32
    %c0_i32_0 = arith.constant 0 : i32
    %c0_i32_1 = arith.constant 0 : i32
    return %c0_i32, %c0_i32_0 : i32, i32
  }
  func.func @transform_1(%arg0: i32) -> (i32, i32, i32) {
    %c0_i32 = arith.constant 0 : i32
    %c0_i32_0 = arith.constant 0 : i32
    %c0_i32_1 = arith.constant 0 : i32
    return %c0_i32, %arg0, %c0_i32_0 : i32, i32, i32
  }
  func.func @transform_2(%arg0: i32) -> (i32, i32) {
    %c0_i32 = arith.constant 0 : i32
    %c0_i32_0 = arith.constant 0 : i32
    %c0_i32_1 = arith.constant 0 : i32
    return %c0_i32, %c0_i32_0 : i32, i32
  }
  func.func @transform_3(%arg0: i32) -> (i32, i32) {
    %c0_i32 = arith.constant 0 : i32
    %c0_i32_0 = arith.constant 0 : i32
    %c0_i32_1 = arith.constant 0 : i32
    return %c0_i32, %c0_i32_0 : i32, i32
  }
  func.func @transform_4(%arg0: i32) -> (i32, i32) {
    %c0_i32 = arith.constant 0 : i32
    %c0_i32_0 = arith.constant 0 : i32
    %c0_i32_1 = arith.constant 0 : i32
    return %c0_i32, %c0_i32_0 : i32, i32
  }
  func.func @transform_5(%arg0: i32) -> (i32, i32) {
    %c0_i32 = arith.constant 0 : i32
    %c0_i32_0 = arith.constant 0 : i32
    %c0_i32_1 = arith.constant 0 : i32
    return %c0_i32, %c0_i32_0 : i32, i32
  }
  func.func @transform_6(%arg0: i32) -> (i32, i32, i32) {
    %c0_i32 = arith.constant 0 : i32
    %c0_i32_0 = arith.constant 0 : i32
    %c0_i32_1 = arith.constant 0 : i32
    return %c0_i32, %arg0, %c0_i32_0 : i32, i32, i32
  }
}

</mosaic_0001>

<llo_original>
// kernel: temporal_gnn_forward.1
$region0: #{temporal_gnn_forward.1}
  #allocation0 [shape = 'u32[]', space=smem, size = 0x4, offset = 0x4, fixed_abs, tag = 'smem constant byte address 0x4 - core index']
  #allocation1 [shape = 'u32[144,128]{1,0:T(1,128)}', space=vmem, size = 0x12000, scoped, tag = 'internal scratch']
  %s0 = inlined_call_operand.vmem [shape: bf16[256,256], index: 0, kind: input, shape index: {}]
  %s1 = inlined_call_operand.vmem [shape: bf16[16,64,128], index: 1, kind: input, shape index: {}]
  %s2 = inlined_call_operand.vmem [shape: bf16[128,128], index: 2, kind: input, shape index: {}]
  %s3 = inlined_call_operand.vmem [shape: f32[1,128], index: 3, kind: input, shape index: {}]
  %s4 = inlined_call_operand.vmem [shape: bf16[128,128], index: 4, kind: input, shape index: {}]
  %s5 = inlined_call_operand.vmem [shape: f32[1,128], index: 5, kind: input, shape index: {}]
  %s6 = inlined_call_operand.vmem [shape: bf16[16,64,128], index: 6, kind: output, shape index: {}]
  %s7 = sld [smem:[#allocation0]]
  $region34: #{temporal_gnn_forward.1} parent=0
    _
  %s9 = ssub.s32 1, %s7
  %s10 = scalar_select 0, %s9, %s7
  // Predicated region
  $region2: #{temporal_gnn_forward.1} parent=0 // pred_check
    _
  $region3: #{temporal_gnn_forward.1} parent=0 // pred_check_branch
    %12 = sbr.rel (0) target = $region5
  $region4: #{temporal_gnn_forward.1} parent=0 // pred_region
    _
  $region5: #{temporal_gnn_forward.1} parent=0 // pred_fallthru
    _
  // Predicated region
  $region6: #{temporal_gnn_forward.1} parent=0 // pred_check
    _
  $region7: #{temporal_gnn_forward.1} parent=0 // pred_check_branch
    %14 = sbr.rel (0) target = $region9
  $region8: #{temporal_gnn_forward.1} parent=0 // pred_region
    _
  $region9: #{temporal_gnn_forward.1} parent=0 // pred_fallthru
    _
  // Predicated region
  $region10: #{temporal_gnn_forward.1} parent=0 // pred_check
    _
  $region11: #{temporal_gnn_forward.1} parent=0 // pred_check_branch
    %16 = sbr.rel (0) target = $region13
  $region12: #{temporal_gnn_forward.1} parent=0 // pred_region
    _
  $region13: #{temporal_gnn_forward.1} parent=0 // pred_fallthru
    _
  // Predicated region
  $region14: #{temporal_gnn_forward.1} parent=0 // pred_check
    _
  $region15: #{temporal_gnn_forward.1} parent=0 // pred_check_branch
    %18 = sbr.rel (0) target = $region17
  $region16: #{temporal_gnn_forward.1} parent=0 // pred_region
    _
  $region17: #{temporal_gnn_forward.1} parent=0 // pred_fallthru
    _
  // Predicated region
  $region18: #{temporal_gnn_forward.1} parent=0 // pred_check
    _
  $region19: #{temporal_gnn_forward.1} parent=0 // pred_check_branch
    %20 = sbr.rel (0) target = $region21
  $region20: #{temporal_gnn_forward.1} parent=0 // pred_region
    _
  $region21: #{temporal_gnn_forward.1} parent=0 // pred_fallthru
    _
  // Predicated region
  $region22: #{temporal_gnn_forward.1} parent=0 // pred_check
    _
  $region23: #{temporal_gnn_forward.1} parent=0 // pred_check_branch
    %22 = sbr.rel (0) target = $region25
  $region24: #{temporal_gnn_forward.1} parent=0 // pred_region
    _
  $region25: #{temporal_gnn_forward.1} parent=0 // pred_fallthru
    _
  %v24 = vld [vmem:[%s0] sm:$0xff]
  %v25 = vld [vmem:[%s0 + $0x8] sm:$0xff]
  %v26 = vld [vmem:[%s0 + $0x10] sm:$0xff]
  %v27 = vld [vmem:[%s0 + $0x18] sm:$0xff]
  %v28 = vld [vmem:[%s0 + $0x20] sm:$0xff]
  %v29 = vld [vmem:[%s0 + $0x28] sm:$0xff]
  %v30 = vld [vmem:[%s0 + $0x30] sm:$0xff]
  %v31 = vld [vmem:[%s0 + $0x38] sm:$0xff]
  %v32 = vld [vmem:[%s0 + $0x40] sm:$0xff]
  %v33 = vld [vmem:[%s0 + $0x48] sm:$0xff]
  %v34 = vld [vmem:[%s0 + $0x50] sm:$0xff]
  %v35 = vld [vmem:[%s0 + $0x58] sm:$0xff]
  %v36 = vld [vmem:[%s0 + $0x60] sm:$0xff]
  %v37 = vld [vmem:[%s0 + $0x68] sm:$0xff]
  %v38 = vld [vmem:[%s0 + $0x70] sm:$0xff]
  %v39 = vld [vmem:[%s0 + $0x78] sm:$0xff]
  %v40 = vld [vmem:[%s0 + $0x80] sm:$0xff]
  %v41 = vld [vmem:[%s0 + $0x88] sm:$0xff]
  %v42 = vld [vmem:[%s0 + $0x90] sm:$0xff]
  %v43 = vld [vmem:[%s0 + $0x98] sm:$0xff]
  %v44 = vld [vmem:[%s0 + $0xa0] sm:$0xff]
  %v45 = vld [vmem:[%s0 + $0xa8] sm:$0xff]
  %v46 = vld [vmem:[%s0 + $0xb0] sm:$0xff]
  %v47 = vld [vmem:[%s0 + $0xb8] sm:$0xff]
  %v48 = vld [vmem:[%s0 + $0xc0] sm:$0xff]
  %v49 = vld [vmem:[%s0 + $0xc8] sm:$0xff]
  %v50 = vld [vmem:[%s0 + $0xd0] sm:$0xff]
  %v51 = vld [vmem:[%s0 + $0xd8] sm:$0xff]
  %v52 = vld [vmem:[%s0 + $0xe0] sm:$0xff]
  %v53 = vld [vmem:[%s0 + $0xe8] sm:$0xff]
  %v54 = vld [vmem:[%s0 + $0xf0] sm:$0xff]
  %v55 = vld [vmem:[%s0 + $0xf8] sm:$0xff]
  %v56 = vld [vmem:[%s2] sm:$0xf]
  %v57 = vld [vmem:[%s2 + $0x4] sm:$0xf]
  %v58 = vld [vmem:[%s2 + $0x8] sm:$0xf]
  %v59 = vld [vmem:[%s2 + $0xc] sm:$0xf]
  %v60 = vld [vmem:[%s2 + $0x10] sm:$0xf]
  %v61 = vld [vmem:[%s2 + $0x14] sm:$0xf]
  %v62 = vld [vmem:[%s2 + $0x18] sm:$0xf]
  %v63 = vld [vmem:[%s2 + $0x1c] sm:$0xf]
  %v64 = vld [vmem:[%s2 + $0x20] sm:$0xf]
  %v65 = vld [vmem:[%s2 + $0x24] sm:$0xf]
  %v66 = vld [vmem:[%s2 + $0x28] sm:$0xf]
  %v67 = vld [vmem:[%s2 + $0x2c] sm:$0xf]
  %v68 = vld [vmem:[%s2 + $0x30] sm:$0xf]
  %v69 = vld [vmem:[%s2 + $0x34] sm:$0xf]
  %v70 = vld [vmem:[%s2 + $0x38] sm:$0xf]
  %v71 = vld [vmem:[%s2 + $0x3c] sm:$0xf]
  %v72 = vld [vmem:[%s4] sm:$0xf]
  %v73 = vld [vmem:[%s4 + $0x4] sm:$0xf]
  %v74 = vld [vmem:[%s4 + $0x8] sm:$0xf]
  %v75 = vld [vmem:[%s4 + $0xc] sm:$0xf]
  %v76 = vld [vmem:[%s4 + $0x10] sm:$0xf]
  %v77 = vld [vmem:[%s4 + $0x14] sm:$0xf]
  %v78 = vld [vmem:[%s4 + $0x18] sm:$0xf]
  %v79 = vld [vmem:[%s4 + $0x1c] sm:$0xf]
  %v80 = vld [vmem:[%s4 + $0x20] sm:$0xf]
  %v81 = vld [vmem:[%s4 + $0x24] sm:$0xf]
  %v82 = vld [vmem:[%s4 + $0x28] sm:$0xf]
  %v83 = vld [vmem:[%s4 + $0x2c] sm:$0xf]
  %v84 = vld [vmem:[%s4 + $0x30] sm:$0xf]
  %v85 = vld [vmem:[%s4 + $0x34] sm:$0xf]
  %v86 = vld [vmem:[%s4 + $0x38] sm:$0xf]
  %v87 = vld [vmem:[%s4 + $0x3c] sm:$0xf]
  %v88 = vld [vmem:[%s3] sm:$0x1]
  %v89 = vld [vmem:[%s5] sm:$0x1]
  %v90 = vld [vmem:[%s1] sm:$0xf]
  %v91 = vld [vmem:[%s1 + $0x4] sm:$0xf]
  %v92 = vld [vmem:[%s1 + $0x20] sm:$0xf]
  %v93 = vld [vmem:[%s1 + $0x24] sm:$0xf]
  %v94 = vld [vmem:[%s1 + $0x40] sm:$0xf]
  %v95 = vld [vmem:[%s1 + $0x44] sm:$0xf]
  %v96 = vld [vmem:[%s1 + $0x60] sm:$0xf]
  %v97 = vld [vmem:[%s1 + $0x64] sm:$0xf]
  %v98 = vld [vmem:[%s1 + $0x80] sm:$0xf]
  %v99 = vld [vmem:[%s1 + $0x84] sm:$0xf]
  %v100 = vld [vmem:[%s1 + $0xa0] sm:$0xf]
  %v101 = vld [vmem:[%s1 + $0xa4] sm:$0xf]
  %v102 = vld [vmem:[%s1 + $0xc0] sm:$0xf]
  %v103 = vld [vmem:[%s1 + $0xc4] sm:$0xf]
  %v104 = vld [vmem:[%s1 + $0xe0] sm:$0xf]
  %v105 = vld [vmem:[%s1 + $0xe4] sm:$0xf]
  %v106 = vld [vmem:[%s1 + $0x100] sm:$0xf]
  %v107 = vld [vmem:[%s1 + $0x104] sm:$0xf]
  %v108 = vld [vmem:[%s1 + $0x120] sm:$0xf]
  %v109 = vld [vmem:[%s1 + $0x124] sm:$0xf]
  %v110 = vld [vmem:[%s1 + $0x140] sm:$0xf]
  %v111 = vld [vmem:[%s1 + $0x144] sm:$0xf]
  %v112 = vld [vmem:[%s1 + $0x160] sm:$0xf]
  %v113 = vld [vmem:[%s1 + $0x164] sm:$0xf]
  %v114 = vld [vmem:[%s1 + $0x180] sm:$0xf]
  %v115 = vld [vmem:[%s1 + $0x184] sm:$0xf]
  %v116 = vld [vmem:[%s1 + $0x1a0] sm:$0xf]
  %v117 = vld [vmem:[%s1 + $0x1a4] sm:$0xf]
  %v118 = vld [vmem:[%s1 + $0x1c0] sm:$0xf]
  %v119 = vld [vmem:[%s1 + $0x1c4] sm:$0xf]
  %v120 = vld [vmem:[%s1 + $0x1e0] sm:$0xf]
  %v121 = vld [vmem:[%s1 + $0x1e4] sm:$0xf]
  %v154 = vunpack.c.l.b16 %v24
  %v155 = vunpack.c.h.b16 %v24
  %v156 = vunpack.c.l.b16 %v25
  %v157 = vunpack.c.h.b16 %v25
  %v158 = vunpack.c.l.b16 %v26
  %v159 = vunpack.c.h.b16 %v26
  %v160 = vunpack.c.l.b16 %v27
  %v161 = vunpack.c.h.b16 %v27
  %v162 = vunpack.c.l.b16 %v28
  %v163 = vunpack.c.h.b16 %v28
  %v164 = vunpack.c.l.b16 %v29
  %v165 = vunpack.c.h.b16 %v29
  %v166 = vunpack.c.l.b16 %v30
  %v167 = vunpack.c.h.b16 %v30
  %v168 = vunpack.c.l.b16 %v31
  %v169 = vunpack.c.h.b16 %v31
  %v170 = vunpack.c.l.b16 %v32
  %v171 = vunpack.c.h.b16 %v32
  %v172 = vunpack.c.l.b16 %v33
  %v173 = vunpack.c.h.b16 %v33
  %v174 = vunpack.c.l.b16 %v34
  %v175 = vunpack.c.h.b16 %v34
  %v176 = vunpack.c.l.b16 %v35
  %v177 = vunpack.c.h.b16 %v35
  %v178 = vunpack.c.l.b16 %v36
  %v179 = vunpack.c.h.b16 %v36
  %v180 = vunpack.c.l.b16 %v37
  %v181 = vunpack.c.h.b16 %v37
  %v182 = vunpack.c.l.b16 %v38
  %v183 = vunpack.c.h.b16 %v38
  %v184 = vunpack.c.l.b16 %v39
  %v185 = vunpack.c.h.b16 %v39
  %v186 = vunpack.c.l.b16 %v40
  %v187 = vunpack.c.h.b16 %v40
  %v188 = vunpack.c.l.b16 %v41
  %v189 = vunpack.c.h.b16 %v41
  %v190 = vunpack.c.l.b16 %v42
  %v191 = vunpack.c.h.b16 %v42
  %v192 = vunpack.c.l.b16 %v43
  %v193 = vunpack.c.h.b16 %v43
  %v194 = vunpack.c.l.b16 %v44
  %v195 = vunpack.c.h.b16 %v44
  %v196 = vunpack.c.l.b16 %v45
  %v197 = vunpack.c.h.b16 %v45
  %v198 = vunpack.c.l.b16 %v46
  %v199 = vunpack.c.h.b16 %v46
  %v200 = vunpack.c.l.b16 %v47
  %v201 = vunpack.c.h.b16 %v47
  %v202 = vunpack.c.l.b16 %v48
  %v203 = vunpack.c.h.b16 %v48
  %v204 = vunpack.c.l.b16 %v49
  %v205 = vunpack.c.h.b16 %v49
  %v206 = vunpack.c.l.b16 %v50
  %v207 = vunpack.c.h.b16 %v50
  %v208 = vunpack.c.l.b16 %v51
  %v209 = vunpack.c.h.b16 %v51
  %v210 = vunpack.c.l.b16 %v52
  %v211 = vunpack.c.h.b16 %v52
  %v212 = vunpack.c.l.b16 %v53
  %v213 = vunpack.c.h.b16 %v53
  %v214 = vunpack.c.l.b16 %v54
  %v215 = vunpack.c.h.b16 %v54
  %v216 = vunpack.c.l.b16 %v55
  %v217 = vunpack.c.h.b16 %v55
  %v218 = vpack.c.b16 %v156, %v154
  %v219 = vpack.c.b16 %v157, %v155
  %v220 = vpack.c.b16 %v160, %v158
  %v221 = vpack.c.b16 %v161, %v159
  %v222 = vpack.c.b16 %v164, %v162
  %v223 = vpack.c.b16 %v165, %v163
  %v224 = vpack.c.b16 %v168, %v166
  %v225 = vpack.c.b16 %v169, %v167
  %v226 = vpack.c.b16 %v172, %v170
  %v227 = vpack.c.b16 %v173, %v171
  %v228 = vpack.c.b16 %v176, %v174
  %v229 = vpack.c.b16 %v177, %v175
  %v230 = vpack.c.b16 %v180, %v178
  %v231 = vpack.c.b16 %v181, %v179
  %v232 = vpack.c.b16 %v184, %v182
  %v233 = vpack.c.b16 %v185, %v183
  %v234 = vpack.c.b16 %v188, %v186
  %v235 = vpack.c.b16 %v189, %v187
  %v236 = vpack.c.b16 %v192, %v190
  %v237 = vpack.c.b16 %v193, %v191
  %v238 = vpack.c.b16 %v196, %v194
  %v239 = vpack.c.b16 %v197, %v195
  %v240 = vpack.c.b16 %v200, %v198
  %v241 = vpack.c.b16 %v201, %v199
  %v242 = vpack.c.b16 %v204, %v202
  %v243 = vpack.c.b16 %v205, %v203
  %v244 = vpack.c.b16 %v208, %v206
  %v245 = vpack.c.b16 %v209, %v207
  %v246 = vpack.c.b16 %v212, %v210
  %v247 = vpack.c.b16 %v213, %v211
  %v248 = vpack.c.b16 %v216, %v214
  %v249 = vpack.c.b16 %v217, %v215
  %v314 = vunpack.c.l.b16 %v90
  %v315 = vunpack.c.l.b16 %v91
  %v316 = vunpack.c.l.b16 %v92
  %v317 = vunpack.c.l.b16 %v93
  %v318 = vunpack.c.l.b16 %v94
  %v319 = vunpack.c.l.b16 %v95
  %v320 = vunpack.c.l.b16 %v96
  %v321 = vunpack.c.l.b16 %v97
  %v322 = vunpack.c.l.b16 %v98
  %v323 = vunpack.c.l.b16 %v99
  %v324 = vunpack.c.l.b16 %v100
  %v325 = vunpack.c.l.b16 %v101
  %v326 = vunpack.c.l.b16 %v102
  %v327 = vunpack.c.l.b16 %v103
  %v328 = vunpack.c.l.b16 %v104
  %v329 = vunpack.c.l.b16 %v105
  %v330 = vunpack.c.l.b16 %v106
  %v331 = vunpack.c.l.b16 %v107
  %v332 = vunpack.c.l.b16 %v108
  %v333 = vunpack.c.l.b16 %v109
  %v334 = vunpack.c.l.b16 %v110
  %v335 = vunpack.c.l.b16 %v111
  %v336 = vunpack.c.l.b16 %v112
  %v337 = vunpack.c.l.b16 %v113
  %v338 = vunpack.c.l.b16 %v114
  %v339 = vunpack.c.l.b16 %v115
  %v340 = vunpack.c.l.b16 %v116
  %v341 = vunpack.c.l.b16 %v117
  %v342 = vunpack.c.l.b16 %v118
  %v343 = vunpack.c.l.b16 %v119
  %v344 = vunpack.c.l.b16 %v120
  %v345 = vunpack.c.l.b16 %v121
  %v346 = vpack.c.b16 %v315, %v314
  %v347 = vpack.c.b16 %v317, %v316
  %v348 = vpack.c.b16 %v319, %v318
  %v349 = vpack.c.b16 %v321, %v320
  %v350 = vpack.c.b16 %v323, %v322
  %v351 = vpack.c.b16 %v325, %v324
  %v352 = vpack.c.b16 %v327, %v326
  %v353 = vpack.c.b16 %v329, %v328
  %v354 = vpack.c.b16 %v331, %v330
  %v355 = vpack.c.b16 %v333, %v332
  %v356 = vpack.c.b16 %v335, %v334
  %v357 = vpack.c.b16 %v337, %v336
  %v358 = vpack.c.b16 %v339, %v338
  %v359 = vpack.c.b16 %v341, %v340
  %v360 = vpack.c.b16 %v343, %v342
  %v361 = vpack.c.b16 %v345, %v344
  %378 = vmatprep.subr.bf16.mxu0 0
  %379 = vmatpush1.bf16.msra.mxu0 %v346
  %380 = vmatprep.subr.bf16.mxu0 0
  %381 = vmatpush1.bf16.msra.mxu0 %v347
  %382 = vmatprep.subr.bf16.mxu0 0
  %383 = vmatpush1.bf16.msra.mxu0 %v348
  %384 = vmatprep.subr.bf16.mxu0 0
  %385 = vmatpush1.bf16.msra.mxu0 %v349
  %386 = vmatprep.subr.bf16.mxu0 0
  %387 = vmatpush1.bf16.msra.mxu0 %v350
  %388 = vmatprep.subr.bf16.mxu0 0
  %389 = vmatpush1.bf16.msra.mxu0 %v351
  %390 = vmatprep.subr.bf16.mxu0 0
  %391 = vmatpush1.bf16.msra.mxu0 %v352
  %392 = vmatprep.subr.bf16.mxu0 0
  %393 = vmatpush1.bf16.msra.mxu0 %v353
  %394 = vmatprep.subr.bf16.mxu0 0
  %395 = vmatpush1.bf16.msra.mxu0 %v354
  %396 = vmatprep.subr.bf16.mxu0 0
  %397 = vmatpush1.bf16.msra.mxu0 %v355
  %398 = vmatprep.subr.bf16.mxu0 0
  %399 = vmatpush1.bf16.msra.mxu0 %v356
  %400 = vmatprep.subr.bf16.mxu0 0
  %401 = vmatpush1.bf16.msra.mxu0 %v357
  %402 = vmatprep.subr.bf16.mxu0 0
  %403 = vmatpush1.bf16.msra.mxu0 %v358
  %404 = vmatprep.subr.bf16.mxu0 0
  %405 = vmatpush1.bf16.msra.mxu0 %v359
  %406 = vmatprep.subr.bf16.mxu0 0
  %407 = vmatpush1.bf16.msra.mxu0 %v360
  %408 = vmatprep.subr.bf16.mxu0 0
  %409 = vmatpush1.bf16.msra.mxu0 %v361
  %410 = vmatprep.mubr.bf16.mxu0 %v219
  %411 = vmatmul.mubr.bf16.gmra.mrb[0].mxu0 %v218
  %v412 = vpop.f32.mrb[0].mxu0
  %v413 = vadd.f32 0.0, %v412
  %v414 = vpop.f32.mrb[0].mxu0
  %v415 = vpop.f32.mrb[0].mxu0
  %v416 = vadd.f32 0.0, %v415
  %v417 = vpop.f32.mrb[0].mxu0
  %418 = vmatprep.mubr.bf16.mxu0 %v221
  %419 = vmatmul.mubr.bf16.gmra.mrb[0].mxu0 %v220
  %v420 = vpop.f32.mrb[0].mxu0
  %v421 = vadd.f32 0.0, %v420
  %v422 = vpop.f32.mrb[0].mxu0
  %v423 = vpop.f32.mrb[0].mxu0
  %v424 = vadd.f32 0.0, %v423
  %v425 = vpop.f32.mrb[0].mxu0
  %426 = vmatprep.mubr.bf16.mxu0 %v223
  %427 = vmatmul.mubr.bf16.gmra.mrb[0].mxu0 %v222
  %v428 = vpop.f32.mrb[0].mxu0
  %v429 = vadd.f32 0.0, %v428
  %v430 = vpop.f32.mrb[0].mxu0
  %v431 = vpop.f32.mrb[0].mxu0
  %v432 = vadd.f32 0.0, %v431
  %v433 = vpop.f32.mrb[0].mxu0
  %434 = vmatprep.mubr.bf16.mxu0 %v225
  %435 = vmatmul.mubr.bf16.gmra.mrb[0].mxu0 %v224
  %v436 = vpop.f32.mrb[0].mxu0
  %v437 = vadd.f32 0.0, %v436
  %v438 = vpop.f32.mrb[0].mxu0
  %v439 = vpop.f32.mrb[0].mxu0
  %v440 = vadd.f32 0.0, %v439
  %v441 = vpop.f32.mrb[0].mxu0
  %442 = vmatprep.mubr.bf16.mxu0 %v227
  %443 = vmatmul.mubr.bf16.gmra.mrb[0].mxu0 %v226
  %v444 = vpop.f32.mrb[0].mxu0
  %v445 = vadd.f32 0.0, %v444
  %v446 = vpop.f32.mrb[0].mxu0
  %v447 = vpop.f32.mrb[0].mxu0
  %v448 = vadd.f32 0.0, %v447
  %v449 = vpop.f32.mrb[0].mxu0
  %450 = vmatprep.mubr.bf16.mxu0 %v229
  %451 = vmatmul.mubr.bf16.gmra.mrb[0].mxu0 %v228
  %v452 = vpop.f32.mrb[0].mxu0
  %v453 = vadd.f32 0.0, %v452
  %v454 = vpop.f32.mrb[0].mxu0
  %v455 = vpop.f32.mrb[0].mxu0
  %v456 = vadd.f32 0.0, %v455
  %v457 = vpop.f32.mrb[0].mxu0
  %458 = vmatprep.mubr.bf16.mxu0 %v231
  %459 = vmatmul.mubr.bf16.gmra.mrb[0].mxu0 %v230
  %v460 = vpop.f32.mrb[0].mxu0
  %v461 = vadd.f32 0.0, %v460
  %v462 = vpop.f32.mrb[0].mxu0
  %v463 = vpop.f32.mrb[0].mxu0
  %v464 = vadd.f32 0.0, %v463
  %v465 = vpop.f32.mrb[0].mxu0
  %466 = vmatprep.mubr.bf16.mxu0 %v233
  %467 = vmatmul.mubr.bf16.gmra.mrb[0].mxu0 %v232
  %v468 = vpop.f32.mrb[0].mxu0
  %v469 = vadd.f32 0.0, %v468
  %v470 = vpop.f32.mrb[0].mxu0
  %v471 = vpop.f32.mrb[0].mxu0
  %v472 = vadd.f32 0.0, %v471
  %v473 = vpop.f32.mrb[0].mxu0
  %474 = vmatprep.mubr.bf16.mxu0 %v235
  %475 = vmatmul.mubr.bf16.gmra.mrb[0].mxu0 %v234
  %v476 = vpop.f32.mrb[0].mxu0
  %v477 = vadd.f32 0.0, %v476
  %v478 = vpop.f32.mrb[0].mxu0
  %v479 = vpop.f32.mrb[0].mxu0
  %v480 = vadd.f32 0.0, %v479
  %v481 = vpop.f32.mrb[0].mxu0
  %482 = vmatprep.mubr.bf16.mxu0 %v237
  %483 = vmatmul.mubr.bf16.gmra.mrb[0].mxu0 %v236
  %v484 = vpop.f32.mrb[0].mxu0
  %v485 = vadd.f32 0.0, %v484
  %v486 = vpop.f32.mrb[0].mxu0
  %v487 = vpop.f32.mrb[0].mxu0
  %v488 = vadd.f32 0.0, %v487
  %v489 = vpop.f32.mrb[0].mxu0
  %490 = vmatprep.mubr.bf16.mxu0 %v239
  %491 = vmatmul.mubr.bf16.gmra.mrb[0].mxu0 %v238
  %v492 = vpop.f32.mrb[0].mxu0
  %v493 = vadd.f32 0.0, %v492
  %v494 = vpop.f32.mrb[0].mxu0
  %v495 = vpop.f32.mrb[0].mxu0
  %v496 = vadd.f32 0.0, %v495
  %v497 = vpop.f32.mrb[0].mxu0
  %498 = vmatprep.mubr.bf16.mxu0 %v241
  %499 = vmatmul.mubr.bf16.gmra.mrb[0].mxu0 %v240
  %v500 = vpop.f32.mrb[0].mxu0
  %v501 = vadd.f32 0.0, %v500
  %v502 = vpop.f32.mrb[0].mxu0
  %v503 = vpop.f32.mrb[0].mxu0
  %v504 = vadd.f32 0.0, %v503
  %v505 = vpop.f32.mrb[0].mxu0
  %506 = vmatprep.mubr.bf16.mxu0 %v243
  %507 = vmatmul.mubr.bf16.gmra.mrb[0].mxu0 %v242
  %v508 = vpop.f32.mrb[0].mxu0
  %v509 = vadd.f32 0.0, %v508
  %v510 = vpop.f32.mrb[0].mxu0
  %v511 = vpop.f32.mrb[0].mxu0
  %v512 = vadd.f32 0.0, %v511
  %v513 = vpop.f32.mrb[0].mxu0
  %514 = vmatprep.mubr.bf16.mxu0 %v245
  %515 = vmatmul.mubr.bf16.gmra.mrb[0].mxu0 %v244
  %v516 = vpop.f32.mrb[0].mxu0
  %v517 = vadd.f32 0.0, %v516
  %v518 = vpop.f32.mrb[0].mxu0
  %v519 = vpop.f32.mrb[0].mxu0
  %v520 = vadd.f32 0.0, %v519
  %v521 = vpop.f32.mrb[0].mxu0
  %522 = vmatprep.mubr.bf16.mxu0 %v247
  %523 = vmatmul.mubr.bf16.gmra.mrb[0].mxu0 %v246
  %v524 = vpop.f32.mrb[0].mxu0
  %v525 = vadd.f32 0.0, %v524
  %v526 = vpop.f32.mrb[0].mxu0
  %v527 = vpop.f32.mrb[0].mxu0
  %v528 = vadd.f32 0.0, %v527
  %v529 = vpop.f32.mrb[0].mxu0
  %530 = vmatprep.mubr.bf16.mxu0 %v249
  %531 = vmatmul.mubr.bf16.gmra.mrb[0].mxu0 %v248
  %v532 = vpop.f32.mrb[0].mxu0
  %v533 = vadd.f32 0.0, %v532
  %v534 = vpop.f32.mrb[0].mxu0
  %v535 = vpop.f32.mrb[0].mxu0
  %v536 = vadd.f32 0.0, %v535
  %v537 = vpop.f32.mrb[0].mxu0
  %538 = vdwg.mxu0
  %v539 = vpack.c.bf16 %v416, %v413
  %v540 = vpack.c.bf16 %v424, %v421
  %v541 = vpack.c.bf16 %v432, %v429
  %v542 = vpack.c.bf16 %v440, %v437
  %v543 = vpack.c.bf16 %v448, %v445
  %v544 = vpack.c.bf16 %v456, %v453
  %v545 = vpack.c.bf16 %v464, %v461
  %v546 = vpack.c.bf16 %v472, %v469
  %v547 = vpack.c.bf16 %v480, %v477
  %v548 = vpack.c.bf16 %v488, %v485
  %v549 = vpack.c.bf16 %v496, %v493
  %v550 = vpack.c.bf16 %v504, %v501
  %v551 = vpack.c.bf16 %v512, %v509
  %v552 = vpack.c.bf16 %v520, %v517
  %v553 = vpack.c.bf16 %v528, %v525
  %v554 = vpack.c.bf16 %v536, %v533
  %v556 = vlaneseq
  %v557 = vshrl.u32 %v556, 7
  %v558 = vsub.s32 0, %v557
  %v559 = vrot.slane %v88, %v558
  %v577 = vunpack.c.l.b16 %v56
  %v578 = vunpack.c.l.b16 %v57
  %v579 = vunpack.c.l.b16 %v58
  %v580 = vunpack.c.l.b16 %v59
  %v581 = vunpack.c.l.b16 %v60
  %v582 = vunpack.c.l.b16 %v61
  %v583 = vunpack.c.l.b16 %v62
  %v584 = vunpack.c.l.b16 %v63
  %v585 = vunpack.c.l.b16 %v64
  %v586 = vunpack.c.l.b16 %v65
  %v587 = vunpack.c.l.b16 %v66
  %v588 = vunpack.c.l.b16 %v67
  %v589 = vunpack.c.l.b16 %v68
  %v590 = vunpack.c.l.b16 %v69
  %v591 = vunpack.c.l.b16 %v70
  %v592 = vunpack.c.l.b16 %v71
  %v593 = vpack.c.b16 %v578, %v577
  %v594 = vpack.c.b16 %v580, %v579
  %v595 = vpack.c.b16 %v582, %v581
  %v596 = vpack.c.b16 %v584, %v583
  %v597 = vpack.c.b16 %v586, %v585
  %v598 = vpack.c.b16 %v588, %v587
  %v599 = vpack.c.b16 %v590, %v589
  %v600 = vpack.c.b16 %v592, %v591
  %609 = vmatprep.subr.bf16.mxu0 0
  %610 = vmatpush1.bf16.msra.mxu0 %v593
  %611 = vmatprep.subr.bf16.mxu0 0
  %612 = vmatpush1.bf16.msra.mxu0 %v594
  %613 = vmatprep.subr.bf16.mxu0 0
  %614 = vmatpush1.bf16.msra.mxu0 %v595
  %615 = vmatprep.subr.bf16.mxu0 0
  %616 = vmatpush1.bf16.msra.mxu0 %v596
  %617 = vmatprep.subr.bf16.mxu0 0
  %618 = vmatpush1.bf16.msra.mxu0 %v597
  %619 = vmatprep.subr.bf16.mxu0 0
  %620 = vmatpush1.bf16.msra.mxu0 %v598
  %621 = vmatprep.subr.bf16.mxu0 0
  %622 = vmatpush1.bf16.msra.mxu0 %v599
  %623 = vmatprep.subr.bf16.mxu0 0
  %624 = vmatpush1.bf16.msra.mxu0 %v600
  %625 = vmatprep.subr.bf16.mxu0 0
  %626 = vmatpush1.bf16.msra.mxu0 0
  %627 = vmatprep.subr.bf16.mxu0 0
  %628 = vmatpush1.bf16.msra.mxu0 0
  %629 = vmatprep.subr.bf16.mxu0 0
  %630 = vmatpush1.bf16.msra.mxu0 0
  %631 = vmatprep.subr.bf16.mxu0 0
  %632 = vmatpush1.bf16.msra.mxu0 0
  %633 = vmatprep.subr.bf16.mxu0 0
  %634 = vmatpush1.bf16.msra.mxu0 0
  %635 = vmatprep.subr.bf16.mxu0 0
  %636 = vmatpush1.bf16.msra.mxu0 0
  %637 = vmatprep.subr.bf16.mxu0 0
  %638 = vmatpush1.bf16.msra.mxu0 0
  %639 = vmatprep.subr.bf16.mxu0 0
  %640 = vmatpush1.bf16.msra.mxu0 0
  %641 = vmatprep.mubr.bf16.mxu0 0
  %642 = vmatmul.mubr.bf16.gmra.mrb[0].mxu0 %v539
  %v643 = vpop.f32.mrb[0].mxu0
  %v644 = vadd.f32 %v559, %v643
  %v645 = vpop.f32.mrb[0].mxu0
  %v646 = vpop.f32.mrb[0].mxu0
  %v647 = vadd.f32 %v559, %v646
  %v648 = vpop.f32.mrb[0].mxu0
  %649 = vmatprep.mubr.bf16.mxu0 0
  %650 = vmatmul.mubr.bf16.gmra.mrb[0].mxu0 %v540
  %v651 = vpop.f32.mrb[0].mxu0
  %v652 = vadd.f32 %v559, %v651
  %v653 = vpop.f32.mrb[0].mxu0
  %v654 = vpop.f32.mrb[0].mxu0
  %v655 = vadd.f32 %v559, %v654
  %v656 = vpop.f32.mrb[0].mxu0
  %657 = vmatprep.mubr.bf16.mxu0 0
  %658 = vmatmul.mubr.bf16.gmra.mrb[0].mxu0 %v541
  %v659 = vpop.f32.mrb[0].mxu0
  %v660 = vadd.f32 %v559, %v659
  %v661 = vpop.f32.mrb[0].mxu0
  %v662 = vpop.f32.mrb[0].mxu0
  %v663 = vadd.f32 %v559, %v662
  %v664 = vpop.f32.mrb[0].mxu0
  %665 = vmatprep.mubr.bf16.mxu0 0
  %666 = vmatmul.mubr.bf16.gmra.mrb[0].mxu0 %v542
  %v667 = vpop.f32.mrb[0].mxu0
  %v668 = vadd.f32 %v559, %v667
  %v669 = vpop.f32.mrb[0].mxu0
  %v670 = vpop.f32.mrb[0].mxu0
  %v671 = vadd.f32 %v559, %v670
  %v672 = vpop.f32.mrb[0].mxu0
  %673 = vmatprep.mubr.bf16.mxu0 0
  %674 = vmatmul.mubr.bf16.gmra.mrb[0].mxu0 %v543
  %v675 = vpop.f32.mrb[0].mxu0
  %v676 = vadd.f32 %v559, %v675
  %v677 = vpop.f32.mrb[0].mxu0
  %v678 = vpop.f32.mrb[0].mxu0
  %v679 = vadd.f32 %v559, %v678
  %v680 = vpop.f32.mrb[0].mxu0
  %681 = vmatprep.mubr.bf16.mxu0 0
  %682 = vmatmul.mubr.bf16.gmra.mrb[0].mxu0 %v544
  %v683 = vpop.f32.mrb[0].mxu0
  %v684 = vadd.f32 %v559, %v683
  %v685 = vpop.f32.mrb[0].mxu0
  %v686 = vpop.f32.mrb[0].mxu0
  %v687 = vadd.f32 %v559, %v686
  %v688 = vpop.f32.mrb[0].mxu0
  %689 = vmatprep.mubr.bf16.mxu0 0
  %690 = vmatmul.mubr.bf16.gmra.mrb[0].mxu0 %v545
  %v691 = vpop.f32.mrb[0].mxu0
  %v692 = vadd.f32 %v559, %v691
  %v693 = vpop.f32.mrb[0].mxu0
  %v694 = vpop.f32.mrb[0].mxu0
  %v695 = vadd.f32 %v559, %v694
  %v696 = vpop.f32.mrb[0].mxu0
  %697 = vmatprep.mubr.bf16.mxu0 0
  %698 = vmatmul.mubr.bf16.gmra.mrb[0].mxu0 %v546
  %v699 = vpop.f32.mrb[0].mxu0
  %v700 = vadd.f32 %v559, %v699
  %v701 = vpop.f32.mrb[0].mxu0
  %v702 = vpop.f32.mrb[0].mxu0
  %v703 = vadd.f32 %v559, %v702
  %v704 = vpop.f32.mrb[0].mxu0
  %705 = vmatprep.mubr.bf16.mxu0 0
  %706 = vmatmul.mubr.bf16.gmra.mrb[0].mxu0 %v547
  %v707 = vpop.f32.mrb[0].mxu0
  %v708 = vadd.f32 %v559, %v707
  %v709 = vpop.f32.mrb[0].mxu0
  %v710 = vpop.f32.mrb[0].mxu0
  %v711 = vadd.f32 %v559, %v710
  %v712 = vpop.f32.mrb[0].mxu0
  %713 = vmatprep.mubr.bf16.mxu0 0
  %714 = vmatmul.mubr.bf16.gmra.mrb[0].mxu0 %v548
  %v715 = vpop.f32.mrb[0].mxu0
  %v716 = vadd.f32 %v559, %v715
  %v717 = vpop.f32.mrb[0].mxu0
  %v718 = vpop.f32.mrb[0].mxu0
  %v719 = vadd.f32 %v559, %v718
  %v720 = vpop.f32.mrb[0].mxu0
  %721 = vmatprep.mubr.bf16.mxu0 0
  %722 = vmatmul.mubr.bf16.gmra.mrb[0].mxu0 %v549
  %v723 = vpop.f32.mrb[0].mxu0
  %v724 = vadd.f32 %v559, %v723
  %v725 = vpop.f32.mrb[0].mxu0
  %v726 = vpop.f32.mrb[0].mxu0
  %v727 = vadd.f32 %v559, %v726
  %v728 = vpop.f32.mrb[0].mxu0
  %729 = vmatprep.mubr.bf16.mxu0 0
  %730 = vmatmul.mubr.bf16.gmra.mrb[0].mxu0 %v550
  %v731 = vpop.f32.mrb[0].mxu0
  %v732 = vadd.f32 %v559, %v731
  %v733 = vpop.f32.mrb[0].mxu0
  %v734 = vpop.f32.mrb[0].mxu0
  %v735 = vadd.f32 %v559, %v734
  %v736 = vpop.f32.mrb[0].mxu0
  %737 = vmatprep.mubr.bf16.mxu0 0
  %738 = vmatmul.mubr.bf16.gmra.mrb[0].mxu0 %v551
  %v739 = vpop.f32.mrb[0].mxu0
  %v740 = vadd.f32 %v559, %v739
  %v741 = vpop.f32.mrb[0].mxu0
  %v742 = vpop.f32.mrb[0].mxu0
  %v743 = vadd.f32 %v559, %v742
  %v744 = vpop.f32.mrb[0].mxu0
  %745 = vmatprep.mubr.bf16.mxu0 0
  %746 = vmatmul.mubr.bf16.gmra.mrb[0].mxu0 %v552
  %v747 = vpop.f32.mrb[0].mxu0
  %v748 = vadd.f32 %v559, %v747
  %v749 = vpop.f32.mrb[0].mxu0
  %v750 = vpop.f32.mrb[0].mxu0
  %v751 = vadd.f32 %v559, %v750
  %v752 = vpop.f32.mrb[0].mxu0
  %753 = vmatprep.mubr.bf16.mxu0 0
  %754 = vmatmul.mubr.bf16.gmra.mrb[0].mxu0 %v553
  %v755 = vpop.f32.mrb[0].mxu0
  %v756 = vadd.f32 %v559, %v755
  %v757 = vpop.f32.mrb[0].mxu0
  %v758 = vpop.f32.mrb[0].mxu0
  %v759 = vadd.f32 %v559, %v758
  %v760 = vpop.f32.mrb[0].mxu0
  %761 = vmatprep.mubr.bf16.mxu0 0
  %762 = vmatmul.mubr.bf16.gmra.mrb[0].mxu0 %v554
  %v763 = vpop.f32.mrb[0].mxu0
  %v764 = vadd.f32 %v559, %v763
  %v765 = vpop.f32.mrb[0].mxu0
  %v766 = vpop.f32.mrb[0].mxu0
  %v767 = vadd.f32 %v559, %v766
  %v768 = vpop.f32.mrb[0].mxu0
  %769 = vdwg.mxu0
  %v770 = vmax.f32 %v644, 0.0
  %v771 = vmax.f32 %v647, 0.0
  %v772 = vmax.f32 %v652, 0.0
  %v773 = vmax.f32 %v655, 0.0
  %v774 = vmax.f32 %v660, 0.0
  %v775 = vmax.f32 %v663, 0.0
  %v776 = vmax.f32 %v668, 0.0
  %v777 = vmax.f32 %v671, 0.0
  %v778 = vmax.f32 %v676, 0.0
  %v779 = vmax.f32 %v679, 0.0
  %v780 = vmax.f32 %v684, 0.0
  %v781 = vmax.f32 %v687, 0.0
  %v782 = vmax.f32 %v692, 0.0
  %v783 = vmax.f32 %v695, 0.0
  %v784 = vmax.f32 %v700, 0.0
  %v785 = vmax.f32 %v703, 0.0
  %v786 = vmax.f32 %v708, 0.0
  %v787 = vmax.f32 %v711, 0.0
  %v788 = vmax.f32 %v716, 0.0
  %v789 = vmax.f32 %v719, 0.0
  %v790 = vmax.f32 %v724, 0.0
  %v791 = vmax.f32 %v727, 0.0
  %v792 = vmax.f32 %v732, 0.0
  %v793 = vmax.f32 %v735, 0.0
  %v794 = vmax.f32 %v740, 0.0
  %v795 = vmax.f32 %v743, 0.0
  %v796 = vmax.f32 %v748, 0.0
  %v797 = vmax.f32 %v751, 0.0
  %v798 = vmax.f32 %v756, 0.0
  %v799 = vmax.f32 %v759, 0.0
  %v800 = vmax.f32 %v764, 0.0
  %v801 = vmax.f32 %v767, 0.0
  %v802 = vpack.c.bf16 %v771, %v770
  %v803 = vpack.c.bf16 %v773, %v772
  %v804 = vpack.c.bf16 %v775, %v774
  %v805 = vpack.c.bf16 %v777, %v776
  %v806 = vpack.c.bf16 %v779, %v778
  %v807 = vpack.c.bf16 %v781, %v780
  %v808 = vpack.c.bf16 %v783, %v782
  %v809 = vpack.c.bf16 %v785, %v784
  %v810 = vpack.c.bf16 %v787, %v786
  %v811 = vpack.c.bf16 %v789, %v788
  %v812 = vpack.c.bf16 %v791, %v790
  %v813 = vpack.c.bf16 %v793, %v792
  %v814 = vpack.c.bf16 %v795, %v794
  %v815 = vpack.c.bf16 %v797, %v796
  %v816 = vpack.c.bf16 %v799, %v798
  %v817 = vpack.c.bf16 %v801, %v800
  %818 = vmatprep.subr.bf16.mxu0 0
  %819 = vmatpush1.bf16.msra.mxu0 %v802
  %820 = vmatprep.subr.bf16.mxu0 0
  %821 = vmatpush1.bf16.msra.mxu0 %v803
  %822 = vmatprep.subr.bf16.mxu0 0
  %823 = vmatpush1.bf16.msra.mxu0 %v804
  %824 = vmatprep.subr.bf16.mxu0 0
  %825 = vmatpush1.bf16.msra.mxu0 %v805
  %826 = vmatprep.subr.bf16.mxu0 0
  %827 = vmatpush1.bf16.msra.mxu0 %v806
  %828 = vmatprep.subr.bf16.mxu0 0
  %829 = vmatpush1.bf16.msra.mxu0 %v807
  %830 = vmatprep.subr.bf16.mxu0 0
  %831 = vmatpush1.bf16.msra.mxu0 %v808
  %832 = vmatprep.subr.bf16.mxu0 0
  %833 = vmatpush1.bf16.msra.mxu0 %v809
  %834 = vmatprep.subr.bf16.mxu0 0
  %835 = vmatpush1.bf16.msra.mxu0 %v810
  %836 = vmatprep.subr.bf16.mxu0 0
  %837 = vmatpush1.bf16.msra.mxu0 %v811
  %838 = vmatprep.subr.bf16.mxu0 0
  %839 = vmatpush1.bf16.msra.mxu0 %v812
  %840 = vmatprep.subr.bf16.mxu0 0
  %841 = vmatpush1.bf16.msra.mxu0 %v813
  %842 = vmatprep.subr.bf16.mxu0 0
  %843 = vmatpush1.bf16.msra.mxu0 %v814
  %844 = vmatprep.subr.bf16.mxu0 0
  %845 = vmatpush1.bf16.msra.mxu0 %v815
  %846 = vmatprep.subr.bf16.mxu0 0
  %847 = vmatpush1.bf16.msra.mxu0 %v816
  %848 = vmatprep.subr.bf16.mxu0 0
  %849 = vmatpush1.bf16.msra.mxu0 %v817
  %850 = vmatprep.mubr.bf16.mxu0 %v219
  %851 = vmatmul.mubr.bf16.gmra.mrb[0].mxu0 %v218
  %v852 = vpop.f32.mrb[0].mxu0
  %v853 = vadd.f32 0.0, %v852
  %v854 = vpop.f32.mrb[0].mxu0
  %v855 = vpop.f32.mrb[0].mxu0
  %v856 = vadd.f32 0.0, %v855
  %v857 = vpop.f32.mrb[0].mxu0
  %858 = vmatprep.mubr.bf16.mxu0 %v221
  %859 = vmatmul.mubr.bf16.gmra.mrb[0].mxu0 %v220
  %v860 = vpop.f32.mrb[0].mxu0
  %v861 = vadd.f32 0.0, %v860
  %v862 = vpop.f32.mrb[0].mxu0
  %v863 = vpop.f32.mrb[0].mxu0
  %v864 = vadd.f32 0.0, %v863
  %v865 = vpop.f32.mrb[0].mxu0
  %866 = vmatprep.mubr.bf16.mxu0 %v223
  %867 = vmatmul.mubr.bf16.gmra.mrb[0].mxu0 %v222
  %v868 = vpop.f32.mrb[0].mxu0
  %v869 = vadd.f32 0.0, %v868
  %v870 = vpop.f32.mrb[0].mxu0
  %v871 = vpop.f32.mrb[0].mxu0
  %v872 = vadd.f32 0.0, %v871
  %v873 = vpop.f32.mrb[0].mxu0
  %874 = vmatprep.mubr.bf16.mxu0 %v225
  %875 = vmatmul.mubr.bf16.gmra.mrb[0].mxu0 %v224
  %v876 = vpop.f32.mrb[0].mxu0
  %v877 = vadd.f32 0.0, %v876
  %v878 = vpop.f32.mrb[0].mxu0
  %v879 = vpop.f32.mrb[0].mxu0
  %v880 = vadd.f32 0.0, %v879
  %v881 = vpop.f32.mrb[0].mxu0
  %882 = vmatprep.mubr.bf16.mxu0 %v227
  %883 = vmatmul.mubr.bf16.gmra.mrb[0].mxu0 %v226
  %v884 = vpop.f32.mrb[0].mxu0
  %v885 = vadd.f32 0.0, %v884
  %v886 = vpop.f32.mrb[0].mxu0
  %v887 = vpop.f32.mrb[0].mxu0
  %v888 = vadd.f32 0.0, %v887
  %v889 = vpop.f32.mrb[0].mxu0
  %890 = vmatprep.mubr.bf16.mxu0 %v229
  %891 = vmatmul.mubr.bf16.gmra.mrb[0].mxu0 %v228
  %v892 = vpop.f32.mrb[0].mxu0
  %v893 = vadd.f32 0.0, %v892
  %v894 = vpop.f32.mrb[0].mxu0
  %v895 = vpop.f32.mrb[0].mxu0
  %v896 = vadd.f32 0.0, %v895
  %v897 = vpop.f32.mrb[0].mxu0
  %898 = vmatprep.mubr.bf16.mxu0 %v231
  %899 = vmatmul.mubr.bf16.gmra.mrb[0].mxu0 %v230
  %v900 = vpop.f32.mrb[0].mxu0
  %v901 = vadd.f32 0.0, %v900
  %v902 = vpop.f32.mrb[0].mxu0
  %v903 = vpop.f32.mrb[0].mxu0
  %v904 = vadd.f32 0.0, %v903
  %v905 = vpop.f32.mrb[0].mxu0
  %906 = vmatprep.mubr.bf16.mxu0 %v233
  %907 = vmatmul.mubr.bf16.gmra.mrb[0].mxu0 %v232
  %v908 = vpop.f32.mrb[0].mxu0
  %v909 = vadd.f32 0.0, %v908
  %v910 = vpop.f32.mrb[0].mxu0
  %v911 = vpop.f32.mrb[0].mxu0
  %v912 = vadd.f32 0.0, %v911
  %v913 = vpop.f32.mrb[0].mxu0
  %914 = vmatprep.mubr.bf16.mxu0 %v235
  %915 = vmatmul.mubr.bf16.gmra.mrb[0].mxu0 %v234
  %v916 = vpop.f32.mrb[0].mxu0
  %v917 = vadd.f32 0.0, %v916
  %v918 = vpop.f32.mrb[0].mxu0
  %v919 = vpop.f32.mrb[0].mxu0
  %v920 = vadd.f32 0.0, %v919
  %v921 = vpop.f32.mrb[0].mxu0
  %922 = vmatprep.mubr.bf16.mxu0 %v237
  %923 = vmatmul.mubr.bf16.gmra.mrb[0].mxu0 %v236
  %v924 = vpop.f32.mrb[0].mxu0
  %v925 = vadd.f32 0.0, %v924
  %v926 = vpop.f32.mrb[0].mxu0
  %v927 = vpop.f32.mrb[0].mxu0
  %v928 = vadd.f32 0.0, %v927
  %v929 = vpop.f32.mrb[0].mxu0
  %930 = vmatprep.mubr.bf16.mxu0 %v239
  %931 = vmatmul.mubr.bf16.gmra.mrb[0].mxu0 %v238
  %v932 = vpop.f32.mrb[0].mxu0
  %v933 = vadd.f32 0.0, %v932
  %v934 = vpop.f32.mrb[0].mxu0
  %v935 = vpop.f32.mrb[0].mxu0
  %v936 = vadd.f32 0.0, %v935
  %v937 = vpop.f32.mrb[0].mxu0
  %938 = vmatprep.mubr.bf16.mxu0 %v241
  %939 = vmatmul.mubr.bf16.gmra.mrb[0].mxu0 %v240
  %v940 = vpop.f32.mrb[0].mxu0
  %v941 = vadd.f32 0.0, %v940
  %v942 = vpop.f32.mrb[0].mxu0
  %v943 = vpop.f32.mrb[0].mxu0
  %v944 = vadd.f32 0.0, %v943
  %v945 = vpop.f32.mrb[0].mxu0
  %946 = vmatprep.mubr.bf16.mxu0 %v243
  %947 = vmatmul.mubr.bf16.gmra.mrb[0].mxu0 %v242
  %v948 = vpop.f32.mrb[0].mxu0
  %v949 = vadd.f32 0.0, %v948
  %v950 = vpop.f32.mrb[0].mxu0
  %v951 = vpop.f32.mrb[0].mxu0
  %v952 = vadd.f32 0.0, %v951
  %v953 = vpop.f32.mrb[0].mxu0
  %954 = vmatprep.mubr.bf16.mxu0 %v245
  %955 = vmatmul.mubr.bf16.gmra.mrb[0].mxu0 %v244
  %v956 = vpop.f32.mrb[0].mxu0
  %v957 = vadd.f32 0.0, %v956
  %v958 = vpop.f32.mrb[0].mxu0
  %v959 = vpop.f32.mrb[0].mxu0
  %v960 = vadd.f32 0.0, %v959
  %v961 = vpop.f32.mrb[0].mxu0
  %962 = vmatprep.mubr.bf16.mxu0 %v247
  %963 = vmatmul.mubr.bf16.gmra.mrb[0].mxu0 %v246
  %v964 = vpop.f32.mrb[0].mxu0
  %v965 = vadd.f32 0.0, %v964
  %v966 = vpop.f32.mrb[0].mxu0
  %v967 = vpop.f32.mrb[0].mxu0
  %v968 = vadd.f32 0.0, %v967
  %v969 = vpop.f32.mrb[0].mxu0
  %970 = vmatprep.mubr.bf16.mxu0 %v249
  %971 = vmatmul.mubr.bf16.gmra.mrb[0].mxu0 %v248
  %v972 = vpop.f32.mrb[0].mxu0
  %v973 = vadd.f32 0.0, %v972
  %v974 = vpop.f32.mrb[0].mxu0
  %v975 = vpop.f32.mrb[0].mxu0
  %v976 = vadd.f32 0.0, %v975
  %v977 = vpop.f32.mrb[0].mxu0
  %978 = vdwg.mxu0
  %v979 = vpack.c.bf16 %v856, %v853
  %v980 = vpack.c.bf16 %v864, %v861
  %v981 = vpack.c.bf16 %v872, %v869
  %v982 = vpack.c.bf16 %v880, %v877
  %v983 = vpack.c.bf16 %v888, %v885
  %v984 = vpack.c.bf16 %v896, %v893
  %v985 = vpack.c.bf16 %v904, %v901
  %v986 = vpack.c.bf16 %v912, %v909
  %v987 = vpack.c.bf16 %v920, %v917
  %v988 = vpack.c.bf16 %v928, %v925
  %v989 = vpack.c.bf16 %v936, %v933
  %v990 = vpack.c.bf16 %v944, %v941
  %v991 = vpack.c.bf16 %v952, %v949
  %v992 = vpack.c.bf16 %v960, %v957
  %v993 = vpack.c.bf16 %v968, %v965
  %v994 = vpack.c.bf16 %v976, %v973
  %v996 = vlaneseq
  %v997 = vshrl.u32 %v996, 7
  %v998 = vsub.s32 0, %v997
  %v999 = vrot.slane %v89, %v998
  %v1017 = vunpack.c.l.b16 %v72
  %v1018 = vunpack.c.l.b16 %v73
  %v1019 = vunpack.c.l.b16 %v74
  %v1020 = vunpack.c.l.b16 %v75
  %v1021 = vunpack.c.l.b16 %v76
  %v1022 = vunpack.c.l.b16 %v77
  %v1023 = vunpack.c.l.b16 %v78
  %v1024 = vunpack.c.l.b16 %v79
  %v1025 = vunpack.c.l.b16 %v80
  %v1026 = vunpack.c.l.b16 %v81
  %v1027 = vunpack.c.l.b16 %v82
  %v1028 = vunpack.c.l.b16 %v83
  %v1029 = vunpack.c.l.b16 %v84
  %v1030 = vunpack.c.l.b16 %v85
  %v1031 = vunpack.c.l.b16 %v86
  %v1032 = vunpack.c.l.b16 %v87
  %v1033 = vpack.c.b16 %v1018, %v1017
  %v1034 = vpack.c.b16 %v1020, %v1019
  %v1035 = vpack.c.b16 %v1022, %v1021
  %v1036 = vpack.c.b16 %v1024, %v1023
  %v1037 = vpack.c.b16 %v1026, %v1025
  %v1038 = vpack.c.b16 %v1028, %v1027
  %v1039 = vpack.c.b16 %v1030, %v1029
  %v1040 = vpack.c.b16 %v1032, %v1031
  %1049 = vmatprep.subr.bf16.mxu0 0
  %1050 = vmatpush1.bf16.msra.mxu0 %v1033
  %1051 = vmatprep.subr.bf16.mxu0 0
  %1052 = vmatpush1.bf16.msra.mxu0 %v1034
  %1053 = vmatprep.subr.bf16.mxu0 0
  %1054 = vmatpush1.bf16.msra.mxu0 %v1035
  %1055 = vmatprep.subr.bf16.mxu0 0
  %1056 = vmatpush1.bf16.msra.mxu0 %v1036
  %1057 = vmatprep.subr.bf16.mxu0 0
  %1058 = vmatpush1.bf16.msra.mxu0 %v1037
  %1059 = vmatprep.subr.bf16.mxu0 0
  %1060 = vmatpush1.bf16.msra.mxu0 %v1038
  %1061 = vmatprep.subr.bf16.mxu0 0
  %1062 = vmatpush1.bf16.msra.mxu0 %v1039
  %1063 = vmatprep.subr.bf16.mxu0 0
  %1064 = vmatpush1.bf16.msra.mxu0 %v1040
  %1065 = vmatprep.subr.bf16.mxu0 0
  %1066 = vmatpush1.bf16.msra.mxu0 0
  %1067 = vmatprep.subr.bf16.mxu0 0
  %1068 = vmatpush1.bf16.msra.mxu0 0
  %1069 = vmatprep.subr.bf16.mxu0 0
  %1070 = vmatpush1.bf16.msra.mxu0 0
  %1071 = vmatprep.subr.bf16.mxu0 0
  %1072 = vmatpush1.bf16.msra.mxu0 0
  %1073 = vmatprep.subr.bf16.mxu0 0
  %1074 = vmatpush1.bf16.msra.mxu0 0
  %1075 = vmatprep.subr.bf16.mxu0 0
  %1076 = vmatpush1.bf16.msra.mxu0 0
  %1077 = vmatprep.subr.bf16.mxu0 0
  %1078 = vmatpush1.bf16.msra.mxu0 0
  %1079 = vmatprep.subr.bf16.mxu0 0
  %1080 = vmatpush1.bf16.msra.mxu0 0
  %1081 = vmatprep.mubr.bf16.mxu0 0
  %1082 = vmatmul.mubr.bf16.gmra.mrb[0].mxu0 %v979
  %v1083 = vpop.f32.mrb[0].mxu0
  %v1084 = vadd.f32 %v999, %v1083
  %v1085 = vpop.f32.mrb[0].mxu0
  %v1086 = vpop.f32.mrb[0].mxu0
  %v1087 = vadd.f32 %v999, %v1086
  %v1088 = vpop.f32.mrb[0].mxu0
  %1089 = vmatprep.mubr.bf16.mxu0 0
  %1090 = vmatmul.mubr.bf16.gmra.mrb[0].mxu0 %v980
  %v1091 = vpop.f32.mrb[0].mxu0
  %v1092 = vadd.f32 %v999, %v1091
  %v1093 = vpop.f32.mrb[0].mxu0
  %v1094 = vpop.f32.mrb[0].mxu0
  %v1095 = vadd.f32 %v999, %v1094
  %v1096 = vpop.f32.mrb[0].mxu0
  %1097 = vmatprep.mubr.bf16.mxu0 0
  %1098 = vmatmul.mubr.bf16.gmra.mrb[0].mxu0 %v981
  %v1099 = vpop.f32.mrb[0].mxu0
  %v1100 = vadd.f32 %v999, %v1099
  %v1101 = vpop.f32.mrb[0].mxu0
  %v1102 = vpop.f32.mrb[0].mxu0
  %v1103 = vadd.f32 %v999, %v1102
  %v1104 = vpop.f32.mrb[0].mxu0
  %1105 = vmatprep.mubr.bf16.mxu0 0
  %1106 = vmatmul.mubr.bf16.gmra.mrb[0].mxu0 %v982
  %v1107 = vpop.f32.mrb[0].mxu0
  %v1108 = vadd.f32 %v999, %v1107
  %v1109 = vpop.f32.mrb[0].mxu0
  %v1110 = vpop.f32.mrb[0].mxu0
  %v1111 = vadd.f32 %v999, %v1110
  %v1112 = vpop.f32.mrb[0].mxu0
  %1113 = vmatprep.mubr.bf16.mxu0 0
  %1114 = vmatmul.mubr.bf16.gmra.mrb[0].mxu0 %v983
  %v1115 = vpop.f32.mrb[0].mxu0
  %v1116 = vadd.f32 %v999, %v1115
  %v1117 = vpop.f32.mrb[0].mxu0
  %v1118 = vpop.f32.mrb[0].mxu0
  %v1119 = vadd.f32 %v999, %v1118
  %v1120 = vpop.f32.mrb[0].mxu0
  %1121 = vmatprep.mubr.bf16.mxu0 0
  %1122 = vmatmul.mubr.bf16.gmra.mrb[0].mxu0 %v984
  %v1123 = vpop.f32.mrb[0].mxu0
  %v1124 = vadd.f32 %v999, %v1123
  %v1125 = vpop.f32.mrb[0].mxu0
  %v1126 = vpop.f32.mrb[0].mxu0
  %v1127 = vadd.f32 %v999, %v1126
  %v1128 = vpop.f32.mrb[0].mxu0
  %1129 = vmatprep.mubr.bf16.mxu0 0
  %1130 = vmatmul.mubr.bf16.gmra.mrb[0].mxu0 %v985
  %v1131 = vpop.f32.mrb[0].mxu0
  %v1132 = vadd.f32 %v999, %v1131
  %v1133 = vpop.f32.mrb[0].mxu0
  %v1134 = vpop.f32.mrb[0].mxu0
  %v1135 = vadd.f32 %v999, %v1134
  %v1136 = vpop.f32.mrb[0].mxu0
  %1137 = vmatprep.mubr.bf16.mxu0 0
  %1138 = vmatmul.mubr.bf16.gmra.mrb[0].mxu0 %v986
  %v1139 = vpop.f32.mrb[0].mxu0
  %v1140 = vadd.f32 %v999, %v1139
  %v1141 = vpop.f32.mrb[0].mxu0
  %v1142 = vpop.f32.mrb[0].mxu0
  %v1143 = vadd.f32 %v999, %v1142
  %v1144 = vpop.f32.mrb[0].mxu0
  %1145 = vmatprep.mubr.bf16.mxu0 0
  %1146 = vmatmul.mubr.bf16.gmra.mrb[0].mxu0 %v987
  %v1147 = vpop.f32.mrb[0].mxu0
  %v1148 = vadd.f32 %v999, %v1147
  %v1149 = vpop.f32.mrb[0].mxu0
  %v1150 = vpop.f32.mrb[0].mxu0
  %v1151 = vadd.f32 %v999, %v1150
  %v1152 = vpop.f32.mrb[0].mxu0
  %1153 = vmatprep.mubr.bf16.mxu0 0
  %1154 = vmatmul.mubr.bf16.gmra.mrb[0].mxu0 %v988
  %v1155 = vpop.f32.mrb[0].mxu0
  %v1156 = vadd.f32 %v999, %v1155
  %v1157 = vpop.f32.mrb[0].mxu0
  %v1158 = vpop.f32.mrb[0].mxu0
  %v1159 = vadd.f32 %v999, %v1158
  %v1160 = vpop.f32.mrb[0].mxu0
  %1161 = vmatprep.mubr.bf16.mxu0 0
  %1162 = vmatmul.mubr.bf16.gmra.mrb[0].mxu0 %v989
  %v1163 = vpop.f32.mrb[0].mxu0
  %v1164 = vadd.f32 %v999, %v1163
  %v1165 = vpop.f32.mrb[0].mxu0
  %v1166 = vpop.f32.mrb[0].mxu0
  %v1167 = vadd.f32 %v999, %v1166
  %v1168 = vpop.f32.mrb[0].mxu0
  %1169 = vmatprep.mubr.bf16.mxu0 0
  %1170 = vmatmul.mubr.bf16.gmra.mrb[0].mxu0 %v990
  %v1171 = vpop.f32.mrb[0].mxu0
  %v1172 = vadd.f32 %v999, %v1171
  %v1173 = vpop.f32.mrb[0].mxu0
  %v1174 = vpop.f32.mrb[0].mxu0
  %v1175 = vadd.f32 %v999, %v1174
  %v1176 = vpop.f32.mrb[0].mxu0
  %1177 = vmatprep.mubr.bf16.mxu0 0
  %1178 = vmatmul.mubr.bf16.gmra.mrb[0].mxu0 %v991
  %v1179 = vpop.f32.mrb[0].mxu0
  %v1180 = vadd.f32 %v999, %v1179
  %v1181 = vpop.f32.mrb[0].mxu0
  %v1182 = vpop.f32.mrb[0].mxu0
  %v1183 = vadd.f32 %v999, %v1182
  %v1184 = vpop.f32.mrb[0].mxu0
  %1185 = vmatprep.mubr.bf16.mxu0 0
  %1186 = vmatmul.mubr.bf16.gmra.mrb[0].mxu0 %v992
  %v1187 = vpop.f32.mrb[0].mxu0
  %v1188 = vadd.f32 %v999, %v1187
  %v1189 = vpop.f32.mrb[0].mxu0
  %v1190 = vpop.f32.mrb[0].mxu0
  %v1191 = vadd.f32 %v999, %v1190
  %v1192 = vpop.f32.mrb[0].mxu0
  %1193 = vmatprep.mubr.bf16.mxu0 0
  %1194 = vmatmul.mubr.bf16.gmra.mrb[0].mxu0 %v993
  %v1195 = vpop.f32.mrb[0].mxu0
  %v1196 = vadd.f32 %v999, %v1195
  %v1197 = vpop.f32.mrb[0].mxu0
  %v1198 = vpop.f32.mrb[0].mxu0
  %v1199 = vadd.f32 %v999, %v1198
  %v1200 = vpop.f32.mrb[0].mxu0
  %1201 = vmatprep.mubr.bf16.mxu0 0
  %1202 = vmatmul.mubr.bf16.gmra.mrb[0].mxu0 %v994
  %v1203 = vpop.f32.mrb[0].mxu0
  %v1204 = vadd.f32 %v999, %v1203
  %v1205 = vpop.f32.mrb[0].mxu0
  %v1206 = vpop.f32.mrb[0].mxu0
  %v1207 = vadd.f32 %v999, %v1206
  %v1208 = vpop.f32.mrb[0].mxu0
  %1209 = vdwg.mxu0
  %v1210 = vpack.c.bf16 %v1087, %v1084
  %v1211 = vpack.c.bf16 %v1095, %v1092
  %v1212 = vpack.c.bf16 %v1103, %v1100
  %v1213 = vpack.c.bf16 %v1111, %v1108
  %v1214 = vpack.c.bf16 %v1119, %v1116
  %v1215 = vpack.c.bf16 %v1127, %v1124
  %v1216 = vpack.c.bf16 %v1135, %v1132
  %v1217 = vpack.c.bf16 %v1143, %v1140
  %v1218 = vpack.c.bf16 %v1151, %v1148
  %v1219 = vpack.c.bf16 %v1159, %v1156
  %v1220 = vpack.c.bf16 %v1167, %v1164
  %v1221 = vpack.c.bf16 %v1175, %v1172
  %v1222 = vpack.c.bf16 %v1183, %v1180
  %v1223 = vpack.c.bf16 %v1191, %v1188
  %v1224 = vpack.c.bf16 %v1199, %v1196
  %v1225 = vpack.c.bf16 %v1207, %v1204
  %v1242 = vunpack.c.l.b16 %v1210
  %v1243 = vunpack.c.h.b16 %v1210
  %v1244 = vunpack.c.l.b16 %v1211
  %v1245 = vunpack.c.h.b16 %v1211
  %v1246 = vunpack.c.l.b16 %v1212
  %v1247 = vunpack.c.h.b16 %v1212
  %v1248 = vunpack.c.l.b16 %v1213
  %v1249 = vunpack.c.h.b16 %v1213
  %v1250 = vunpack.c.l.b16 %v1214
  %v1251 = vunpack.c.h.b16 %v1214
  %v1252 = vunpack.c.l.b16 %v1215
  %v1253 = vunpack.c.h.b16 %v1215
  %v1254 = vunpack.c.l.b16 %v1216
  %v1255 = vunpack.c.h.b16 %v1216
  %v1256 = vunpack.c.l.b16 %v1217
  %v1257 = vunpack.c.h.b16 %v1217
  %v1258 = vunpack.c.l.b16 %v1218
  %v1259 = vunpack.c.h.b16 %v1218
  %v1260 = vunpack.c.l.b16 %v1219
  %v1261 = vunpack.c.h.b16 %v1219
  %v1262 = vunpack.c.l.b16 %v1220
  %v1263 = vunpack.c.h.b16 %v1220
  %v1264 = vunpack.c.l.b16 %v1221
  %v1265 = vunpack.c.h.b16 %v1221
  %v1266 = vunpack.c.l.b16 %v1222
  %v1267 = vunpack.c.h.b16 %v1222
  %v1268 = vunpack.c.l.b16 %v1223
  %v1269 = vunpack.c.h.b16 %v1223
  %v1270 = vunpack.c.l.b16 %v1224
  %v1271 = vunpack.c.h.b16 %v1224
  %v1272 = vunpack.c.l.b16 %v1225
  %v1273 = vunpack.c.h.b16 %v1225
  %v1274 = vpack.c.b16 %v1242, %v1242
  %v1275 = vpack.c.b16 %v1243, %v1243
  %v1276 = vpack.c.b16 %v1244, %v1244
  %v1277 = vpack.c.b16 %v1245, %v1245
  %v1278 = vpack.c.b16 %v1246, %v1246
  %v1279 = vpack.c.b16 %v1247, %v1247
  %v1280 = vpack.c.b16 %v1248, %v1248
  %v1281 = vpack.c.b16 %v1249, %v1249
  %v1282 = vpack.c.b16 %v1250, %v1250
  %v1283 = vpack.c.b16 %v1251, %v1251
  %v1284 = vpack.c.b16 %v1252, %v1252
  %v1285 = vpack.c.b16 %v1253, %v1253
  %v1286 = vpack.c.b16 %v1254, %v1254
  %v1287 = vpack.c.b16 %v1255, %v1255
  %v1288 = vpack.c.b16 %v1256, %v1256
  %v1289 = vpack.c.b16 %v1257, %v1257
  %v1290 = vpack.c.b16 %v1258, %v1258
  %v1291 = vpack.c.b16 %v1259, %v1259
  %v1292 = vpack.c.b16 %v1260, %v1260
  %v1293 = vpack.c.b16 %v1261, %v1261
  %v1294 = vpack.c.b16 %v1262, %v1262
  %v1295 = vpack.c.b16 %v1263, %v1263
  %v1296 = vpack.c.b16 %v1264, %v1264
  %v1297 = vpack.c.b16 %v1265, %v1265
  %v1298 = vpack.c.b16 %v1266, %v1266
  %v1299 = vpack.c.b16 %v1267, %v1267
  %v1300 = vpack.c.b16 %v1268, %v1268
  %v1301 = vpack.c.b16 %v1269, %v1269
  %v1302 = vpack.c.b16 %v1270, %v1270
  %v1303 = vpack.c.b16 %v1271, %v1271
  %v1304 = vpack.c.b16 %v1272, %v1272
  %v1305 = vpack.c.b16 %v1273, %v1273
  %1338 = vst [vmem:[%s6] sm:$0xf] %v1274
  %1339 = vst [vmem:[%s6 + $0x4] sm:$0xf] %v1275
  %1340 = vst [vmem:[%s6 + $0x20] sm:$0xf] %v1276
  %1341 = vst [vmem:[%s6 + $0x24] sm:$0xf] %v1277
  %1342 = vst [vmem:[%s6 + $0x40] sm:$0xf] %v1278
  %1343 = vst [vmem:[%s6 + $0x44] sm:$0xf] %v1279
  %1344 = vst [vmem:[%s6 + $0x60] sm:$0xf] %v1280
  %1345 = vst [vmem:[%s6 + $0x64] sm:$0xf] %v1281
  %1346 = vst [vmem:[%s6 + $0x80] sm:$0xf] %v1282
  %1347 = vst [vmem:[%s6 + $0x84] sm:$0xf] %v1283
  %1348 = vst [vmem:[%s6 + $0xa0] sm:$0xf] %v1284
  %1349 = vst [vmem:[%s6 + $0xa4] sm:$0xf] %v1285
  %1350 = vst [vmem:[%s6 + $0xc0] sm:$0xf] %v1286
  %1351 = vst [vmem:[%s6 + $0xc4] sm:$0xf] %v1287
  %1352 = vst [vmem:[%s6 + $0xe0] sm:$0xf] %v1288
  %1353 = vst [vmem:[%s6 + $0xe4] sm:$0xf] %v1289
  %1354 = vst [vmem:[%s6 + $0x100] sm:$0xf] %v1290
  %1355 = vst [vmem:[%s6 + $0x104] sm:$0xf] %v1291
  %1356 = vst [vmem:[%s6 + $0x120] sm:$0xf] %v1292
  %1357 = vst [vmem:[%s6 + $0x124] sm:$0xf] %v1293
  %1358 = vst [vmem:[%s6 + $0x140] sm:$0xf] %v1294
  %1359 = vst [vmem:[%s6 + $0x144] sm:$0xf] %v1295
  %1360 = vst [vmem:[%s6 + $0x160] sm:$0xf] %v1296
  %1361 = vst [vmem:[%s6 + $0x164] sm:$0xf] %v1297
  %1362 = vst [vmem:[%s6 + $0x180] sm:$0xf] %v1298
  %1363 = vst [vmem:[%s6 + $0x184] sm:$0xf] %v1299
  %1364 = vst [vmem:[%s6 + $0x1a0] sm:$0xf] %v1300
  %1365 = vst [vmem:[%s6 + $0x1a4] sm:$0xf] %v1301
  %1366 = vst [vmem:[%s6 + $0x1c0] sm:$0xf] %v1302
  %1367 = vst [vmem:[%s6 + $0x1c4] sm:$0xf] %v1303
  %1368 = vst [vmem:[%s6 + $0x1e0] sm:$0xf] %v1304
  %1369 = vst [vmem:[%s6 + $0x1e4] sm:$0xf] %v1305
  %s1370 = scalar_lea.vmem %s1, 8
  %v1371 = vld [vmem:[%s1370] sm:$0xf]
  %v1372 = vld [vmem:[%s1370 + $0x4] sm:$0xf]
  %v1373 = vld [vmem:[%s1370 + $0x20] sm:$0xf]
  %v1374 = vld [vmem:[%s1370 + $0x24] sm:$0xf]
  %v1375 = vld [vmem:[%s1370 + $0x40] sm:$0xf]
  %v1376 = vld [vmem:[%s1370 + $0x44] sm:$0xf]
  %v1377 = vld [vmem:[%s1370 + $0x60] sm:$0xf]
  %v1378 = vld [vmem:[%s1370 + $0x64] sm:$0xf]
  %v1379 = vld [vmem:[%s1370 + $0x80] sm:$0xf]
  %v1380 = vld [vmem:[%s1370 + $0x84] sm:$0xf]
  %v1381 = vld [vmem:[%s1370 + $0xa0] sm:$0xf]
  %v1382 = vld [vmem:[%s1370 + $0xa4] sm:$0xf]
  %v1383 = vld [vmem:[%s1370 + $0xc0] sm:$0xf]
  %v1384 = vld [vmem:[%s1370 + $0xc4] sm:$0xf]
  %v1385 = vld [vmem:[%s1370 + $0xe0] sm:$0xf]
  %v1386 = vld [vmem:[%s1370 + $0xe4] sm:$0xf]
  %v1387 = vld [vmem:[%s1370 + $0x100] sm:$0xf]
  %v1388 = vld [vmem:[%s1370 + $0x104] sm:$0xf]
  %v1389 = vld [vmem:[%s1370 + $0x120] sm:$0xf]
  %v1390 = vld [vmem:[%s1370 + $0x124] sm:$0xf]
  %v1391 = vld [vmem:[%s1370 + $0x140] sm:$0xf]
  %v1392 = vld [vmem:[%s1370 + $0x144] sm:$0xf]
  %v1393 = vld [vmem:[%s1370 + $0x160] sm:$0xf]
  %v1394 = vld [vmem:[%s1370 + $0x164] sm:$0xf]
  %v1395 = vld [vmem:[%s1370 + $0x180] sm:$0xf]
  %v1396 = vld [vmem:[%s1370 + $0x184] sm:$0xf]
  %v1397 = vld [vmem:[%s1370 + $0x1a0] sm:$0xf]
  %v1398 = vld [vmem:[%s1370 + $0x1a4] sm:$0xf]
  %v1399 = vld [vmem:[%s1370 + $0x1c0] sm:$0xf]
  %v1400 = vld [vmem:[%s1370 + $0x1c4] sm:$0xf]
  %v1401 = vld [vmem:[%s1370 + $0x1e0] sm:$0xf]
  %v1402 = vld [vmem:[%s1370 + $0x1e4] sm:$0xf]
  %v1435 = vunpack.c.l.b16 %v1371
  %v1436 = vunpack.c.l.b16 %v1372
  %v1437 = vunpack.c.l.b16 %v1373
  %v1438 = vunpack.c.l.b16 %v1374
  %v1439 = vunpack.c.l.b16 %v1375
  %v1440 = vunpack.c.l.b16 %v1376
  %v1441 = vunpack.c.l.b16 %v1377
  %v1442 = vunpack.c.l.b16 %v1378
  %v1443 = vunpack.c.l.b16 %v1379
  %v1444 = vunpack.c.l.b16 %v1380
  %v1445 = vunpack.c.l.b16 %v1381
  %v1446 = vunpack.c.l.b16 %v1382
  %v1447 = vunpack.c.l.b16 %v1383
  %v1448 = vunpack.c.l.b16 %v1384
  %v1449 = vunpack.c.l.b16 %v1385
  %v1450 = vunpack.c.l.b16 %v1386
  %v1451 = vunpack.c.l.b16 %v1387
  %v1452 = vunpack.c.l.b16 %v1388
  %v1453 = vunpack.c.l.b16 %v1389
  %v1454 = vunpack.c.l.b16 %v1390
  %v1455 = vunpack.c.l.b16 %v1391
  %v1456 = vunpack.c.l.b16 %v1392
  %v1457 = vunpack.c.l.b16 %v1393
  %v1458 = vunpack.c.l.b16 %v1394
  %v1459 = vunpack.c.l.b16 %v1395
  %v1460 = vunpack.c.l.b16 %v1396
  %v1461 = vunpack.c.l.b16 %v1397
  %v1462 = vunpack.c.l.b16 %v1398
  %v1463 = vunpack.c.l.b16 %v1399
  %v1464 = vunpack.c.l.b16 %v1400
  %v1465 = vunpack.c.l.b16 %v1401
  %v1466 = vunpack.c.l.b16 %v1402
  %v1467 = vpack.c.b16 %v1436, %v1435
  %v1468 = vpack.c.b16 %v1438, %v1437
  %v1469 = vpack.c.b16 %v1440, %v1439
  %v1470 = vpack.c.b16 %v1442, %v1441
  %v1471 = vpack.c.b16 %v1444, %v1443
  %v1472 = vpack.c.b16 %v1446, %v1445
  %v1473 = vpack.c.b16 %v1448, %v1447
  %v1474 = vpack.c.b16 %v1450, %v1449
  %v1475 = vpack.c.b16 %v1452, %v1451
  %v1476 = vpack.c.b16 %v1454, %v1453
  %v1477 = vpack.c.b16 %v1456, %v1455
  %v1478 = vpack.c.b16 %v1458, %v1457
  %v1479 = vpack.c.b16 %v1460, %v1459
  %v1480 = vpack.c.b16 %v1462, %v1461
  %v1481 = vpack.c.b16 %v1464, %v1463
  %v1482 = vpack.c.b16 %v1466, %v1465
  %1499 = vmatprep.subr.bf16.mxu0 0
  %1500 = vmatpush1.bf16.msra.mxu0 %v1467
  %1501 = vmatprep.subr.bf16.mxu0 0
  %1502 = vmatpush1.bf16.msra.mxu0 %v1468
  %1503 = vmatprep.subr.bf16.mxu0 0
  %1504 = vmatpush1.bf16.msra.mxu0 %v1469
  %1505 = vmatprep.subr.bf16.mxu0 0
  %1506 = vmatpush1.bf16.msra.mxu0 %v1470
  %1507 = vmatprep.subr.bf16.mxu0 0
  %1508 = vmatpush1.bf16.msra.mxu0 %v1471
  %1509 = vmatprep.subr.bf16.mxu0 0
  %1510 = vmatpush1.bf16.msra.mxu0 %v1472
  %1511 = vmatprep.subr.bf16.mxu0 0
  %1512 = vmatpush1.bf16.msra.mxu0 %v1473
  %1513 = vmatprep.subr.bf16.mxu0 0
  %1514 = vmatpush1.bf16.msra.mxu0 %v1474
  %1515 = vmatprep.subr.bf16.mxu0 0
  %1516 = vmatpush1.bf16.msra.mxu0 %v1475
  %1517 = vmatprep.subr.bf16.mxu0 0
  %1518 = vmatpush1.bf16.msra.mxu0 %v1476
  %1519 = vmatprep.subr.bf16.mxu0 0
  %1520 = vmatpush1.bf16.msra.mxu0 %v1477
  %1521 = vmatprep.subr.bf16.mxu0 0
  %1522 = vmatpush1.bf16.msra.mxu0 %v1478
  %1523 = vmatprep.subr.bf16.mxu0 0
  %1524 = vmatpush1.bf16.msra.mxu0 %v1479
  %1525 = vmatprep.subr.bf16.mxu0 0
  %1526 = vmatpush1.bf16.msra.mxu0 %v1480
  %1527 = vmatprep.subr.bf16.mxu0 0
  %1528 = vmatpush1.bf16.msra.mxu0 %v1481
  %1529 = vmatprep.subr.bf16.mxu0 0
  %1530 = vmatpush1.bf16.msra.mxu0 %v1482
  %1531 = vmatprep.mubr.bf16.mxu0 %v219
  %1532 = vmatmul.mubr.bf16.gmra.mrb[0].mxu0 %v218
  %v1533 = vpop.f32.mrb[0].mxu0
  %v1534 = vadd.f32 0.0, %v1533
  %v1535 = vpop.f32.mrb[0].mxu0
  %v1536 = vpop.f32.mrb[0].mxu0
  %v1537 = vadd.f32 0.0, %v1536
  %v1538 = vpop.f32.mrb[0].mxu0
  %1539 = vmatprep.mubr.bf16.mxu0 %v221
  %1540 = vmatmul.mubr.bf16.gmra.mrb[0].mxu0 %v220
  %v1541 = vpop.f32.mrb[0].mxu0
  %v1542 = vadd.f32 0.0, %v1541
  %v1543 = vpop.f32.mrb[0].mxu0
  %v1544 = vpop.f32.mrb[0].mxu0
  %v1545 = vadd.f32 0.0, %v1544
  %v1546 = vpop.f32.mrb[0].mxu0
  %1547 = vmatprep.mubr.bf16.mxu0 %v223
  %1548 = vmatmul.mubr.bf16.gmra.mrb[0].mxu0 %v222
  %v1549 = vpop.f32.mrb[0].mxu0
  %v1550 = vadd.f32 0.0, %v1549
  %v1551 = vpop.f32.mrb[0].mxu0
  %v1552 = vpop.f32.mrb[0].mxu0
  %v1553 = vadd.f32 0.0, %v1552
  %v1554 = vpop.f32.mrb[0].mxu0
  %1555 = vmatprep.mubr.bf16.mxu0 %v225
  %1556 = vmatmul.mubr.bf16.gmra.mrb[0].mxu0 %v224
  %v1557 = vpop.f32.mrb[0].mxu0
  %v1558 = vadd.f32 0.0, %v1557
  %v1559 = vpop.f32.mrb[0].mxu0
  %v1560 = vpop.f32.mrb[0].mxu0
  %v1561 = vadd.f32 0.0, %v1560
  %v1562 = vpop.f32.mrb[0].mxu0
  %1563 = vmatprep.mubr.bf16.mxu0 %v227
  %1564 = vmatmul.mubr.bf16.gmra.mrb[0].mxu0 %v226
  %v1565 = vpop.f32.mrb[0].mxu0
  %v1566 = vadd.f32 0.0, %v1565
  %v1567 = vpop.f32.mrb[0].mxu0
  %v1568 = vpop.f32.mrb[0].mxu0
  %v1569 = vadd.f32 0.0, %v1568
  %v1570 = vpop.f32.mrb[0].mxu0
  %1571 = vmatprep.mubr.bf16.mxu0 %v229
  %1572 = vmatmul.mubr.bf16.gmra.mrb[0].mxu0 %v228
  %v1573 = vpop.f32.mrb[0].mxu0
  %v1574 = vadd.f32 0.0, %v1573
  %v1575 = vpop.f32.mrb[0].mxu0
  %v1576 = vpop.f32.mrb[0].mxu0
  %v1577 = vadd.f32 0.0, %v1576
  %v1578 = vpop.f32.mrb[0].mxu0
  %1579 = vmatprep.mubr.bf16.mxu0 %v231
  %1580 = vmatmul.mubr.bf16.gmra.mrb[0].mxu0 %v230
  %v1581 = vpop.f32.mrb[0].mxu0
  %v1582 = vadd.f32 0.0, %v1581
  %v1583 = vpop.f32.mrb[0].mxu0
  %v1584 = vpop.f32.mrb[0].mxu0
  %v1585 = vadd.f32 0.0, %v1584
  %v1586 = vpop.f32.mrb[0].mxu0
  %1587 = vmatprep.mubr.bf16.mxu0 %v233
  %1588 = vmatmul.mubr.bf16.gmra.mrb[0].mxu0 %v232
  %v1589 = vpop.f32.mrb[0].mxu0
  %v1590 = vadd.f32 0.0, %v1589
  %v1591 = vpop.f32.mrb[0].mxu0
  %v1592 = vpop.f32.mrb[0].mxu0
  %v1593 = vadd.f32 0.0, %v1592
  %v1594 = vpop.f32.mrb[0].mxu0
  %1595 = vmatprep.mubr.bf16.mxu0 %v235
  %1596 = vmatmul.mubr.bf16.gmra.mrb[0].mxu0 %v234
  %v1597 = vpop.f32.mrb[0].mxu0
  %v1598 = vadd.f32 0.0, %v1597
  %v1599 = vpop.f32.mrb[0].mxu0
  %v1600 = vpop.f32.mrb[0].mxu0
  %v1601 = vadd.f32 0.0, %v1600
  %v1602 = vpop.f32.mrb[0].mxu0
  %1603 = vmatprep.mubr.bf16.mxu0 %v237
  %1604 = vmatmul.mubr.bf16.gmra.mrb[0].mxu0 %v236
  %v1605 = vpop.f32.mrb[0].mxu0
  %v1606 = vadd.f32 0.0, %v1605
  %v1607 = vpop.f32.mrb[0].mxu0
  %v1608 = vpop.f32.mrb[0].mxu0
  %v1609 = vadd.f32 0.0, %v1608
  %v1610 = vpop.f32.mrb[0].mxu0
  %1611 = vmatprep.mubr.bf16.mxu0 %v239
  %1612 = vmatmul.mubr.bf16.gmra.mrb[0].mxu0 %v238
  %v1613 = vpop.f32.mrb[0].mxu0
  %v1614 = vadd.f32 0.0, %v1613
  %v1615 = vpop.f32.mrb[0].mxu0
  %v1616 = vpop.f32.mrb[0].mxu0
  %v1617 = vadd.f32 0.0, %v1616
  %v1618 = vpop.f32.mrb[0].mxu0
  %1619 = vmatprep.mubr.bf16.mxu0 %v241
  %1620 = vmatmul.mubr.bf16.gmra.mrb[0].mxu0 %v240
  %v1621 = vpop.f32.mrb[0].mxu0
  %v1622 = vadd.f32 0.0, %v1621
  %v1623 = vpop.f32.mrb[0].mxu0
  %v1624 = vpop.f32.mrb[0].mxu0
  %v1625 = vadd.f32 0.0, %v1624
  %v1626 = vpop.f32.mrb[0].mxu0
  %1627 = vmatprep.mubr.bf16.mxu0 %v243
  %1628 = vmatmul.mubr.bf16.gmra.mrb[0].mxu0 %v242
  %v1629 = vpop.f32.mrb[0].mxu0
  %v1630 = vadd.f32 0.0, %v1629
  %v1631 = vpop.f32.mrb[0].mxu0
  %v1632 = vpop.f32.mrb[0].mxu0
  %v1633 = vadd.f32 0.0, %v1632
  %v1634 = vpop.f32.mrb[0].mxu0
  %1635 = vmatprep.mubr.bf16.mxu0 %v245
  %1636 = vmatmul.mubr.bf16.gmra.mrb[0].mxu0 %v244
  %v1637 = vpop.f32.mrb[0].mxu0
  %v1638 = vadd.f32 0.0, %v1637
  %v1639 = vpop.f32.mrb[0].mxu0
  %v1640 = vpop.f32.mrb[0].mxu0
  %v1641 = vadd.f32 0.0, %v1640
  %v1642 = vpop.f32.mrb[0].mxu0
  %1643 = vmatprep.mubr.bf16.mxu0 %v247
  %1644 = vmatmul.mubr.bf16.gmra.mrb[0].mxu0 %v246
  %v1645 = vpop.f32.mrb[0].mxu0
  %v1646 = vadd.f32 0.0, %v1645
  %v1647 = vpop.f32.mrb[0].mxu0
  %v1648 = vpop.f32.mrb[0].mxu0
  %v1649 = vadd.f32 0.0, %v1648
  %v1650 = vpop.f32.mrb[0].mxu0
  %1651 = vmatprep.mubr.bf16.mxu0 %v249
  %1652 = vmatmul.mubr.bf16.gmra.mrb[0].mxu0 %v248
  %v1653 = vpop.f32.mrb[0].mxu0
  %v1654 = vadd.f32 0.0, %v1653
  %v1655 = vpop.f32.mrb[0].mxu0
  %v1656 = vpop.f32.mrb[0].mxu0
  %v1657 = vadd.f32 0.0, %v1656
  %v1658 = vpop.f32.mrb[0].mxu0
  %1659 = vdwg.mxu0
  %v1660 = vpack.c.bf16 %v1537, %v1534
  %v1661 = vpack.c.bf16 %v1545, %v1542
  %v1662 = vpack.c.bf16 %v1553, %v1550
  %v1663 = vpack.c.bf16 %v1561, %v1558
  %v1664 = vpack.c.bf16 %v1569, %v1566
  %v1665 = vpack.c.bf16 %v1577, %v1574
  %v1666 = vpack.c.bf16 %v1585, %v1582
  %v1667 = vpack.c.bf16 %v1593, %v1590
  %v1668 = vpack.c.bf16 %v1601, %v1598
  %v1669 = vpack.c.bf16 %v1609, %v1606
  %v1670 = vpack.c.bf16 %v1617, %v1614
  %v1671 = vpack.c.bf16 %v1625, %v1622
  %v1672 = vpack.c.bf16 %v1633, %v1630
  %v1673 = vpack.c.bf16 %v1641, %v1638
  %v1674 = vpack.c.bf16 %v1649, %v1646
  %v1675 = vpack.c.bf16 %v1657, %v1654
  %1676 = vmatprep.subr.bf16.mxu0 0
  %1677 = vmatpush1.bf16.msra.mxu0 %v593
  %1678 = vmatprep.subr.bf16.mxu0 0
  %1679 = vmatpush1.bf16.msra.mxu0 %v594
  %1680 = vmatprep.subr.bf16.mxu0 0
  %1681 = vmatpush1.bf16.msra.mxu0 %v595
  %1682 = vmatprep.subr.bf16.mxu0 0
  %1683 = vmatpush1.bf16.msra.mxu0 %v596
  %1684 = vmatprep.subr.bf16.mxu0 0
  %1685 = vmatpush1.bf16.msra.mxu0 %v597
  %1686 = vmatprep.subr.bf16.mxu0 0
  %1687 = vmatpush1.bf16.msra.mxu0 %v598
  %1688 = vmatprep.subr.bf16.mxu0 0
  %1689 = vmatpush1.bf16.msra.mxu0 %v599
  %1690 = vmatprep.subr.bf16.mxu0 0
  %1691 = vmatpush1.bf16.msra.mxu0 %v600
  %1692 = vmatprep.subr.bf16.mxu0 0
  %1693 = vmatpush1.bf16.msra.mxu0 0
  %1694 = vmatprep.subr.bf16.mxu0 0
  %1695 = vmatpush1.bf16.msra.mxu0 0
  %1696 = vmatprep.subr.bf16.mxu0 0
  %1697 = vmatpush1.bf16.msra.mxu0 0
  %1698 = vmatprep.subr.bf16.mxu0 0
  %1699 = vmatpush1.bf16.msra.mxu0 0
  %1700 = vmatprep.subr.bf16.mxu0 0
  %1701 = vmatpush1.bf16.msra.mxu0 0
  %1702 = vmatprep.subr.bf16.mxu0 0
  %1703 = vmatpush1.bf16.msra.mxu0 0
  %1704 = vmatprep.subr.bf16.mxu0 0
  %1705 = vmatpush1.bf16.msra.mxu0 0
  %1706 = vmatprep.subr.bf16.mxu0 0
  %1707 = vmatpush1.bf16.msra.mxu0 0
  %1708 = vmatprep.mubr.bf16.mxu0 0
  %1709 = vmatmul.mubr.bf16.gmra.mrb[0].mxu0 %v1660
  %v1710 = vpop.f32.mrb[0].mxu0
  %v1711 = vadd.f32 %v559, %v1710
  %v1712 = vpop.f32.mrb[0].mxu0
  %v1713 = vpop.f32.mrb[0].mxu0
  %v1714 = vadd.f32 %v559, %v1713
  %v1715 = vpop.f32.mrb[0].mxu0
  %1716 = vmatprep.mubr.bf16.mxu0 0
  %1717 = vmatmul.mubr.bf16.gmra.mrb[0].mxu0 %v1661
  %v1718 = vpop.f32.mrb[0].mxu0
  %v1719 = vadd.f32 %v559, %v1718
  %v1720 = vpop.f32.mrb[0].mxu0
  %v1721 = vpop.f32.mrb[0].mxu0
  %v1722 = vadd.f32 %v559, %v1721
  %v1723 = vpop.f32.mrb[0].mxu0
  %1724 = vmatprep.mubr.bf16.mxu0 0
  %1725 = vmatmul.mubr.bf16.gmra.mrb[0].mxu0 %v1662
  %v1726 = vpop.f32.mrb[0].mxu0
  %v1727 = vadd.f32 %v559, %v1726
  %v1728 = vpop.f32.mrb[0].mxu0
  %v1729 = vpop.f32.mrb[0].mxu0
  %v1730 = vadd.f32 %v559, %v1729
  %v1731 = vpop.f32.mrb[0].mxu0
  %1732 = vmatprep.mubr.bf16.mxu0 0
  %1733 = vmatmul.mubr.bf16.gmra.mrb[0].mxu0 %v1663
  %v1734 = vpop.f32.mrb[0].mxu0
  %v1735 = vadd.f32 %v559, %v1734
  %v1736 = vpop.f32.mrb[0].mxu0
  %v1737 = vpop.f32.mrb[0].mxu0
  %v1738 = vadd.f32 %v559, %v1737
  %v1739 = vpop.f32.mrb[0].mxu0
  %1740 = vmatprep.mubr.bf16.mxu0 0
  %1741 = vmatmul.mubr.bf16.gmra.mrb[0].mxu0 %v1664
  %v1742 = vpop.f32.mrb[0].mxu0
  %v1743 = vadd.f32 %v559, %v1742
  %v1744 = vpop.f32.mrb[0].mxu0
  %v1745 = vpop.f32.mrb[0].mxu0
  %v1746 = vadd.f32 %v559, %v1745
  %v1747 = vpop.f32.mrb[0].mxu0
  %1748 = vmatprep.mubr.bf16.mxu0 0
  %1749 = vmatmul.mubr.bf16.gmra.mrb[0].mxu0 %v1665
  %v1750 = vpop.f32.mrb[0].mxu0
  %v1751 = vadd.f32 %v559, %v1750
  %v1752 = vpop.f32.mrb[0].mxu0
  %v1753 = vpop.f32.mrb[0].mxu0
  %v1754 = vadd.f32 %v559, %v1753
  %v1755 = vpop.f32.mrb[0].mxu0
  %1756 = vmatprep.mubr.bf16.mxu0 0
  %1757 = vmatmul.mubr.bf16.gmra.mrb[0].mxu0 %v1666
  %v1758 = vpop.f32.mrb[0].mxu0
  %v1759 = vadd.f32 %v559, %v1758
  %v1760 = vpop.f32.mrb[0].mxu0
  %v1761 = vpop.f32.mrb[0].mxu0
  %v1762 = vadd.f32 %v559, %v1761
  %v1763 = vpop.f32.mrb[0].mxu0
  %1764 = vmatprep.mubr.bf16.mxu0 0
  %1765 = vmatmul.mubr.bf16.gmra.mrb[0].mxu0 %v1667
  %v1766 = vpop.f32.mrb[0].mxu0
  %v1767 = vadd.f32 %v559, %v1766
  %v1768 = vpop.f32.mrb[0].mxu0
  %v1769 = vpop.f32.mrb[0].mxu0
  %v1770 = vadd.f32 %v559, %v1769
  %v1771 = vpop.f32.mrb[0].mxu0
  %1772 = vmatprep.mubr.bf16.mxu0 0
  %1773 = vmatmul.mubr.bf16.gmra.mrb[0].mxu0 %v1668
  %v1774 = vpop.f32.mrb[0].mxu0
  %v1775 = vadd.f32 %v559, %v1774
  %v1776 = vpop.f32.mrb[0].mxu0
  %v1777 = vpop.f32.mrb[0].mxu0
  %v1778 = vadd.f32 %v559, %v1777
  %v1779 = vpop.f32.mrb[0].mxu0
  %1780 = vmatprep.mubr.bf16.mxu0 0
  %1781 = vmatmul.mubr.bf16.gmra.mrb[0].mxu0 %v1669
  %v1782 = vpop.f32.mrb[0].mxu0
  %v1783 = vadd.f32 %v559, %v1782
  %v1784 = vpop.f32.mrb[0].mxu0
  %v1785 = vpop.f32.mrb[0].mxu0
  %v1786 = vadd.f32 %v559, %v1785
  %v1787 = vpop.f32.mrb[0].mxu0
  %1788 = vmatprep.mubr.bf16.mxu0 0
  %1789 = vmatmul.mubr.bf16.gmra.mrb[0].mxu0 %v1670
  %v1790 = vpop.f32.mrb[0].mxu0
  %v1791 = vadd.f32 %v559, %v1790
  %v1792 = vpop.f32.mrb[0].mxu0
  %v1793 = vpop.f32.mrb[0].mxu0
  %v1794 = vadd.f32 %v559, %v1793
  %v1795 = vpop.f32.mrb[0].mxu0
  %1796 = vmatprep.mubr.bf16.mxu0 0
  %1797 = vmatmul.mubr.bf16.gmra.mrb[0].mxu0 %v1671
  %v1798 = vpop.f32.mrb[0].mxu0
  %v1799 = vadd.f32 %v559, %v1798
  %v1800 = vpop.f32.mrb[0].mxu0
  %v1801 = vpop.f32.mrb[0].mxu0
  %v1802 = vadd.f32 %v559, %v1801
  %v1803 = vpop.f32.mrb[0].mxu0
  %1804 = vmatprep.mubr.bf16.mxu0 0
  %1805 = vmatmul.mubr.bf16.gmra.mrb[0].mxu0 %v1672
  %v1806 = vpop.f32.mrb[0].mxu0
  %v1807 = vadd.f32 %v559, %v1806
  %v1808 = vpop.f32.mrb[0].mxu0
  %v1809 = vpop.f32.mrb[0].mxu0
  %v1810 = vadd.f32 %v559, %v1809
  %v1811 = vpop.f32.mrb[0].mxu0
  %1812 = vmatprep.mubr.bf16.mxu0 0
  %1813 = vmatmul.mubr.bf16.gmra.mrb[0].mxu0 %v1673
  %v1814 = vpop.f32.mrb[0].mxu0
  %v1815 = vadd.f32 %v559, %v1814
  %v1816 = vpop.f32.mrb[0].mxu0
  %v1817 = vpop.f32.mrb[0].mxu0
  %v1818 = vadd.f32 %v559, %v1817
  %v1819 = vpop.f32.mrb[0].mxu0
  %1820 = vmatprep.mubr.bf16.mxu0 0
  %1821 = vmatmul.mubr.bf16.gmra.mrb[0].mxu0 %v1674
  %v1822 = vpop.f32.mrb[0].mxu0
  %v1823 = vadd.f32 %v559, %v1822
  %v1824 = vpop.f32.mrb[0].mxu0
  %v1825 = vpop.f32.mrb[0].mxu0
  %v1826 = vadd.f32 %v559, %v1825
  %v1827 = vpop.f32.mrb[0].mxu0
  %1828 = vmatprep.mubr.bf16.mxu0 0
  %1829 = vmatmul.mubr.bf16.gmra.mrb[0].mxu0 %v1675
  %v1830 = vpop.f32.mrb[0].mxu0
  %v1831 = vadd.f32 %v559, %v1830
  %v1832 = vpop.f32.mrb[0].mxu0
  %v1833 = vpop.f32.mrb[0].mxu0
  %v1834 = vadd.f32 %v559, %v1833
  %v1835 = vpop.f32.mrb[0].mxu0
  %1836 = vdwg.mxu0
  %v1837 = vmax.f32 %v1711, 0.0
  %v1838 = vmax.f32 %v1714, 0.0
  %v1839 = vmax.f32 %v1719, 0.0
  %v1840 = vmax.f32 %v1722, 0.0
  %v1841 = vmax.f32 %v1727, 0.0
  %v1842 = vmax.f32 %v1730, 0.0
  %v1843 = vmax.f32 %v1735, 0.0
  %v1844 = vmax.f32 %v1738, 0.0
  %v1845 = vmax.f32 %v1743, 0.0
  %v1846 = vmax.f32 %v1746, 0.0
  %v1847 = vmax.f32 %v1751, 0.0
  %v1848 = vmax.f32 %v1754, 0.0
  %v1849 = vmax.f32 %v1759, 0.0
  %v1850 = vmax.f32 %v1762, 0.0
  %v1851 = vmax.f32 %v1767, 0.0
  %v1852 = vmax.f32 %v1770, 0.0
  %v1853 = vmax.f32 %v1775, 0.0
  %v1854 = vmax.f32 %v1778, 0.0
  %v1855 = vmax.f32 %v1783, 0.0
  %v1856 = vmax.f32 %v1786, 0.0
  %v1857 = vmax.f32 %v1791, 0.0
  %v1858 = vmax.f32 %v1794, 0.0
  %v1859 = vmax.f32 %v1799, 0.0
  %v1860 = vmax.f32 %v1802, 0.0
  %v1861 = vmax.f32 %v1807, 0.0
  %v1862 = vmax.f32 %v1810, 0.0
  %v1863 = vmax.f32 %v1815, 0.0
  %v1864 = vmax.f32 %v1818, 0.0
  %v1865 = vmax.f32 %v1823, 0.0
  %v1866 = vmax.f32 %v1826, 0.0
  %v1867 = vmax.f32 %v1831, 0.0
  %v1868 = vmax.f32 %v1834, 0.0
  %v1869 = vpack.c.bf16 %v1838, %v1837
  %v1870 = vpack.c.bf16 %v1840, %v1839
  %v1871 = vpack.c.bf16 %v1842, %v1841
  %v1872 = vpack.c.bf16 %v1844, %v1843
  %v1873 = vpack.c.bf16 %v1846, %v1845
  %v1874 = vpack.c.bf16 %v1848, %v1847
  %v1875 = vpack.c.bf16 %v1850, %v1849
  %v1876 = vpack.c.bf16 %v1852, %v1851
  %v1877 = vpack.c.bf16 %v1854, %v1853
  %v1878 = vpack.c.bf16 %v1856, %v1855
  %v1879 = vpack.c.bf16 %v1858, %v1857
  %v1880 = vpack.c.bf16 %v1860, %v1859
  %v1881 = vpack.c.bf16 %v1862, %v1861
  %v1882 = vpack.c.bf16 %v1864, %v1863
  %v1883 = vpack.c.bf16 %v1866, %v1865
  %v1884 = vpack.c.bf16 %v1868, %v1867
  %1885 = vmatprep.subr.bf16.mxu0 0
  %1886 = vmatpush1.bf16.msra.mxu0 %v1869
  %1887 = vmatprep.subr.bf16.mxu0 0
  %1888 = vmatpush1.bf16.msra.mxu0 %v1870
  %1889 = vmatprep.subr.bf16.mxu0 0
  %1890 = vmatpush1.bf16.msra.mxu0 %v1871
  %1891 = vmatprep.subr.bf16.mxu0 0
  %1892 = vmatpush1.bf16.msra.mxu0 %v1872
  %1893 = vmatprep.subr.bf16.mxu0 0
  %1894 = vmatpush1.bf16.msra.mxu0 %v1873
  %1895 = vmatprep.subr.bf16.mxu0 0
  %1896 = vmatpush1.bf16.msra.mxu0 %v1874
  %1897 = vmatprep.subr.bf16.mxu0 0
  %1898 = vmatpush1.bf16.msra.mxu0 %v1875
  %1899 = vmatprep.subr.bf16.mxu0 0
  %1900 = vmatpush1.bf16.msra.mxu0 %v1876
  %1901 = vmatprep.subr.bf16.mxu0 0
  %1902 = vmatpush1.bf16.msra.mxu0 %v1877
  %1903 = vmatprep.subr.bf16.mxu0 0
  %1904 = vmatpush1.bf16.msra.mxu0 %v1878
  %1905 = vmatprep.subr.bf16.mxu0 0
  %1906 = vmatpush1.bf16.msra.mxu0 %v1879
  %1907 = vmatprep.subr.bf16.mxu0 0
  %1908 = vmatpush1.bf16.msra.mxu0 %v1880
  %1909 = vmatprep.subr.bf16.mxu0 0
  %1910 = vmatpush1.bf16.msra.mxu0 %v1881
  %1911 = vmatprep.subr.bf16.mxu0 0
  %1912 = vmatpush1.bf16.msra.mxu0 %v1882
  %1913 = vmatprep.subr.bf16.mxu0 0
  %1914 = vmatpush1.bf16.msra.mxu0 %v1883
  %1915 = vmatprep.subr.bf16.mxu0 0
  %1916 = vmatpush1.bf16.msra.mxu0 %v1884
  %1917 = vmatprep.mubr.bf16.mxu0 %v219
  %1918 = vmatmul.mubr.bf16.gmra.mrb[0].mxu0 %v218
  %v1919 = vpop.f32.mrb[0].mxu0
  %v1920 = vadd.f32 0.0, %v1919
  %v1921 = vpop.f32.mrb[0].mxu0
  %v1922 = vpop.f32.mrb[0].mxu0
  %v1923 = vadd.f32 0.0, %v1922
  %v1924 = vpop.f32.mrb[0].mxu0
  %1925 = vmatprep.mubr.bf16.mxu0 %v221
  %1926 = vmatmul.mubr.bf16.gmra.mrb[0].mxu0 %v220
  %v1927 = vpop.f32.mrb[0].mxu0
  %v1928 = vadd.f32 0.0, %v1927
  %v1929 = vpop.f32.mrb[0].mxu0
  %v1930 = vpop.f32.mrb[0].mxu0
  %v1931 = vadd.f32 0.0, %v1930
  %v1932 = vpop.f32.mrb[0].mxu0
  %1933 = vmatprep.mubr.bf16.mxu0 %v223
  %1934 = vmatmul.mubr.bf16.gmra.mrb[0].mxu0 %v222
  %v1935 = vpop.f32.mrb[0].mxu0
  %v1936 = vadd.f32 0.0, %v1935
  %v1937 = vpop.f32.mrb[0].mxu0
  %v1938 = vpop.f32.mrb[0].mxu0
  %v1939 = vadd.f32 0.0, %v1938
  %v1940 = vpop.f32.mrb[0].mxu0
  %1941 = vmatprep.mubr.bf16.mxu0 %v225
  %1942 = vmatmul.mubr.bf16.gmra.mrb[0].mxu0 %v224
  %v1943 = vpop.f32.mrb[0].mxu0
  %v1944 = vadd.f32 0.0, %v1943
  %v1945 = vpop.f32.mrb[0].mxu0
  %v1946 = vpop.f32.mrb[0].mxu0
  %v1947 = vadd.f32 0.0, %v1946
  %v1948 = vpop.f32.mrb[0].mxu0
  %1949 = vmatprep.mubr.bf16.mxu0 %v227
  %1950 = vmatmul.mubr.bf16.gmra.mrb[0].mxu0 %v226
  %v1951 = vpop.f32.mrb[0].mxu0
  %v1952 = vadd.f32 0.0, %v1951
  %v1953 = vpop.f32.mrb[0].mxu0
  %v1954 = vpop.f32.mrb[0].mxu0
  %v1955 = vadd.f32 0.0, %v1954
  %v1956 = vpop.f32.mrb[0].mxu0
  %1957 = vmatprep.mubr.bf16.mxu0 %v229
  %1958 = vmatmul.mubr.bf16.gmra.mrb[0].mxu0 %v228
  %v1959 = vpop.f32.mrb[0].mxu0
  %v1960 = vadd.f32 0.0, %v1959
  %v1961 = vpop.f32.mrb[0].mxu0
  %v1962 = vpop.f32.mrb[0].mxu0
  %v1963 = vadd.f32 0.0, %v1962
  %v1964 = vpop.f32.mrb[0].mxu0
  %1965 = vmatprep.mubr.bf16.mxu0 %v231
  %1966 = vmatmul.mubr.bf16.gmra.mrb[0].mxu0 %v230
  %v1967 = vpop.f32.mrb[0].mxu0
  %v1968 = vadd.f32 0.0, %v1967
  %v1969 = vpop.f32.mrb[0].mxu0
  %v1970 = vpop.f32.mrb[0].mxu0
  %v1971 = vadd.f32 0.0, %v1970
  %v1972 = vpop.f32.mrb[0].mxu0
  %1973 = vmatprep.mubr.bf16.mxu0 %v233
  %1974 = vmatmul.mubr.bf16.gmra.mrb[0].mxu0 %v232
  %v1975 = vpop.f32.mrb[0].mxu0
  %v1976 = vadd.f32 0.0, %v1975
  %v1977 = vpop.f32.mrb[0].mxu0
  %v1978 = vpop.f32.mrb[0].mxu0
  %v1979 = vadd.f32 0.0, %v1978
  %v1980 = vpop.f32.mrb[0].mxu0
  %1981 = vmatprep.mubr.bf16.mxu0 %v235
  %1982 = vmatmul.mubr.bf16.gmra.mrb[0].mxu0 %v234
  %v1983 = vpop.f32.mrb[0].mxu0
  %v1984 = vadd.f32 0.0, %v1983
  %v1985 = vpop.f32.mrb[0].mxu0
  %v1986 = vpop.f32.mrb[0].mxu0
  %v1987 = vadd.f32 0.0, %v1986
  %v1988 = vpop.f32.mrb[0].mxu0
  %1989 = vmatprep.mubr.bf16.mxu0 %v237
  %1990 = vmatmul.mubr.bf16.gmra.mrb[0].mxu0 %v236
  %v1991 = vpop.f32.mrb[0].mxu0
  %v1992 = vadd.f32 0.0, %v1991
  %v1993 = vpop.f32.mrb[0].mxu0
  %v1994 = vpop.f32.mrb[0].mxu0
  %v1995 = vadd.f32 0.0, %v1994
  %v1996 = vpop.f32.mrb[0].mxu0
  %1997 = vmatprep.mubr.bf16.mxu0 %v239
  %1998 = vmatmul.mubr.bf16.gmra.mrb[0].mxu0 %v238
  %v1999 = vpop.f32.mrb[0].mxu0
  %v2000 = vadd.f32 0.0, %v1999
  %v2001 = vpop.f32.mrb[0].mxu0
  %v2002 = vpop.f32.mrb[0].mxu0
  %v2003 = vadd.f32 0.0, %v2002
  %v2004 = vpop.f32.mrb[0].mxu0
  %2005 = vmatprep.mubr.bf16.mxu0 %v241
  %2006 = vmatmul.mubr.bf16.gmra.mrb[0].mxu0 %v240
  %v2007 = vpop.f32.mrb[0].mxu0
  %v2008 = vadd.f32 0.0, %v2007
  %v2009 = vpop.f32.mrb[0].mxu0
  %v2010 = vpop.f32.mrb[0].mxu0
  %v2011 = vadd.f32 0.0, %v2010
  %v2012 = vpop.f32.mrb[0].mxu0
  %2013 = vmatprep.mubr.bf16.mxu0 %v243
  %2014 = vmatmul.mubr.bf16.gmra.mrb[0].mxu0 %v242
  %v2015 = vpop.f32.mrb[0].mxu0
  %v2016 = vadd.f32 0.0, %v2015
  %v2017 = vpop.f32.mrb[0].mxu0
  %v2018 = vpop.f32.mrb[0].mxu0
  %v2019 = vadd.f32 0.0, %v2018
  %v2020 = vpop.f32.mrb[0].mxu0
  %2021 = vmatprep.mubr.bf16.mxu0 %v245
  %2022 = vmatmul.mubr.bf16.gmra.mrb[0].mxu0 %v244
  %v2023 = vpop.f32.mrb[0].mxu0
  %v2024 = vadd.f32 0.0, %v2023
  %v2025 = vpop.f32.mrb[0].mxu0
  %v2026 = vpop.f32.mrb[0].mxu0
  %v2027 = vadd.f32 0.0, %v2026
  %v2028 = vpop.f32.mrb[0].mxu0
  %2029 = vmatprep.mubr.bf16.mxu0 %v247
  %2030 = vmatmul.mubr.bf16.gmra.mrb[0].mxu0 %v246
  %v2031 = vpop.f32.mrb[0].mxu0
  %v2032 = vadd.f32 0.0, %v2031
  %v2033 = vpop.f32.mrb[0].mxu0
  %v2034 = vpop.f32.mrb[0].mxu0
  %v2035 = vadd.f32 0.0, %v2034
  %v2036 = vpop.f32.mrb[0].mxu0
  %2037 = vmatprep.mubr.bf16.mxu0 %v249
  %2038 = vmatmul.mubr.bf16.gmra.mrb[0].mxu0 %v248
  %v2039 = vpop.f32.mrb[0].mxu0
  %v2040 = vadd.f32 0.0, %v2039
  %v2041 = vpop.f32.mrb[0].mxu0
  %v2042 = vpop.f32.mrb[0].mxu0
  %v2043 = vadd.f32 0.0, %v2042
  %v2044 = vpop.f32.mrb[0].mxu0
  %2045 = vdwg.mxu0
  %v2046 = vpack.c.bf16 %v1923, %v1920
  %v2047 = vpack.c.bf16 %v1931, %v1928
  %v2048 = vpack.c.bf16 %v1939, %v1936
  %v2049 = vpack.c.bf16 %v1947, %v1944
  %v2050 = vpack.c.bf16 %v1955, %v1952
  %v2051 = vpack.c.bf16 %v1963, %v1960
  %v2052 = vpack.c.bf16 %v1971, %v1968
  %v2053 = vpack.c.bf16 %v1979, %v1976
  %v2054 = vpack.c.bf16 %v1987, %v1984
  %v2055 = vpack.c.bf16 %v1995, %v1992
  %v2056 = vpack.c.bf16 %v2003, %v2000
  %v2057 = vpack.c.bf16 %v2011, %v2008
  %v2058 = vpack.c.bf16 %v2019, %v2016
  %v2059 = vpack.c.bf16 %v2027, %v2024
  %v2060 = vpack.c.bf16 %v2035, %v2032
  %v2061 = vpack.c.bf16 %v2043, %v2040
  %2062 = vmatprep.subr.bf16.mxu0 0
  %2063 = vmatpush1.bf16.msra.mxu0 %v1033
  %2064 = vmatprep.subr.bf16.mxu0 0
  %2065 = vmatpush1.bf16.msra.mxu0 %v1034
  %2066 = vmatprep.subr.bf16.mxu0 0
  %2067 = vmatpush1.bf16.msra.mxu0 %v1035
  %2068 = vmatprep.subr.bf16.mxu0 0
  %2069 = vmatpush1.bf16.msra.mxu0 %v1036
  %2070 = vmatprep.subr.bf16.mxu0 0
  %2071 = vmatpush1.bf16.msra.mxu0 %v1037
  %2072 = vmatprep.subr.bf16.mxu0 0
  %2073 = vmatpush1.bf16.msra.mxu0 %v1038
  %2074 = vmatprep.subr.bf16.mxu0 0
  %2075 = vmatpush1.bf16.msra.mxu0 %v1039
  %2076 = vmatprep.subr.bf16.mxu0 0
  %2077 = vmatpush1.bf16.msra.mxu0 %v1040
  %2078 = vmatprep.subr.bf16.mxu0 0
  %2079 = vmatpush1.bf16.msra.mxu0 0
  %2080 = vmatprep.subr.bf16.mxu0 0
  %2081 = vmatpush1.bf16.msra.mxu0 0
  %2082 = vmatprep.subr.bf16.mxu0 0
  %2083 = vmatpush1.bf16.msra.mxu0 0
  %2084 = vmatprep.subr.bf16.mxu0 0
  %2085 = vmatpush1.bf16.msra.mxu0 0
  %2086 = vmatprep.subr.bf16.mxu0 0
  %2087 = vmatpush1.bf16.msra.mxu0 0
  %2088 = vmatprep.subr.bf16.mxu0 0
  %2089 = vmatpush1.bf16.msra.mxu0 0
  %2090 = vmatprep.subr.bf16.mxu0 0
  %2091 = vmatpush1.bf16.msra.mxu0 0
  %2092 = vmatprep.subr.bf16.mxu0 0
  %2093 = vmatpush1.bf16.msra.mxu0 0
  %2094 = vmatprep.mubr.bf16.mxu0 0
  %2095 = vmatmul.mubr.bf16.gmra.mrb[0].mxu0 %v2046
  %v2096 = vpop.f32.mrb[0].mxu0
  %v2097 = vadd.f32 %v999, %v2096
  %v2098 = vpop.f32.mrb[0].mxu0
  %v2099 = vpop.f32.mrb[0].mxu0
  %v2100 = vadd.f32 %v999, %v2099
  %v2101 = vpop.f32.mrb[0].mxu0
  %2102 = vmatprep.mubr.bf16.mxu0 0
  %2103 = vmatmul.mubr.bf16.gmra.mrb[0].mxu0 %v2047
  %v2104 = vpop.f32.mrb[0].mxu0
  %v2105 = vadd.f32 %v999, %v2104
  %v2106 = vpop.f32.mrb[0].mxu0
  %v2107 = vpop.f32.mrb[0].mxu0
  %v2108 = vadd.f32 %v999, %v2107
  %v2109 = vpop.f32.mrb[0].mxu0
  %2110 = vmatprep.mubr.bf16.mxu0 0
  %2111 = vmatmul.mubr.bf16.gmra.mrb[0].mxu0 %v2048
  %v2112 = vpop.f32.mrb[0].mxu0
  %v2113 = vadd.f32 %v999, %v2112
  %v2114 = vpop.f32.mrb[0].mxu0
  %v2115 = vpop.f32.mrb[0].mxu0
  %v2116 = vadd.f32 %v999, %v2115
  %v2117 = vpop.f32.mrb[0].mxu0
  %2118 = vmatprep.mubr.bf16.mxu0 0
  %2119 = vmatmul.mubr.bf16.gmra.mrb[0].mxu0 %v2049
  %v2120 = vpop.f32.mrb[0].mxu0
  %v2121 = vadd.f32 %v999, %v2120
  %v2122 = vpop.f32.mrb[0].mxu0
  %v2123 = vpop.f32.mrb[0].mxu0
  %v2124 = vadd.f32 %v999, %v2123
  %v2125 = vpop.f32.mrb[0].mxu0
  %2126 = vmatprep.mubr.bf16.mxu0 0
  %2127 = vmatmul.mubr.bf16.gmra.mrb[0].mxu0 %v2050
  %v2128 = vpop.f32.mrb[0].mxu0
  %v2129 = vadd.f32 %v999, %v2128
  %v2130 = vpop.f32.mrb[0].mxu0
  %v2131 = vpop.f32.mrb[0].mxu0
  %v2132 = vadd.f32 %v999, %v2131
  %v2133 = vpop.f32.mrb[0].mxu0
  %2134 = vmatprep.mubr.bf16.mxu0 0
  %2135 = vmatmul.mubr.bf16.gmra.mrb[0].mxu0 %v2051
  %v2136 = vpop.f32.mrb[0].mxu0
  %v2137 = vadd.f32 %v999, %v2136
  %v2138 = vpop.f32.mrb[0].mxu0
  %v2139 = vpop.f32.mrb[0].mxu0
  %v2140 = vadd.f32 %v999, %v2139
  %v2141 = vpop.f32.mrb[0].mxu0
  %2142 = vmatprep.mubr.bf16.mxu0 0
  %2143 = vmatmul.mubr.bf16.gmra.mrb[0].mxu0 %v2052
  %v2144 = vpop.f32.mrb[0].mxu0
  %v2145 = vadd.f32 %v999, %v2144
  %v2146 = vpop.f32.mrb[0].mxu0
  %v2147 = vpop.f32.mrb[0].mxu0
  %v2148 = vadd.f32 %v999, %v2147
  %v2149 = vpop.f32.mrb[0].mxu0
  %2150 = vmatprep.mubr.bf16.mxu0 0
  %2151 = vmatmul.mubr.bf16.gmra.mrb[0].mxu0 %v2053
  %v2152 = vpop.f32.mrb[0].mxu0
  %v2153 = vadd.f32 %v999, %v2152
  %v2154 = vpop.f32.mrb[0].mxu0
  %v2155 = vpop.f32.mrb[0].mxu0
  %v2156 = vadd.f32 %v999, %v2155
  %v2157 = vpop.f32.mrb[0].mxu0
  %2158 = vmatprep.mubr.bf16.mxu0 0
  %2159 = vmatmul.mubr.bf16.gmra.mrb[0].mxu0 %v2054
  %v2160 = vpop.f32.mrb[0].mxu0
  %v2161 = vadd.f32 %v999, %v2160
  %v2162 = vpop.f32.mrb[0].mxu0
  %v2163 = vpop.f32.mrb[0].mxu0
  %v2164 = vadd.f32 %v999, %v2163
  %v2165 = vpop.f32.mrb[0].mxu0
  %2166 = vmatprep.mubr.bf16.mxu0 0
  %2167 = vmatmul.mubr.bf16.gmra.mrb[0].mxu0 %v2055
  %v2168 = vpop.f32.mrb[0].mxu0
  %v2169 = vadd.f32 %v999, %v2168
  %v2170 = vpop.f32.mrb[0].mxu0
  %v2171 = vpop.f32.mrb[0].mxu0
  %v2172 = vadd.f32 %v999, %v2171
  %v2173 = vpop.f32.mrb[0].mxu0
  %2174 = vmatprep.mubr.bf16.mxu0 0
  %2175 = vmatmul.mubr.bf16.gmra.mrb[0].mxu0 %v2056
  %v2176 = vpop.f32.mrb[0].mxu0
  %v2177 = vadd.f32 %v999, %v2176
  %v2178 = vpop.f32.mrb[0].mxu0
  %v2179 = vpop.f32.mrb[0].mxu0
  %v2180 = vadd.f32 %v999, %v2179
  %v2181 = vpop.f32.mrb[0].mxu0
  %2182 = vmatprep.mubr.bf16.mxu0 0
  %2183 = vmatmul.mubr.bf16.gmra.mrb[0].mxu0 %v2057
  %v2184 = vpop.f32.mrb[0].mxu0
  %v2185 = vadd.f32 %v999, %v2184
  %v2186 = vpop.f32.mrb[0].mxu0
  %v2187 = vpop.f32.mrb[0].mxu0
  %v2188 = vadd.f32 %v999, %v2187
  %v2189 = vpop.f32.mrb[0].mxu0
  %2190 = vmatprep.mubr.bf16.mxu0 0
  %2191 = vmatmul.mubr.bf16.gmra.mrb[0].mxu0 %v2058
  %v2192 = vpop.f32.mrb[0].mxu0
  %v2193 = vadd.f32 %v999, %v2192
  %v2194 = vpop.f32.mrb[0].mxu0
  %v2195 = vpop.f32.mrb[0].mxu0
  %v2196 = vadd.f32 %v999, %v2195
  %v2197 = vpop.f32.mrb[0].mxu0
  %2198 = vmatprep.mubr.bf16.mxu0 0
  %2199 = vmatmul.mubr.bf16.gmra.mrb[0].mxu0 %v2059
  %v2200 = vpop.f32.mrb[0].mxu0
  %v2201 = vadd.f32 %v999, %v2200
  %v2202 = vpop.f32.mrb[0].mxu0
  %v2203 = vpop.f32.mrb[0].mxu0
  %v2204 = vadd.f32 %v999, %v2203
  %v2205 = vpop.f32.mrb[0].mxu0
  %2206 = vmatprep.mubr.bf16.mxu0 0
  %2207 = vmatmul.mubr.bf16.gmra.mrb[0].mxu0 %v2060
  %v2208 = vpop.f32.mrb[0].mxu0
  %v2209 = vadd.f32 %v999, %v2208
  %v2210 = vpop.f32.mrb[0].mxu0
  %v2211 = vpop.f32.mrb[0].mxu0
  %v2212 = vadd.f32 %v999, %v2211
  %v2213 = vpop.f32.mrb[0].mxu0
  %2214 = vmatprep.mubr.bf16.mxu0 0
  %2215 = vmatmul.mubr.bf16.gmra.mrb[0].mxu0 %v2061
  %v2216 = vpop.f32.mrb[0].mxu0
  %v2217 = vadd.f32 %v999, %v2216
  %v2218 = vpop.f32.mrb[0].mxu0
  %v2219 = vpop.f32.mrb[0].mxu0
  %v2220 = vadd.f32 %v999, %v2219
  %v2221 = vpop.f32.mrb[0].mxu0
  %2222 = vdwg.mxu0
  %v2223 = vpack.c.bf16 %v2100, %v2097
  %v2224 = vpack.c.bf16 %v2108, %v2105
  %v2225 = vpack.c.bf16 %v2116, %v2113
  %v2226 = vpack.c.bf16 %v2124, %v2121
  %v2227 = vpack.c.bf16 %v2132, %v2129
  %v2228 = vpack.c.bf16 %v2140, %v2137
  %v2229 = vpack.c.bf16 %v2148, %v2145
  %v2230 = vpack.c.bf16 %v2156, %v2153
  %v2231 = vpack.c.bf16 %v2164, %v2161
  %v2232 = vpack.c.bf16 %v2172, %v2169
  %v2233 = vpack.c.bf16 %v2180, %v2177
  %v2234 = vpack.c.bf16 %v2188, %v2185
  %v2235 = vpack.c.bf16 %v2196, %v2193
  %v2236 = vpack.c.bf16 %v2204, %v2201
  %v2237 = vpack.c.bf16 %v2212, %v2209
  %v2238 = vpack.c.bf16 %v2220, %v2217
  %v2255 = vunpack.c.l.b16 %v2223
  %v2256 = vunpack.c.h.b16 %v2223
  %v2257 = vunpack.c.l.b16 %v2224
  %v2258 = vunpack.c.h.b16 %v2224
  %v2259 = vunpack.c.l.b16 %v2225
  %v2260 = vunpack.c.h.b16 %v2225
  %v2261 = vunpack.c.l.b16 %v2226
  %v2262 = vunpack.c.h.b16 %v2226
  %v2263 = vunpack.c.l.b16 %v2227
  %v2264 = vunpack.c.h.b16 %v2227
  %v2265 = vunpack.c.l.b16 %v2228
  %v2266 = vunpack.c.h.b16 %v2228
  %v2267 = vunpack.c.l.b16 %v2229
  %v2268 = vunpack.c.h.b16 %v2229
  %v2269 = vunpack.c.l.b16 %v2230
  %v2270 = vunpack.c.h.b16 %v2230
  %v2271 = vunpack.c.l.b16 %v2231
  %v2272 = vunpack.c.h.b16 %v2231
  %v2273 = vunpack.c.l.b16 %v2232
  %v2274 = vunpack.c.h.b16 %v2232
  %v2275 = vunpack.c.l.b16 %v2233
  %v2276 = vunpack.c.h.b16 %v2233
  %v2277 = vunpack.c.l.b16 %v2234
  %v2278 = vunpack.c.h.b16 %v2234
  %v2279 = vunpack.c.l.b16 %v2235
  %v2280 = vunpack.c.h.b16 %v2235
  %v2281 = vunpack.c.l.b16 %v2236
  %v2282 = vunpack.c.h.b16 %v2236
  %v2283 = vunpack.c.l.b16 %v2237
  %v2284 = vunpack.c.h.b16 %v2237
  %v2285 = vunpack.c.l.b16 %v2238
  %v2286 = vunpack.c.h.b16 %v2238
  %v2287 = vpack.c.b16 %v2255, %v2255
  %v2288 = vpack.c.b16 %v2256, %v2256
  %v2289 = vpack.c.b16 %v2257, %v2257
  %v2290 = vpack.c.b16 %v2258, %v2258
  %v2291 = vpack.c.b16 %v2259, %v2259
  %v2292 = vpack.c.b16 %v2260, %v2260
  %v2293 = vpack.c.b16 %v2261, %v2261
  %v2294 = vpack.c.b16 %v2262, %v2262
  %v2295 = vpack.c.b16 %v2263, %v2263
  %v2296 = vpack.c.b16 %v2264, %v2264
  %v2297 = vpack.c.b16 %v2265, %v2265
  %v2298 = vpack.c.b16 %v2266, %v2266
  %v2299 = vpack.c.b16 %v2267, %v2267
  %v2300 = vpack.c.b16 %v2268, %v2268
  %v2301 = vpack.c.b16 %v2269, %v2269
  %v2302 = vpack.c.b16 %v2270, %v2270
  %v2303 = vpack.c.b16 %v2271, %v2271
  %v2304 = vpack.c.b16 %v2272, %v2272
  %v2305 = vpack.c.b16 %v2273, %v2273
  %v2306 = vpack.c.b16 %v2274, %v2274
  %v2307 = vpack.c.b16 %v2275, %v2275
  %v2308 = vpack.c.b16 %v2276, %v2276
  %v2309 = vpack.c.b16 %v2277, %v2277
  %v2310 = vpack.c.b16 %v2278, %v2278
  %v2311 = vpack.c.b16 %v2279, %v2279
  %v2312 = vpack.c.b16 %v2280, %v2280
  %v2313 = vpack.c.b16 %v2281, %v2281
  %v2314 = vpack.c.b16 %v2282, %v2282
  %v2315 = vpack.c.b16 %v2283, %v2283
  %v2316 = vpack.c.b16 %v2284, %v2284
  %v2317 = vpack.c.b16 %v2285, %v2285
  %v2318 = vpack.c.b16 %v2286, %v2286
  %s2351 = scalar_lea.vmem %s6, 8
  %2352 = vst [vmem:[%s2351] sm:$0xf] %v2287
  %2353 = vst [vmem:[%s2351 + $0x4] sm:$0xf] %v2288
  %2354 = vst [vmem:[%s2351 + $0x20] sm:$0xf] %v2289
  %2355 = vst [vmem:[%s2351 + $0x24] sm:$0xf] %v2290
  %2356 = vst [vmem:[%s2351 + $0x40] sm:$0xf] %v2291
  %2357 = vst [vmem:[%s2351 + $0x44] sm:$0xf] %v2292
  %2358 = vst [vmem:[%s2351 + $0x60] sm:$0xf] %v2293
  %2359 = vst [vmem:[%s2351 + $0x64] sm:$0xf] %v2294
  %2360 = vst [vmem:[%s2351 + $0x80] sm:$0xf] %v2295
  %2361 = vst [vmem:[%s2351 + $0x84] sm:$0xf] %v2296
  %2362 = vst [vmem:[%s2351 + $0xa0] sm:$0xf] %v2297
  %2363 = vst [vmem:[%s2351 + $0xa4] sm:$0xf] %v2298
  %2364 = vst [vmem:[%s2351 + $0xc0] sm:$0xf] %v2299
  %2365 = vst [vmem:[%s2351 + $0xc4] sm:$0xf] %v2300
  %2366 = vst [vmem:[%s2351 + $0xe0] sm:$0xf] %v2301
  %2367 = vst [vmem:[%s2351 + $0xe4] sm:$0xf] %v2302
  %2368 = vst [vmem:[%s2351 + $0x100] sm:$0xf] %v2303
  %2369 = vst [vmem:[%s2351 + $0x104] sm:$0xf] %v2304
  %2370 = vst [vmem:[%s2351 + $0x120] sm:$0xf] %v2305
  %2371 = vst [vmem:[%s2351 + $0x124] sm:$0xf] %v2306
  %2372 = vst [vmem:[%s2351 + $0x140] sm:$0xf] %v2307
  %2373 = vst [vmem:[%s2351 + $0x144] sm:$0xf] %v2308
  %2374 = vst [vmem:[%s2351 + $0x160] sm:$0xf] %v2309
  %2375 = vst [vmem:[%s2351 + $0x164] sm:$0xf] %v2310
  %2376 = vst [vmem:[%s2351 + $0x180] sm:$0xf] %v2311
  %2377 = vst [vmem:[%s2351 + $0x184] sm:$0xf] %v2312
  %2378 = vst [vmem:[%s2351 + $0x1a0] sm:$0xf] %v2313
  %2379 = vst [vmem:[%s2351 + $0x1a4] sm:$0xf] %v2314
  %2380 = vst [vmem:[%s2351 + $0x1c0] sm:$0xf] %v2315
  %2381 = vst [vmem:[%s2351 + $0x1c4] sm:$0xf] %v2316
  %2382 = vst [vmem:[%s2351 + $0x1e0] sm:$0xf] %v2317
  %2383 = vst [vmem:[%s2351 + $0x1e4] sm:$0xf] %v2318
  %s2384 = scalar_lea.vmem %s1, 16
  %v2385 = vld [vmem:[%s2384] sm:$0xf]
  %v2386 = vld [vmem:[%s2384 + $0x4] sm:$0xf]
  %v2387 = vld [vmem:[%s2384 + $0x20] sm:$0xf]
  %v2388 = vld [vmem:[%s2384 + $0x24] sm:$0xf]
  %v2389 = vld [vmem:[%s2384 + $0x40] sm:$0xf]
  %v2390 = vld [vmem:[%s2384 + $0x44] sm:$0xf]
  %v2391 = vld [vmem:[%s2384 + $0x60] sm:$0xf]
  %v2392 = vld [vmem:[%s2384 + $0x64] sm:$0xf]
  %v2393 = vld [vmem:[%s2384 + $0x80] sm:$0xf]
  %v2394 = vld [vmem:[%s2384 + $0x84] sm:$0xf]
  %v2395 = vld [vmem:[%s2384 + $0xa0] sm:$0xf]
  %v2396 = vld [vmem:[%s2384 + $0xa4] sm:$0xf]
  %v2397 = vld [vmem:[%s2384 + $0xc0] sm:$0xf]
  %v2398 = vld [vmem:[%s2384 + $0xc4] sm:$0xf]
  %v2399 = vld [vmem:[%s2384 + $0xe0] sm:$0xf]
  %v2400 = vld [vmem:[%s2384 + $0xe4] sm:$0xf]
  %v2401 = vld [vmem:[%s2384 + $0x100] sm:$0xf]
  %v2402 = vld [vmem:[%s2384 + $0x104] sm:$0xf]
  %v2403 = vld [vmem:[%s2384 + $0x120] sm:$0xf]
  %v2404 = vld [vmem:[%s2384 + $0x124] sm:$0xf]
  %v2405 = vld [vmem:[%s2384 + $0x140] sm:$0xf]
  %v2406 = vld [vmem:[%s2384 + $0x144] sm:$0xf]
  %v2407 = vld [vmem:[%s2384 + $0x160] sm:$0xf]
  %v2408 = vld [vmem:[%s2384 + $0x164] sm:$0xf]
  %v2409 = vld [vmem:[%s2384 + $0x180] sm:$0xf]
  %v2410 = vld [vmem:[%s2384 + $0x184] sm:$0xf]
  %v2411 = vld [vmem:[%s2384 + $0x1a0] sm:$0xf]
  %v2412 = vld [vmem:[%s2384 + $0x1a4] sm:$0xf]
  %v2413 = vld [vmem:[%s2384 + $0x1c0] sm:$0xf]
  %v2414 = vld [vmem:[%s2384 + $0x1c4] sm:$0xf]
  %v2415 = vld [vmem:[%s2384 + $0x1e0] sm:$0xf]
  %v2416 = vld [vmem:[%s2384 + $0x1e4] sm:$0xf]
  %v2449 = vunpack.c.l.b16 %v2385
  %v2450 = vunpack.c.l.b16 %v2386
  %v2451 = vunpack.c.l.b16 %v2387
  %v2452 = vunpack.c.l.b16 %v2388
  %v2453 = vunpack.c.l.b16 %v2389
  %v2454 = vunpack.c.l.b16 %v2390
  %v2455 = vunpack.c.l.b16 %v2391
  %v2456 = vunpack.c.l.b16 %v2392
  %v2457 = vunpack.c.l.b16 %v2393
  %v2458 = vunpack.c.l.b16 %v2394
  %v2459 = vunpack.c.l.b16 %v2395
  %v2460 = vunpack.c.l.b16 %v2396
  %v2461 = vunpack.c.l.b16 %v2397
  %v2462 = vunpack.c.l.b16 %v2398
  %v2463 = vunpack.c.l.b16 %v2399
  %v2464 = vunpack.c.l.b16 %v2400
  %v2465 = vunpack.c.l.b16 %v2401
  %v2466 = vunpack.c.l.b16 %v2402
  %v2467 = vunpack.c.l.b16 %v2403
  %v2468 = vunpack.c.l.b16 %v2404
  %v2469 = vunpack.c.l.b16 %v2405
  %v2470 = vunpack.c.l.b16 %v2406
  %v2471 = vunpack.c.l.b16 %v2407
  %v2472 = vunpack.c.l.b16 %v2408
  %v2473 = vunpack.c.l.b16 %v2409
  %v2474 = vunpack.c.l.b16 %v2410
  %v2475 = vunpack.c.l.b16 %v2411
  %v2476 = vunpack.c.l.b16 %v2412
  %v2477 = vunpack.c.l.b16 %v2413
  %v2478 = vunpack.c.l.b16 %v2414
  %v2479 = vunpack.c.l.b16 %v2415
  %v2480 = vunpack.c.l.b16 %v2416
  %v2481 = vpack.c.b16 %v2450, %v2449
  %v2482 = vpack.c.b16 %v2452, %v2451
  %v2483 = vpack.c.b16 %v2454, %v2453
  %v2484 = vpack.c.b16 %v2456, %v2455
  %v2485 = vpack.c.b16 %v2458, %v2457
  %v2486 = vpack.c.b16 %v2460, %v2459
  %v2487 = vpack.c.b16 %v2462, %v2461
  %v2488 = vpack.c.b16 %v2464, %v2463
  %v2489 = vpack.c.b16 %v2466, %v2465
  %v2490 = vpack.c.b16 %v2468, %v2467
  %v2491 = vpack.c.b16 %v2470, %v2469
  %v2492 = vpack.c.b16 %v2472, %v2471
  %v2493 = vpack.c.b16 %v2474, %v2473
  %v2494 = vpack.c.b16 %v2476, %v2475
  %v2495 = vpack.c.b16 %v2478, %v2477
  %v2496 = vpack.c.b16 %v2480, %v2479
  %2513 = vmatprep.subr.bf16.mxu0 0
  %2514 = vmatpush1.bf16.msra.mxu0 %v2481
  %2515 = vmatprep.subr.bf16.mxu0 0
  %2516 = vmatpush1.bf16.msra.mxu0 %v2482
  %2517 = vmatprep.subr.bf16.mxu0 0
  %2518 = vmatpush1.bf16.msra.mxu0 %v2483
  %2519 = vmatprep.subr.bf16.mxu0 0
  %2520 = vmatpush1.bf16.msra.mxu0 %v2484
  %2521 = vmatprep.subr.bf16.mxu0 0
  %2522 = vmatpush1.bf16.msra.mxu0 %v2485
  %2523 = vmatprep.subr.bf16.mxu0 0
  %2524 = vmatpush1.bf16.msra.mxu0 %v2486
  %2525 = vmatprep.subr.bf16.mxu0 0
  %2526 = vmatpush1.bf16.msra.mxu0 %v2487
  %2527 = vmatprep.subr.bf16.mxu0 0
  %2528 = vmatpush1.bf16.msra.mxu0 %v2488
  %2529 = vmatprep.subr.bf16.mxu0 0
  %2530 = vmatpush1.bf16.msra.mxu0 %v2489
  %2531 = vmatprep.subr.bf16.mxu0 0
  %2532 = vmatpush1.bf16.msra.mxu0 %v2490
  %2533 = vmatprep.subr.bf16.mxu0 0
  %2534 = vmatpush1.bf16.msra.mxu0 %v2491
  %2535 = vmatprep.subr.bf16.mxu0 0
  %2536 = vmatpush1.bf16.msra.mxu0 %v2492
  %2537 = vmatprep.subr.bf16.mxu0 0
  %2538 = vmatpush1.bf16.msra.mxu0 %v2493
  %2539 = vmatprep.subr.bf16.mxu0 0
  %2540 = vmatpush1.bf16.msra.mxu0 %v2494
  %2541 = vmatprep.subr.bf16.mxu0 0
  %2542 = vmatpush1.bf16.msra.mxu0 %v2495
  %2543 = vmatprep.subr.bf16.mxu0 0
  %2544 = vmatpush1.bf16.msra.mxu0 %v2496
  %2545 = vmatprep.mubr.bf16.mxu0 %v219
  %2546 = vmatmul.mubr.bf16.gmra.mrb[0].mxu0 %v218
  %v2547 = vpop.f32.mrb[0].mxu0
  %v2548 = vadd.f32 0.0, %v2547
  %v2549 = vpop.f32.mrb[0].mxu0
  %v2550 = vpop.f32.mrb[0].mxu0
  %v2551 = vadd.f32 0.0, %v2550
  %v2552 = vpop.f32.mrb[0].mxu0
  %2553 = vmatprep.mubr.bf16.mxu0 %v221
  %2554 = vmatmul.mubr.bf16.gmra.mrb[0].mxu0 %v220
  %v2555 = vpop.f32.mrb[0].mxu0
  %v2556 = vadd.f32 0.0, %v2555
  %v2557 = vpop.f32.mrb[0].mxu0
  %v2558 = vpop.f32.mrb[0].mxu0
  %v2559 = vadd.f32 0.0, %v2558
  %v2560 = vpop.f32.mrb[0].mxu0
  %2561 = vmatprep.mubr.bf16.mxu0 %v223
  %2562 = vmatmul.mubr.bf16.gmra.mrb[0].mxu0 %v222
  %v2563 = vpop.f32.mrb[0].mxu0
  %v2564 = vadd.f32 0.0, %v2563
  %v2565 = vpop.f32.mrb[0].mxu0
  %v2566 = vpop.f32.mrb[0].mxu0
  %v2567 = vadd.f32 0.0, %v2566
  %v2568 = vpop.f32.mrb[0].mxu0
  %2569 = vmatprep.mubr.bf16.mxu0 %v225
  %2570 = vmatmul.mubr.bf16.gmra.mrb[0].mxu0 %v224
  %v2571 = vpop.f32.mrb[0].mxu0
  %v2572 = vadd.f32 0.0, %v2571
  %v2573 = vpop.f32.mrb[0].mxu0
  %v2574 = vpop.f32.mrb[0].mxu0
  %v2575 = vadd.f32 0.0, %v2574
  %v2576 = vpop.f32.mrb[0].mxu0
  %2577 = vmatprep.mubr.bf16.mxu0 %v227
  %2578 = vmatmul.mubr.bf16.gmra.mrb[0].mxu0 %v226
  %v2579 = vpop.f32.mrb[0].mxu0
  %v2580 = vadd.f32 0.0, %v2579
  %v2581 = vpop.f32.mrb[0].mxu0
  %v2582 = vpop.f32.mrb[0].mxu0
  %v2583 = vadd.f32 0.0, %v2582
  %v2584 = vpop.f32.mrb[0].mxu0
  %2585 = vmatprep.mubr.bf16.mxu0 %v229
  %2586 = vmatmul.mubr.bf16.gmra.mrb[0].mxu0 %v228
  %v2587 = vpop.f32.mrb[0].mxu0
  %v2588 = vadd.f32 0.0, %v2587
  %v2589 = vpop.f32.mrb[0].mxu0
  %v2590 = vpop.f32.mrb[0].mxu0
  %v2591 = vadd.f32 0.0, %v2590
  %v2592 = vpop.f32.mrb[0].mxu0
  %2593 = vmatprep.mubr.bf16.mxu0 %v231
  %2594 = vmatmul.mubr.bf16.gmra.mrb[0].mxu0 %v230
  %v2595 = vpop.f32.mrb[0].mxu0
  %v2596 = vadd.f32 0.0, %v2595
  %v2597 = vpop.f32.mrb[0].mxu0
  %v2598 = vpop.f32.mrb[0].mxu0
  %v2599 = vadd.f32 0.0, %v2598
  %v2600 = vpop.f32.mrb[0].mxu0
  %2601 = vmatprep.mubr.bf16.mxu0 %v233
  %2602 = vmatmul.mubr.bf16.gmra.mrb[0].mxu0 %v232
  %v2603 = vpop.f32.mrb[0].mxu0
  %v2604 = vadd.f32 0.0, %v2603
  %v2605 = vpop.f32.mrb[0].mxu0
  %v2606 = vpop.f32.mrb[0].mxu0
  %v2607 = vadd.f32 0.0, %v2606
  %v2608 = vpop.f32.mrb[0].mxu0
  %2609 = vmatprep.mubr.bf16.mxu0 %v235
  %2610 = vmatmul.mubr.bf16.gmra.mrb[0].mxu0 %v234
  %v2611 = vpop.f32.mrb[0].mxu0
  %v2612 = vadd.f32 0.0, %v2611
  %v2613 = vpop.f32.mrb[0].mxu0
  %v2614 = vpop.f32.mrb[0].mxu0
  %v2615 = vadd.f32 0.0, %v2614
  %v2616 = vpop.f32.mrb[0].mxu0
  %2617 = vmatprep.mubr.bf16.mxu0 %v237
  %2618 = vmatmul.mubr.bf16.gmra.mrb[0].mxu0 %v236
  %v2619 = vpop.f32.mrb[0].mxu0
  %v2620 = vadd.f32 0.0, %v2619
  %v2621 = vpop.f32.mrb[0].mxu0
  %v2622 = vpop.f32.mrb[0].mxu0
  %v2623 = vadd.f32 0.0, %v2622
  %v2624 = vpop.f32.mrb[0].mxu0
  %2625 = vmatprep.mubr.bf16.mxu0 %v239
  %2626 = vmatmul.mubr.bf16.gmra.mrb[0].mxu0 %v238
  %v2627 = vpop.f32.mrb[0].mxu0
  %v2628 = vadd.f32 0.0, %v2627
  %v2629 = vpop.f32.mrb[0].mxu0
  %v2630 = vpop.f32.mrb[0].mxu0
  %v2631 = vadd.f32 0.0, %v2630
  %v2632 = vpop.f32.mrb[0].mxu0
  %2633 = vmatprep.mubr.bf16.mxu0 %v241
  %2634 = vmatmul.mubr.bf16.gmra.mrb[0].mxu0 %v240
  %v2635 = vpop.f32.mrb[0].mxu0
  %v2636 = vadd.f32 0.0, %v2635
  %v2637 = vpop.f32.mrb[0].mxu0
  %v2638 = vpop.f32.mrb[0].mxu0
  %v2639 = vadd.f32 0.0, %v2638
  %v2640 = vpop.f32.mrb[0].mxu0
  %2641 = vmatprep.mubr.bf16.mxu0 %v243
  %2642 = vmatmul.mubr.bf16.gmra.mrb[0].mxu0 %v242
  %v2643 = vpop.f32.mrb[0].mxu0
  %v2644 = vadd.f32 0.0, %v2643
  %v2645 = vpop.f32.mrb[0].mxu0
  %v2646 = vpop.f32.mrb[0].mxu0
  %v2647 = vadd.f32 0.0, %v2646
  %v2648 = vpop.f32.mrb[0].mxu0
  %2649 = vmatprep.mubr.bf16.mxu0 %v245
  %2650 = vmatmul.mubr.bf16.gmra.mrb[0].mxu0 %v244
  %v2651 = vpop.f32.mrb[0].mxu0
  %v2652 = vadd.f32 0.0, %v2651
  %v2653 = vpop.f32.mrb[0].mxu0
  %v2654 = vpop.f32.mrb[0].mxu0
  %v2655 = vadd.f32 0.0, %v2654
  %v2656 = vpop.f32.mrb[0].mxu0
  %2657 = vmatprep.mubr.bf16.mxu0 %v247
  %2658 = vmatmul.mubr.bf16.gmra.mrb[0].mxu0 %v246
  %v2659 = vpop.f32.mrb[0].mxu0
  %v2660 = vadd.f32 0.0, %v2659
  %v2661 = vpop.f32.mrb[0].mxu0
  %v2662 = vpop.f32.mrb[0].mxu0
  %v2663 = vadd.f32 0.0, %v2662
  %v2664 = vpop.f32.mrb[0].mxu0
  %2665 = vmatprep.mubr.bf16.mxu0 %v249
  %2666 = vmatmul.mubr.bf16.gmra.mrb[0].mxu0 %v248
  %v2667 = vpop.f32.mrb[0].mxu0
  %v2668 = vadd.f32 0.0, %v2667
  %v2669 = vpop.f32.mrb[0].mxu0
  %v2670 = vpop.f32.mrb[0].mxu0
  %v2671 = vadd.f32 0.0, %v2670
  %v2672 = vpop.f32.mrb[0].mxu0
  %2673 = vdwg.mxu0
  %v2674 = vpack.c.bf16 %v2551, %v2548
  %v2675 = vpack.c.bf16 %v2559, %v2556
  %v2676 = vpack.c.bf16 %v2567, %v2564
  %v2677 = vpack.c.bf16 %v2575, %v2572
  %v2678 = vpack.c.bf16 %v2583, %v2580
  %v2679 = vpack.c.bf16 %v2591, %v2588
  %v2680 = vpack.c.bf16 %v2599, %v2596
  %v2681 = vpack.c.bf16 %v2607, %v2604
  %v2682 = vpack.c.bf16 %v2615, %v2612
  %v2683 = vpack.c.bf16 %v2623, %v2620
  %v2684 = vpack.c.bf16 %v2631, %v2628
  %v2685 = vpack.c.bf16 %v2639, %v2636
  %v2686 = vpack.c.bf16 %v2647, %v2644
  %v2687 = vpack.c.bf16 %v2655, %v2652
  %v2688 = vpack.c.bf16 %v2663, %v2660
  %v2689 = vpack.c.bf16 %v2671, %v2668
  %2690 = vmatprep.subr.bf16.mxu0 0
  %2691 = vmatpush1.bf16.msra.mxu0 %v593
  %2692 = vmatprep.subr.bf16.mxu0 0
  %2693 = vmatpush1.bf16.msra.mxu0 %v594
  %2694 = vmatprep.subr.bf16.mxu0 0
  %2695 = vmatpush1.bf16.msra.mxu0 %v595
  %2696 = vmatprep.subr.bf16.mxu0 0
  %2697 = vmatpush1.bf16.msra.mxu0 %v596
  %2698 = vmatprep.subr.bf16.mxu0 0
  %2699 = vmatpush1.bf16.msra.mxu0 %v597
  %2700 = vmatprep.subr.bf16.mxu0 0
  %2701 = vmatpush1.bf16.msra.mxu0 %v598
  %2702 = vmatprep.subr.bf16.mxu0 0
  %2703 = vmatpush1.bf16.msra.mxu0 %v599
  %2704 = vmatprep.subr.bf16.mxu0 0
  %2705 = vmatpush1.bf16.msra.mxu0 %v600
  %2706 = vmatprep.subr.bf16.mxu0 0
  %2707 = vmatpush1.bf16.msra.mxu0 0
  %2708 = vmatprep.subr.bf16.mxu0 0
  %2709 = vmatpush1.bf16.msra.mxu0 0
  %2710 = vmatprep.subr.bf16.mxu0 0
  %2711 = vmatpush1.bf16.msra.mxu0 0
  %2712 = vmatprep.subr.bf16.mxu0 0
  %2713 = vmatpush1.bf16.msra.mxu0 0
  %2714 = vmatprep.subr.bf16.mxu0 0
  %2715 = vmatpush1.bf16.msra.mxu0 0
  %2716 = vmatprep.subr.bf16.mxu0 0
  %2717 = vmatpush1.bf16.msra.mxu0 0
  %2718 = vmatprep.subr.bf16.mxu0 0
  %2719 = vmatpush1.bf16.msra.mxu0 0
  %2720 = vmatprep.subr.bf16.mxu0 0
  %2721 = vmatpush1.bf16.msra.mxu0 0
  %2722 = vmatprep.mubr.bf16.mxu0 0
  %2723 = vmatmul.mubr.bf16.gmra.mrb[0].mxu0 %v2674
  %v2724 = vpop.f32.mrb[0].mxu0
  %v2725 = vadd.f32 %v559, %v2724
  %v2726 = vpop.f32.mrb[0].mxu0
  %v2727 = vpop.f32.mrb[0].mxu0
  %v2728 = vadd.f32 %v559, %v2727
  %v2729 = vpop.f32.mrb[0].mxu0
  %2730 = vmatprep.mubr.bf16.mxu0 0
  %2731 = vmatmul.mubr.bf16.gmra.mrb[0].mxu0 %v2675
  %v2732 = vpop.f32.mrb[0].mxu0
  %v2733 = vadd.f32 %v559, %v2732
  %v2734 = vpop.f32.mrb[0].mxu0
  %v2735 = vpop.f32.mrb[0].mxu0
  %v2736 = vadd.f32 %v559, %v2735
  %v2737 = vpop.f32.mrb[0].mxu0
  %2738 = vmatprep.mubr.bf16.mxu0 0
  %2739 = vmatmul.mubr.bf16.gmra.mrb[0].mxu0 %v2676
  %v2740 = vpop.f32.mrb[0].mxu0
  %v2741 = vadd.f32 %v559, %v2740
  %v2742 = vpop.f32.mrb[0].mxu0
  %v2743 = vpop.f32.mrb[0].mxu0
  %v2744 = vadd.f32 %v559, %v2743
  %v2745 = vpop.f32.mrb[0].mxu0
  %2746 = vmatprep.mubr.bf16.mxu0 0
  %2747 = vmatmul.mubr.bf16.gmra.mrb[0].mxu0 %v2677
  %v2748 = vpop.f32.mrb[0].mxu0
  %v2749 = vadd.f32 %v559, %v2748
  %v2750 = vpop.f32.mrb[0].mxu0
  %v2751 = vpop.f32.mrb[0].mxu0
  %v2752 = vadd.f32 %v559, %v2751
  %v2753 = vpop.f32.mrb[0].mxu0
  %2754 = vmatprep.mubr.bf16.mxu0 0
  %2755 = vmatmul.mubr.bf16.gmra.mrb[0].mxu0 %v2678
  %v2756 = vpop.f32.mrb[0].mxu0
  %v2757 = vadd.f32 %v559, %v2756
  %v2758 = vpop.f32.mrb[0].mxu0
  %v2759 = vpop.f32.mrb[0].mxu0
  %v2760 = vadd.f32 %v559, %v2759
  %v2761 = vpop.f32.mrb[0].mxu0
  %2762 = vmatprep.mubr.bf16.mxu0 0
  %2763 = vmatmul.mubr.bf16.gmra.mrb[0].mxu0 %v2679
  %v2764 = vpop.f32.mrb[0].mxu0
  %v2765 = vadd.f32 %v559, %v2764
  %v2766 = vpop.f32.mrb[0].mxu0
  %v2767 = vpop.f32.mrb[0].mxu0
  %v2768 = vadd.f32 %v559, %v2767
  %v2769 = vpop.f32.mrb[0].mxu0
  %2770 = vmatprep.mubr.bf16.mxu0 0
  %2771 = vmatmul.mubr.bf16.gmra.mrb[0].mxu0 %v2680
  %v2772 = vpop.f32.mrb[0].mxu0
  %v2773 = vadd.f32 %v559, %v2772
  %v2774 = vpop.f32.mrb[0].mxu0
  %v2775 = vpop.f32.mrb[0].mxu0
  %v2776 = vadd.f32 %v559, %v2775
  %v2777 = vpop.f32.mrb[0].mxu0
  %2778 = vmatprep.mubr.bf16.mxu0 0
  %2779 = vmatmul.mubr.bf16.gmra.mrb[0].mxu0 %v2681
  %v2780 = vpop.f32.mrb[0].mxu0
  %v2781 = vadd.f32 %v559, %v2780
  %v2782 = vpop.f32.mrb[0].mxu0
  %v2783 = vpop.f32.mrb[0].mxu0
  %v2784 = vadd.f32 %v559, %v2783
  %v2785 = vpop.f32.mrb[0].mxu0
  %2786 = vmatprep.mubr.bf16.mxu0 0
  %2787 = vmatmul.mubr.bf16.gmra.mrb[0].mxu0 %v2682
  %v2788 = vpop.f32.mrb[0].mxu0
  %v2789 = vadd.f32 %v559, %v2788
  %v2790 = vpop.f32.mrb[0].mxu0
  %v2791 = vpop.f32.mrb[0].mxu0
  %v2792 = vadd.f32 %v559, %v2791
  %v2793 = vpop.f32.mrb[0].mxu0
  %2794 = vmatprep.mubr.bf16.mxu0 0
  %2795 = vmatmul.mubr.bf16.gmra.mrb[0].mxu0 %v2683
  %v2796 = vpop.f32.mrb[0].mxu0
  %v2797 = vadd.f32 %v559, %v2796
  %v2798 = vpop.f32.mrb[0].mxu0
  %v2799 = vpop.f32.mrb[0].mxu0
  %v2800 = vadd.f32 %v559, %v2799
  %v2801 = vpop.f32.mrb[0].mxu0
  %2802 = vmatprep.mubr.bf16.mxu0 0
  %2803 = vmatmul.mubr.bf16.gmra.mrb[0].mxu0 %v2684
  %v2804 = vpop.f32.mrb[0].mxu0
  %v2805 = vadd.f32 %v559, %v2804
  %v2806 = vpop.f32.mrb[0].mxu0
  %v2807 = vpop.f32.mrb[0].mxu0
  %v2808 = vadd.f32 %v559, %v2807
  %v2809 = vpop.f32.mrb[0].mxu0
  %2810 = vmatprep.mubr.bf16.mxu0 0
  %2811 = vmatmul.mubr.bf16.gmra.mrb[0].mxu0 %v2685
  %v2812 = vpop.f32.mrb[0].mxu0
  %v2813 = vadd.f32 %v559, %v2812
  %v2814 = vpop.f32.mrb[0].mxu0
  %v2815 = vpop.f32.mrb[0].mxu0
  %v2816 = vadd.f32 %v559, %v2815
  %v2817 = vpop.f32.mrb[0].mxu0
  %2818 = vmatprep.mubr.bf16.mxu0 0
  %2819 = vmatmul.mubr.bf16.gmra.mrb[0].mxu0 %v2686
  %v2820 = vpop.f32.mrb[0].mxu0
  %v2821 = vadd.f32 %v559, %v2820
  %v2822 = vpop.f32.mrb[0].mxu0
  %v2823 = vpop.f32.mrb[0].mxu0
  %v2824 = vadd.f32 %v559, %v2823
  %v2825 = vpop.f32.mrb[0].mxu0
  %2826 = vmatprep.mubr.bf16.mxu0 0
  %2827 = vmatmul.mubr.bf16.gmra.mrb[0].mxu0 %v2687
  %v2828 = vpop.f32.mrb[0].mxu0
  %v2829 = vadd.f32 %v559, %v2828
  %v2830 = vpop.f32.mrb[0].mxu0
  %v2831 = vpop.f32.mrb[0].mxu0
  %v2832 = vadd.f32 %v559, %v2831
  %v2833 = vpop.f32.mrb[0].mxu0
  %2834 = vmatprep.mubr.bf16.mxu0 0
  %2835 = vmatmul.mubr.bf16.gmra.mrb[0].mxu0 %v2688
  %v2836 = vpop.f32.mrb[0].mxu0
  %v2837 = vadd.f32 %v559, %v2836
  %v2838 = vpop.f32.mrb[0].mxu0
  %v2839 = vpop.f32.mrb[0].mxu0
  %v2840 = vadd.f32 %v559, %v2839
  %v2841 = vpop.f32.mrb[0].mxu0
  %2842 = vmatprep.mubr.bf16.mxu0 0
  %2843 = vmatmul.mubr.bf16.gmra.mrb[0].mxu0 %v2689
  %v2844 = vpop.f32.mrb[0].mxu0
  %v2845 = vadd.f32 %v559, %v2844
  %v2846 = vpop.f32.mrb[0].mxu0
  %v2847 = vpop.f32.mrb[0].mxu0
  %v2848 = vadd.f32 %v559, %v2847
  %v2849 = vpop.f32.mrb[0].mxu0
  %2850 = vdwg.mxu0
  %v2851 = vmax.f32 %v2725, 0.0
  %v2852 = vmax.f32 %v2728, 0.0
  %v2853 = vmax.f32 %v2733, 0.0
  %v2854 = vmax.f32 %v2736, 0.0
  %v2855 = vmax.f32 %v2741, 0.0
  %v2856 = vmax.f32 %v2744, 0.0
  %v2857 = vmax.f32 %v2749, 0.0
  %v2858 = vmax.f32 %v2752, 0.0
  %v2859 = vmax.f32 %v2757, 0.0
  %v2860 = vmax.f32 %v2760, 0.0
  %v2861 = vmax.f32 %v2765, 0.0
  %v2862 = vmax.f32 %v2768, 0.0
  %v2863 = vmax.f32 %v2773, 0.0
  %v2864 = vmax.f32 %v2776, 0.0
  %v2865 = vmax.f32 %v2781, 0.0
  %v2866 = vmax.f32 %v2784, 0.0
  %v2867 = vmax.f32 %v2789, 0.0
  %v2868 = vmax.f32 %v2792, 0.0
  %v2869 = vmax.f32 %v2797, 0.0
  %v2870 = vmax.f32 %v2800, 0.0
  %v2871 = vmax.f32 %v2805, 0.0
  %v2872 = vmax.f32 %v2808, 0.0
  %v2873 = vmax.f32 %v2813, 0.0
  %v2874 = vmax.f32 %v2816, 0.0
  %v2875 = vmax.f32 %v2821, 0.0
  %v2876 = vmax.f32 %v2824, 0.0
  %v2877 = vmax.f32 %v2829, 0.0
  %v2878 = vmax.f32 %v2832, 0.0
  %v2879 = vmax.f32 %v2837, 0.0
  %v2880 = vmax.f32 %v2840, 0.0
  %v2881 = vmax.f32 %v2845, 0.0
  %v2882 = vmax.f32 %v2848, 0.0
  %v2883 = vpack.c.bf16 %v2852, %v2851
  %v2884 = vpack.c.bf16 %v2854, %v2853
  %v2885 = vpack.c.bf16 %v2856, %v2855
  %v2886 = vpack.c.bf16 %v2858, %v2857
  %v2887 = vpack.c.bf16 %v2860, %v2859
  %v2888 = vpack.c.bf16 %v2862, %v2861
  %v2889 = vpack.c.bf16 %v2864, %v2863
  %v2890 = vpack.c.bf16 %v2866, %v2865
  %v2891 = vpack.c.bf16 %v2868, %v2867
  %v2892 = vpack.c.bf16 %v2870, %v2869
  %v2893 = vpack.c.bf16 %v2872, %v2871
  %v2894 = vpack.c.bf16 %v2874, %v2873
  %v2895 = vpack.c.bf16 %v2876, %v2875
  %v2896 = vpack.c.bf16 %v2878, %v2877
  %v2897 = vpack.c.bf16 %v2880, %v2879
  %v2898 = vpack.c.bf16 %v2882, %v2881
  %2899 = vmatprep.subr.bf16.mxu0 0
  %2900 = vmatpush1.bf16.msra.mxu0 %v2883
  %2901 = vmatprep.subr.bf16.mxu0 0
  %2902 = vmatpush1.bf16.msra.mxu0 %v2884
  %2903 = vmatprep.subr.bf16.mxu0 0
  %2904 = vmatpush1.bf16.msra.mxu0 %v2885
  %2905 = vmatprep.subr.bf16.mxu0 0
  %2906 = vmatpush1.bf16.msra.mxu0 %v2886
  %2907 = vmatprep.subr.bf16.mxu0 0
  %2908 = vmatpush1.bf16.msra.mxu0 %v2887
  %2909 = vmatprep.subr.bf16.mxu0 0
  %2910 = vmatpush1.bf16.msra.mxu0 %v2888
  %2911 = vmatprep.subr.bf16.mxu0 0
  %2912 = vmatpush1.bf16.msra.mxu0 %v2889
  %2913 = vmatprep.subr.bf16.mxu0 0
  %2914 = vmatpush1.bf16.msra.mxu0 %v2890
  %2915 = vmatprep.subr.bf16.mxu0 0
  %2916 = vmatpush1.bf16.msra.mxu0 %v2891
  %2917 = vmatprep.subr.bf16.mxu0 0
  %2918 = vmatpush1.bf16.msra.mxu0 %v2892
  %2919 = vmatprep.subr.bf16.mxu0 0
  %2920 = vmatpush1.bf16.msra.mxu0 %v2893
  %2921 = vmatprep.subr.bf16.mxu0 0
  %2922 = vmatpush1.bf16.msra.mxu0 %v2894
  %2923 = vmatprep.subr.bf16.mxu0 0
  %2924 = vmatpush1.bf16.msra.mxu0 %v2895
  %2925 = vmatprep.subr.bf16.mxu0 0
  %2926 = vmatpush1.bf16.msra.mxu0 %v2896
  %2927 = vmatprep.subr.bf16.mxu0 0
  %2928 = vmatpush1.bf16.msra.mxu0 %v2897
  %2929 = vmatprep.subr.bf16.mxu0 0
  %2930 = vmatpush1.bf16.msra.mxu0 %v2898
  %2931 = vmatprep.mubr.bf16.mxu0 %v219
  %2932 = vmatmul.mubr.bf16.gmra.mrb[0].mxu0 %v218
  %v2933 = vpop.f32.mrb[0].mxu0
  %v2934 = vadd.f32 0.0, %v2933
  %v2935 = vpop.f32.mrb[0].mxu0
  %v2936 = vpop.f32.mrb[0].mxu0
  %v2937 = vadd.f32 0.0, %v2936
  %v2938 = vpop.f32.mrb[0].mxu0
  %2939 = vmatprep.mubr.bf16.mxu0 %v221
  %2940 = vmatmul.mubr.bf16.gmra.mrb[0].mxu0 %v220
  %v2941 = vpop.f32.mrb[0].mxu0
  %v2942 = vadd.f32 0.0, %v2941
  %v2943 = vpop.f32.mrb[0].mxu0
  %v2944 = vpop.f32.mrb[0].mxu0
  %v2945 = vadd.f32 0.0, %v2944
  %v2946 = vpop.f32.mrb[0].mxu0
  %2947 = vmatprep.mubr.bf16.mxu0 %v223
  %2948 = vmatmul.mubr.bf16.gmra.mrb[0].mxu0 %v222
  %v2949 = vpop.f32.mrb[0].mxu0
  %v2950 = vadd.f32 0.0, %v2949
  %v2951 = vpop.f32.mrb[0].mxu0
  %v2952 = vpop.f32.mrb[0].mxu0
  %v2953 = vadd.f32 0.0, %v2952
  %v2954 = vpop.f32.mrb[0].mxu0
  %2955 = vmatprep.mubr.bf16.mxu0 %v225
  %2956 = vmatmul.mubr.bf16.gmra.mrb[0].mxu0 %v224
  %v2957 = vpop.f32.mrb[0].mxu0
  %v2958 = vadd.f32 0.0, %v2957
  %v2959 = vpop.f32.mrb[0].mxu0
  %v2960 = vpop.f32.mrb[0].mxu0
  %v2961 = vadd.f32 0.0, %v2960
  %v2962 = vpop.f32.mrb[0].mxu0
  %2963 = vmatprep.mubr.bf16.mxu0 %v227
  %2964 = vmatmul.mubr.bf16.gmra.mrb[0].mxu0 %v226
  %v2965 = vpop.f32.mrb[0].mxu0
  %v2966 = vadd.f32 0.0, %v2965
  %v2967 = vpop.f32.mrb[0].mxu0
  %v2968 = vpop.f32.mrb[0].mxu0
  %v2969 = vadd.f32 0.0, %v2968
  %v2970 = vpop.f32.mrb[0].mxu0
  %2971 = vmatprep.mubr.bf16.mxu0 %v229
  %2972 = vmatmul.mubr.bf16.gmra.mrb[0].mxu0 %v228
  %v2973 = vpop.f32.mrb[0].mxu0
  %v2974 = vadd.f32 0.0, %v2973
  %v2975 = vpop.f32.mrb[0].mxu0
  %v2976 = vpop.f32.mrb[0].mxu0
  %v2977 = vadd.f32 0.0, %v2976
  %v2978 = vpop.f32.mrb[0].mxu0
  %2979 = vmatprep.mubr.bf16.mxu0 %v231
  %2980 = vmatmul.mubr.bf16.gmra.mrb[0].mxu0 %v230
  %v2981 = vpop.f32.mrb[0].mxu0
  %v2982 = vadd.f32 0.0, %v2981
  %v2983 = vpop.f32.mrb[0].mxu0
  %v2984 = vpop.f32.mrb[0].mxu0
  %v2985 = vadd.f32 0.0, %v2984
  %v2986 = vpop.f32.mrb[0].mxu0
  %2987 = vmatprep.mubr.bf16.mxu0 %v233
  %2988 = vmatmul.mubr.bf16.gmra.mrb[0].mxu0 %v232
  %v2989 = vpop.f32.mrb[0].mxu0
  %v2990 = vadd.f32 0.0, %v2989
  %v2991 = vpop.f32.mrb[0].mxu0
  %v2992 = vpop.f32.mrb[0].mxu0
  %v2993 = vadd.f32 0.0, %v2992
  %v2994 = vpop.f32.mrb[0].mxu0
  %2995 = vmatprep.mubr.bf16.mxu0 %v235
  %2996 = vmatmul.mubr.bf16.gmra.mrb[0].mxu0 %v234
  %v2997 = vpop.f32.mrb[0].mxu0
  %v2998 = vadd.f32 0.0, %v2997
  %v2999 = vpop.f32.mrb[0].mxu0
  %v3000 = vpop.f32.mrb[0].mxu0
  %v3001 = vadd.f32 0.0, %v3000
  %v3002 = vpop.f32.mrb[0].mxu0
  %3003 = vmatprep.mubr.bf16.mxu0 %v237
  %3004 = vmatmul.mubr.bf16.gmra.mrb[0].mxu0 %v236
  %v3005 = vpop.f32.mrb[0].mxu0
  %v3006 = vadd.f32 0.0, %v3005
  %v3007 = vpop.f32.mrb[0].mxu0
  %v3008 = vpop.f32.mrb[0].mxu0
  %v3009 = vadd.f32 0.0, %v3008
  %v3010 = vpop.f32.mrb[0].mxu0
  %3011 = vmatprep.mubr.bf16.mxu0 %v239
  %3012 = vmatmul.mubr.bf16.gmra.mrb[0].mxu0 %v238
  %v3013 = vpop.f32.mrb[0].mxu0
  %v3014 = vadd.f32 0.0, %v3013
  %v3015 = vpop.f32.mrb[0].mxu0
  %v3016 = vpop.f32.mrb[0].mxu0
  %v3017 = vadd.f32 0.0, %v3016
  %v3018 = vpop.f32.mrb[0].mxu0
  %3019 = vmatprep.mubr.bf16.mxu0 %v241
  %3020 = vmatmul.mubr.bf16.gmra.mrb[0].mxu0 %v240
  %v3021 = vpop.f32.mrb[0].mxu0
  %v3022 = vadd.f32 0.0, %v3021
  %v3023 = vpop.f32.mrb[0].mxu0
  %v3024 = vpop.f32.mrb[0].mxu0
  %v3025 = vadd.f32 0.0, %v3024
  %v3026 = vpop.f32.mrb[0].mxu0
  %3027 = vmatprep.mubr.bf16.mxu0 %v243
  %3028 = vmatmul.mubr.bf16.gmra.mrb[0].mxu0 %v242
  %v3029 = vpop.f32.mrb[0].mxu0
  %v3030 = vadd.f32 0.0, %v3029
  %v3031 = vpop.f32.mrb[0].mxu0
  %v3032 = vpop.f32.mrb[0].mxu0
  %v3033 = vadd.f32 0.0, %v3032
  %v3034 = vpop.f32.mrb[0].mxu0
  %3035 = vmatprep.mubr.bf16.mxu0 %v245
  %3036 = vmatmul.mubr.bf16.gmra.mrb[0].mxu0 %v244
  %v3037 = vpop.f32.mrb[0].mxu0
  %v3038 = vadd.f32 0.0, %v3037
  %v3039 = vpop.f32.mrb[0].mxu0
  %v3040 = vpop.f32.mrb[0].mxu0
  %v3041 = vadd.f32 0.0, %v3040
  %v3042 = vpop.f32.mrb[0].mxu0
  %3043 = vmatprep.mubr.bf16.mxu0 %v247
  %3044 = vmatmul.mubr.bf16.gmra.mrb[0].mxu0 %v246
  %v3045 = vpop.f32.mrb[0].mxu0
  %v3046 = vadd.f32 0.0, %v3045
  %v3047 = vpop.f32.mrb[0].mxu0
  %v3048 = vpop.f32.mrb[0].mxu0
  %v3049 = vadd.f32 0.0, %v3048
  %v3050 = vpop.f32.mrb[0].mxu0
  %3051 = vmatprep.mubr.bf16.mxu0 %v249
  %3052 = vmatmul.mubr.bf16.gmra.mrb[0].mxu0 %v248
  %v3053 = vpop.f32.mrb[0].mxu0
  %v3054 = vadd.f32 0.0, %v3053
  %v3055 = vpop.f32.mrb[0].mxu0
  %v3056 = vpop.f32.mrb[0].mxu0
  %v3057 = vadd.f32 0.0, %v3056
  %v3058 = vpop.f32.mrb[0].mxu0
  %3059 = vdwg.mxu0
  %v3060 = vpack.c.bf16 %v2937, %v2934
  %v3061 = vpack.c.bf16 %v2945, %v2942
  %v3062 = vpack.c.bf16 %v2953, %v2950
  %v3063 = vpack.c.bf16 %v2961, %v2958
  %v3064 = vpack.c.bf16 %v2969, %v2966
  %v3065 = vpack.c.bf16 %v2977, %v2974
  %v3066 = vpack.c.bf16 %v2985, %v2982
  %v3067 = vpack.c.bf16 %v2993, %v2990
  %v3068 = vpack.c.bf16 %v3001, %v2998
  %v3069 = vpack.c.bf16 %v3009, %v3006
  %v3070 = vpack.c.bf16 %v3017, %v3014
  %v3071 = vpack.c.bf16 %v3025, %v3022
  %v3072 = vpack.c.bf16 %v3033, %v3030
  %v3073 = vpack.c.bf16 %v3041, %v3038
  %v3074 = vpack.c.bf16 %v3049, %v3046
  %v3075 = vpack.c.bf16 %v3057, %v3054
  %3076 = vmatprep.subr.bf16.mxu0 0
  %3077 = vmatpush1.bf16.msra.mxu0 %v1033
  %3078 = vmatprep.subr.bf16.mxu0 0
  %3079 = vmatpush1.bf16.msra.mxu0 %v1034
  %3080 = vmatprep.subr.bf16.mxu0 0
  %3081 = vmatpush1.bf16.msra.mxu0 %v1035
  %3082 = vmatprep.subr.bf16.mxu0 0
  %3083 = vmatpush1.bf16.msra.mxu0 %v1036
  %3084 = vmatprep.subr.bf16.mxu0 0
  %3085 = vmatpush1.bf16.msra.mxu0 %v1037
  %3086 = vmatprep.subr.bf16.mxu0 0
  %3087 = vmatpush1.bf16.msra.mxu0 %v1038
  %3088 = vmatprep.subr.bf16.mxu0 0
  %3089 = vmatpush1.bf16.msra.mxu0 %v1039
  %3090 = vmatprep.subr.bf16.mxu0 0
  %3091 = vmatpush1.bf16.msra.mxu0 %v1040
  %3092 = vmatprep.subr.bf16.mxu0 0
  %3093 = vmatpush1.bf16.msra.mxu0 0
  %3094 = vmatprep.subr.bf16.mxu0 0
  %3095 = vmatpush1.bf16.msra.mxu0 0
  %3096 = vmatprep.subr.bf16.mxu0 0
  %3097 = vmatpush1.bf16.msra.mxu0 0
  %3098 = vmatprep.subr.bf16.mxu0 0
  %3099 = vmatpush1.bf16.msra.mxu0 0
  %3100 = vmatprep.subr.bf16.mxu0 0
  %3101 = vmatpush1.bf16.msra.mxu0 0
  %3102 = vmatprep.subr.bf16.mxu0 0
  %3103 = vmatpush1.bf16.msra.mxu0 0
  %3104 = vmatprep.subr.bf16.mxu0 0
  %3105 = vmatpush1.bf16.msra.mxu0 0
  %3106 = vmatprep.subr.bf16.mxu0 0
  %3107 = vmatpush1.bf16.msra.mxu0 0
  %3108 = vmatprep.mubr.bf16.mxu0 0
  %3109 = vmatmul.mubr.bf16.gmra.mrb[0].mxu0 %v3060
  %v3110 = vpop.f32.mrb[0].mxu0
  %v3111 = vadd.f32 %v999, %v3110
  %v3112 = vpop.f32.mrb[0].mxu0
  %v3113 = vpop.f32.mrb[0].mxu0
  %v3114 = vadd.f32 %v999, %v3113
  %v3115 = vpop.f32.mrb[0].mxu0
  %3116 = vmatprep.mubr.bf16.mxu0 0
  %3117 = vmatmul.mubr.bf16.gmra.mrb[0].mxu0 %v3061
  %v3118 = vpop.f32.mrb[0].mxu0
  %v3119 = vadd.f32 %v999, %v3118
  %v3120 = vpop.f32.mrb[0].mxu0
  %v3121 = vpop.f32.mrb[0].mxu0
  %v3122 = vadd.f32 %v999, %v3121
  %v3123 = vpop.f32.mrb[0].mxu0
  %3124 = vmatprep.mubr.bf16.mxu0 0
  %3125 = vmatmul.mubr.bf16.gmra.mrb[0].mxu0 %v3062
  %v3126 = vpop.f32.mrb[0].mxu0
  %v3127 = vadd.f32 %v999, %v3126
  %v3128 = vpop.f32.mrb[0].mxu0
  %v3129 = vpop.f32.mrb[0].mxu0
  %v3130 = vadd.f32 %v999, %v3129
  %v3131 = vpop.f32.mrb[0].mxu0
  %3132 = vmatprep.mubr.bf16.mxu0 0
  %3133 = vmatmul.mubr.bf16.gmra.mrb[0].mxu0 %v3063
  %v3134 = vpop.f32.mrb[0].mxu0
  %v3135 = vadd.f32 %v999, %v3134
  %v3136 = vpop.f32.mrb[0].mxu0
  %v3137 = vpop.f32.mrb[0].mxu0
  %v3138 = vadd.f32 %v999, %v3137
  %v3139 = vpop.f32.mrb[0].mxu0
  %3140 = vmatprep.mubr.bf16.mxu0 0
  %3141 = vmatmul.mubr.bf16.gmra.mrb[0].mxu0 %v3064
  %v3142 = vpop.f32.mrb[0].mxu0
  %v3143 = vadd.f32 %v999, %v3142
  %v3144 = vpop.f32.mrb[0].mxu0
  %v3145 = vpop.f32.mrb[0].mxu0
  %v3146 = vadd.f32 %v999, %v3145
  %v3147 = vpop.f32.mrb[0].mxu0
  %3148 = vmatprep.mubr.bf16.mxu0 0
  %3149 = vmatmul.mubr.bf16.gmra.mrb[0].mxu0 %v3065
  %v3150 = vpop.f32.mrb[0].mxu0
  %v3151 = vadd.f32 %v999, %v3150
  %v3152 = vpop.f32.mrb[0].mxu0
  %v3153 = vpop.f32.mrb[0].mxu0
  %v3154 = vadd.f32 %v999, %v3153
  %v3155 = vpop.f32.mrb[0].mxu0
  %3156 = vmatprep.mubr.bf16.mxu0 0
  %3157 = vmatmul.mubr.bf16.gmra.mrb[0].mxu0 %v3066
  %v3158 = vpop.f32.mrb[0].mxu0
  %v3159 = vadd.f32 %v999, %v3158
  %v3160 = vpop.f32.mrb[0].mxu0
  %v3161 = vpop.f32.mrb[0].mxu0
  %v3162 = vadd.f32 %v999, %v3161
  %v3163 = vpop.f32.mrb[0].mxu0
  %3164 = vmatprep.mubr.bf16.mxu0 0
  %3165 = vmatmul.mubr.bf16.gmra.mrb[0].mxu0 %v3067
  %v3166 = vpop.f32.mrb[0].mxu0
  %v3167 = vadd.f32 %v999, %v3166
  %v3168 = vpop.f32.mrb[0].mxu0
  %v3169 = vpop.f32.mrb[0].mxu0
  %v3170 = vadd.f32 %v999, %v3169
  %v3171 = vpop.f32.mrb[0].mxu0
  %3172 = vmatprep.mubr.bf16.mxu0 0
  %3173 = vmatmul.mubr.bf16.gmra.mrb[0].mxu0 %v3068
  %v3174 = vpop.f32.mrb[0].mxu0
  %v3175 = vadd.f32 %v999, %v3174
  %v3176 = vpop.f32.mrb[0].mxu0
  %v3177 = vpop.f32.mrb[0].mxu0
  %v3178 = vadd.f32 %v999, %v3177
  %v3179 = vpop.f32.mrb[0].mxu0
  %3180 = vmatprep.mubr.bf16.mxu0 0
  %3181 = vmatmul.mubr.bf16.gmra.mrb[0].mxu0 %v3069
  %v3182 = vpop.f32.mrb[0].mxu0
  %v3183 = vadd.f32 %v999, %v3182
  %v3184 = vpop.f32.mrb[0].mxu0
  %v3185 = vpop.f32.mrb[0].mxu0
  %v3186 = vadd.f32 %v999, %v3185
  %v3187 = vpop.f32.mrb[0].mxu0
  %3188 = vmatprep.mubr.bf16.mxu0 0
  %3189 = vmatmul.mubr.bf16.gmra.mrb[0].mxu0 %v3070
  %v3190 = vpop.f32.mrb[0].mxu0
  %v3191 = vadd.f32 %v999, %v3190
  %v3192 = vpop.f32.mrb[0].mxu0
  %v3193 = vpop.f32.mrb[0].mxu0
  %v3194 = vadd.f32 %v999, %v3193
  %v3195 = vpop.f32.mrb[0].mxu0
  %3196 = vmatprep.mubr.bf16.mxu0 0
  %3197 = vmatmul.mubr.bf16.gmra.mrb[0].mxu0 %v3071
  %v3198 = vpop.f32.mrb[0].mxu0
  %v3199 = vadd.f32 %v999, %v3198
  %v3200 = vpop.f32.mrb[0].mxu0
  %v3201 = vpop.f32.mrb[0].mxu0
  %v3202 = vadd.f32 %v999, %v3201
  %v3203 = vpop.f32.mrb[0].mxu0
  %3204 = vmatprep.mubr.bf16.mxu0 0
  %3205 = vmatmul.mubr.bf16.gmra.mrb[0].mxu0 %v3072
  %v3206 = vpop.f32.mrb[0].mxu0
  %v3207 = vadd.f32 %v999, %v3206
  %v3208 = vpop.f32.mrb[0].mxu0
  %v3209 = vpop.f32.mrb[0].mxu0
  %v3210 = vadd.f32 %v999, %v3209
  %v3211 = vpop.f32.mrb[0].mxu0
  %3212 = vmatprep.mubr.bf16.mxu0 0
  %3213 = vmatmul.mubr.bf16.gmra.mrb[0].mxu0 %v3073
  %v3214 = vpop.f32.mrb[0].mxu0
  %v3215 = vadd.f32 %v999, %v3214
  %v3216 = vpop.f32.mrb[0].mxu0
  %v3217 = vpop.f32.mrb[0].mxu0
  %v3218 = vadd.f32 %v999, %v3217
  %v3219 = vpop.f32.mrb[0].mxu0
  %3220 = vmatprep.mubr.bf16.mxu0 0
  %3221 = vmatmul.mubr.bf16.gmra.mrb[0].mxu0 %v3074
  %v3222 = vpop.f32.mrb[0].mxu0
  %v3223 = vadd.f32 %v999, %v3222
  %v3224 = vpop.f32.mrb[0].mxu0
  %v3225 = vpop.f32.mrb[0].mxu0
  %v3226 = vadd.f32 %v999, %v3225
  %v3227 = vpop.f32.mrb[0].mxu0
  %3228 = vmatprep.mubr.bf16.mxu0 0
  %3229 = vmatmul.mubr.bf16.gmra.mrb[0].mxu0 %v3075
  %v3230 = vpop.f32.mrb[0].mxu0
  %v3231 = vadd.f32 %v999, %v3230
  %v3232 = vpop.f32.mrb[0].mxu0
  %v3233 = vpop.f32.mrb[0].mxu0
  %v3234 = vadd.f32 %v999, %v3233
  %v3235 = vpop.f32.mrb[0].mxu0
  %3236 = vdwg.mxu0
  %v3237 = vpack.c.bf16 %v3114, %v3111
  %v3238 = vpack.c.bf16 %v3122, %v3119
  %v3239 = vpack.c.bf16 %v3130, %v3127
  %v3240 = vpack.c.bf16 %v3138, %v3135
  %v3241 = vpack.c.bf16 %v3146, %v3143
  %v3242 = vpack.c.bf16 %v3154, %v3151
  %v3243 = vpack.c.bf16 %v3162, %v3159
  %v3244 = vpack.c.bf16 %v3170, %v3167
  %v3245 = vpack.c.bf16 %v3178, %v3175
  %v3246 = vpack.c.bf16 %v3186, %v3183
  %v3247 = vpack.c.bf16 %v3194, %v3191
  %v3248 = vpack.c.bf16 %v3202, %v3199
  %v3249 = vpack.c.bf16 %v3210, %v3207
  %v3250 = vpack.c.bf16 %v3218, %v3215
  %v3251 = vpack.c.bf16 %v3226, %v3223
  %v3252 = vpack.c.bf16 %v3234, %v3231
  %v3269 = vunpack.c.l.b16 %v3237
  %v3270 = vunpack.c.h.b16 %v3237
  %v3271 = vunpack.c.l.b16 %v3238
  %v3272 = vunpack.c.h.b16 %v3238
  %v3273 = vunpack.c.l.b16 %v3239
  %v3274 = vunpack.c.h.b16 %v3239
  %v3275 = vunpack.c.l.b16 %v3240
  %v3276 = vunpack.c.h.b16 %v3240
  %v3277 = vunpack.c.l.b16 %v3241
  %v3278 = vunpack.c.h.b16 %v3241
  %v3279 = vunpack.c.l.b16 %v3242
  %v3280 = vunpack.c.h.b16 %v3242
  %v3281 = vunpack.c.l.b16 %v3243
  %v3282 = vunpack.c.h.b16 %v3243
  %v3283 = vunpack.c.l.b16 %v3244
  %v3284 = vunpack.c.h.b16 %v3244
  %v3285 = vunpack.c.l.b16 %v3245
  %v3286 = vunpack.c.h.b16 %v3245
  %v3287 = vunpack.c.l.b16 %v3246
  %v3288 = vunpack.c.h.b16 %v3246
  %v3289 = vunpack.c.l.b16 %v3247
  %v3290 = vunpack.c.h.b16 %v3247
  %v3291 = vunpack.c.l.b16 %v3248
  %v3292 = vunpack.c.h.b16 %v3248
  %v3293 = vunpack.c.l.b16 %v3249
  %v3294 = vunpack.c.h.b16 %v3249
  %v3295 = vunpack.c.l.b16 %v3250
  %v3296 = vunpack.c.h.b16 %v3250
  %v3297 = vunpack.c.l.b16 %v3251
  %v3298 = vunpack.c.h.b16 %v3251
  %v3299 = vunpack.c.l.b16 %v3252
  %v3300 = vunpack.c.h.b16 %v3252
  %v3301 = vpack.c.b16 %v3269, %v3269
  %v3302 = vpack.c.b16 %v3270, %v3270
  %v3303 = vpack.c.b16 %v3271, %v3271
  %v3304 = vpack.c.b16 %v3272, %v3272
  %v3305 = vpack.c.b16 %v3273, %v3273
  %v3306 = vpack.c.b16 %v3274, %v3274
  %v3307 = vpack.c.b16 %v3275, %v3275
  %v3308 = vpack.c.b16 %v3276, %v3276
  %v3309 = vpack.c.b16 %v3277, %v3277
  %v3310 = vpack.c.b16 %v3278, %v3278
  %v3311 = vpack.c.b16 %v3279, %v3279
  %v3312 = vpack.c.b16 %v3280, %v3280
  %v3313 = vpack.c.b16 %v3281, %v3281
  %v3314 = vpack.c.b16 %v3282, %v3282
  %v3315 = vpack.c.b16 %v3283, %v3283
  %v3316 = vpack.c.b16 %v3284, %v3284
  %v3317 = vpack.c.b16 %v3285, %v3285
  %v3318 = vpack.c.b16 %v3286, %v3286
  %v3319 = vpack.c.b16 %v3287, %v3287
  %v3320 = vpack.c.b16 %v3288, %v3288
  %v3321 = vpack.c.b16 %v3289, %v3289
  %v3322 = vpack.c.b16 %v3290, %v3290
  %v3323 = vpack.c.b16 %v3291, %v3291
  %v3324 = vpack.c.b16 %v3292, %v3292
  %v3325 = vpack.c.b16 %v3293, %v3293
  %v3326 = vpack.c.b16 %v3294, %v3294
  %v3327 = vpack.c.b16 %v3295, %v3295
  %v3328 = vpack.c.b16 %v3296, %v3296
  %v3329 = vpack.c.b16 %v3297, %v3297
  %v3330 = vpack.c.b16 %v3298, %v3298
  %v3331 = vpack.c.b16 %v3299, %v3299
  %v3332 = vpack.c.b16 %v3300, %v3300
  %s3365 = scalar_lea.vmem %s6, 16
  %3366 = vst [vmem:[%s3365] sm:$0xf] %v3301
  %3367 = vst [vmem:[%s3365 + $0x4] sm:$0xf] %v3302
  %3368 = vst [vmem:[%s3365 + $0x20] sm:$0xf] %v3303
  %3369 = vst [vmem:[%s3365 + $0x24] sm:$0xf] %v3304
  %3370 = vst [vmem:[%s3365 + $0x40] sm:$0xf] %v3305
  %3371 = vst [vmem:[%s3365 + $0x44] sm:$0xf] %v3306
  %3372 = vst [vmem:[%s3365 + $0x60] sm:$0xf] %v3307
  %3373 = vst [vmem:[%s3365 + $0x64] sm:$0xf] %v3308
  %3374 = vst [vmem:[%s3365 + $0x80] sm:$0xf] %v3309
  %3375 = vst [vmem:[%s3365 + $0x84] sm:$0xf] %v3310
  %3376 = vst [vmem:[%s3365 + $0xa0] sm:$0xf] %v3311
  %3377 = vst [vmem:[%s3365 + $0xa4] sm:$0xf] %v3312
  %3378 = vst [vmem:[%s3365 + $0xc0] sm:$0xf] %v3313
  %3379 = vst [vmem:[%s3365 + $0xc4] sm:$0xf] %v3314
  %3380 = vst [vmem:[%s3365 + $0xe0] sm:$0xf] %v3315
  %3381 = vst [vmem:[%s3365 + $0xe4] sm:$0xf] %v3316
  %3382 = vst [vmem:[%s3365 + $0x100] sm:$0xf] %v3317
  %3383 = vst [vmem:[%s3365 + $0x104] sm:$0xf] %v3318
  %3384 = vst [vmem:[%s3365 + $0x120] sm:$0xf] %v3319
  %3385 = vst [vmem:[%s3365 + $0x124] sm:$0xf] %v3320
  %3386 = vst [vmem:[%s3365 + $0x140] sm:$0xf] %v3321
  %3387 = vst [vmem:[%s3365 + $0x144] sm:$0xf] %v3322
  %3388 = vst [vmem:[%s3365 + $0x160] sm:$0xf] %v3323
  %3389 = vst [vmem:[%s3365 + $0x164] sm:$0xf] %v3324
  %3390 = vst [vmem:[%s3365 + $0x180] sm:$0xf] %v3325
  %3391 = vst [vmem:[%s3365 + $0x184] sm:$0xf] %v3326
  %3392 = vst [vmem:[%s3365 + $0x1a0] sm:$0xf] %v3327
  %3393 = vst [vmem:[%s3365 + $0x1a4] sm:$0xf] %v3328
  %3394 = vst [vmem:[%s3365 + $0x1c0] sm:$0xf] %v3329
  %3395 = vst [vmem:[%s3365 + $0x1c4] sm:$0xf] %v3330
  %3396 = vst [vmem:[%s3365 + $0x1e0] sm:$0xf] %v3331
  %3397 = vst [vmem:[%s3365 + $0x1e4] sm:$0xf] %v3332
  %s3398 = scalar_lea.vmem %s1, 24
  %v3399 = vld [vmem:[%s3398] sm:$0xf]
  %v3400 = vld [vmem:[%s3398 + $0x4] sm:$0xf]
  %v3401 = vld [vmem:[%s3398 + $0x20] sm:$0xf]
  %v3402 = vld [vmem:[%s3398 + $0x24] sm:$0xf]
  %v3403 = vld [vmem:[%s3398 + $0x40] sm:$0xf]
  %v3404 = vld [vmem:[%s3398 + $0x44] sm:$0xf]
  %v3405 = vld [vmem:[%s3398 + $0x60] sm:$0xf]
  %v3406 = vld [vmem:[%s3398 + $0x64] sm:$0xf]
  %v3407 = vld [vmem:[%s3398 + $0x80] sm:$0xf]
  %v3408 = vld [vmem:[%s3398 + $0x84] sm:$0xf]
  %v3409 = vld [vmem:[%s3398 + $0xa0] sm:$0xf]
  %v3410 = vld [vmem:[%s3398 + $0xa4] sm:$0xf]
  %v3411 = vld [vmem:[%s3398 + $0xc0] sm:$0xf]
  %v3412 = vld [vmem:[%s3398 + $0xc4] sm:$0xf]
  %v3413 = vld [vmem:[%s3398 + $0xe0] sm:$0xf]
  %v3414 = vld [vmem:[%s3398 + $0xe4] sm:$0xf]
  %v3415 = vld [vmem:[%s3398 + $0x100] sm:$0xf]
  %v3416 = vld [vmem:[%s3398 + $0x104] sm:$0xf]
  %v3417 = vld [vmem:[%s3398 + $0x120] sm:$0xf]
  %v3418 = vld [vmem:[%s3398 + $0x124] sm:$0xf]
  %v3419 = vld [vmem:[%s3398 + $0x140] sm:$0xf]
  %v3420 = vld [vmem:[%s3398 + $0x144] sm:$0xf]
  %v3421 = vld [vmem:[%s3398 + $0x160] sm:$0xf]
  %v3422 = vld [vmem:[%s3398 + $0x164] sm:$0xf]
  %v3423 = vld [vmem:[%s3398 + $0x180] sm:$0xf]
  %v3424 = vld [vmem:[%s3398 + $0x184] sm:$0xf]
  %v3425 = vld [vmem:[%s3398 + $0x1a0] sm:$0xf]
  %v3426 = vld [vmem:[%s3398 + $0x1a4] sm:$0xf]
  %v3427 = vld [vmem:[%s3398 + $0x1c0] sm:$0xf]
  %v3428 = vld [vmem:[%s3398 + $0x1c4] sm:$0xf]
  %v3429 = vld [vmem:[%s3398 + $0x1e0] sm:$0xf]
  %v3430 = vld [vmem:[%s3398 + $0x1e4] sm:$0xf]
  %v3463 = vunpack.c.l.b16 %v3399
  %v3464 = vunpack.c.l.b16 %v3400
  %v3465 = vunpack.c.l.b16 %v3401
  %v3466 = vunpack.c.l.b16 %v3402
  %v3467 = vunpack.c.l.b16 %v3403
  %v3468 = vunpack.c.l.b16 %v3404
  %v3469 = vunpack.c.l.b16 %v3405
  %v3470 = vunpack.c.l.b16 %v3406
  %v3471 = vunpack.c.l.b16 %v3407
  %v3472 = vunpack.c.l.b16 %v3408
  %v3473 = vunpack.c.l.b16 %v3409
  %v3474 = vunpack.c.l.b16 %v3410
  %v3475 = vunpack.c.l.b16 %v3411
  %v3476 = vunpack.c.l.b16 %v3412
  %v3477 = vunpack.c.l.b16 %v3413
  %v3478 = vunpack.c.l.b16 %v3414
  %v3479 = vunpack.c.l.b16 %v3415
  %v3480 = vunpack.c.l.b16 %v3416
  %v3481 = vunpack.c.l.b16 %v3417
  %v3482 = vunpack.c.l.b16 %v3418
  %v3483 = vunpack.c.l.b16 %v3419
  %v3484 = vunpack.c.l.b16 %v3420
  %v3485 = vunpack.c.l.b16 %v3421
  %v3486 = vunpack.c.l.b16 %v3422
  %v3487 = vunpack.c.l.b16 %v3423
  %v3488 = vunpack.c.l.b16 %v3424
  %v3489 = vunpack.c.l.b16 %v3425
  %v3490 = vunpack.c.l.b16 %v3426
  %v3491 = vunpack.c.l.b16 %v3427
  %v3492 = vunpack.c.l.b16 %v3428
  %v3493 = vunpack.c.l.b16 %v3429
  %v3494 = vunpack.c.l.b16 %v3430
  %v3495 = vpack.c.b16 %v3464, %v3463
  %v3496 = vpack.c.b16 %v3466, %v3465
  %v3497 = vpack.c.b16 %v3468, %v3467
  %v3498 = vpack.c.b16 %v3470, %v3469
  %v3499 = vpack.c.b16 %v3472, %v3471
  %v3500 = vpack.c.b16 %v3474, %v3473
  %v3501 = vpack.c.b16 %v3476, %v3475
  %v3502 = vpack.c.b16 %v3478, %v3477
  %v3503 = vpack.c.b16 %v3480, %v3479
  %v3504 = vpack.c.b16 %v3482, %v3481
  %v3505 = vpack.c.b16 %v3484, %v3483
  %v3506 = vpack.c.b16 %v3486, %v3485
  %v3507 = vpack.c.b16 %v3488, %v3487
  %v3508 = vpack.c.b16 %v3490, %v3489
  %v3509 = vpack.c.b16 %v3492, %v3491
  %v3510 = vpack.c.b16 %v3494, %v3493
  %3527 = vmatprep.subr.bf16.mxu0 0
  %3528 = vmatpush1.bf16.msra.mxu0 %v3495
  %3529 = vmatprep.subr.bf16.mxu0 0
  %3530 = vmatpush1.bf16.msra.mxu0 %v3496
  %3531 = vmatprep.subr.bf16.mxu0 0
  %3532 = vmatpush1.bf16.msra.mxu0 %v3497
  %3533 = vmatprep.subr.bf16.mxu0 0
  %3534 = vmatpush1.bf16.msra.mxu0 %v3498
  %3535 = vmatprep.subr.bf16.mxu0 0
  %3536 = vmatpush1.bf16.msra.mxu0 %v3499
  %3537 = vmatprep.subr.bf16.mxu0 0
  %3538 = vmatpush1.bf16.msra.mxu0 %v3500
  %3539 = vmatprep.subr.bf16.mxu0 0
  %3540 = vmatpush1.bf16.msra.mxu0 %v3501
  %3541 = vmatprep.subr.bf16.mxu0 0
  %3542 = vmatpush1.bf16.msra.mxu0 %v3502
  %3543 = vmatprep.subr.bf16.mxu0 0
  %3544 = vmatpush1.bf16.msra.mxu0 %v3503
  %3545 = vmatprep.subr.bf16.mxu0 0
  %3546 = vmatpush1.bf16.msra.mxu0 %v3504
  %3547 = vmatprep.subr.bf16.mxu0 0
  %3548 = vmatpush1.bf16.msra.mxu0 %v3505
  %3549 = vmatprep.subr.bf16.mxu0 0
  %3550 = vmatpush1.bf16.msra.mxu0 %v3506
  %3551 = vmatprep.subr.bf16.mxu0 0
  %3552 = vmatpush1.bf16.msra.mxu0 %v3507
  %3553 = vmatprep.subr.bf16.mxu0 0
  %3554 = vmatpush1.bf16.msra.mxu0 %v3508
  %3555 = vmatprep.subr.bf16.mxu0 0
  %3556 = vmatpush1.bf16.msra.mxu0 %v3509
  %3557 = vmatprep.subr.bf16.mxu0 0
  %3558 = vmatpush1.bf16.msra.mxu0 %v3510
  %3559 = vmatprep.mubr.bf16.mxu0 %v219
  %3560 = vmatmul.mubr.bf16.gmra.mrb[0].mxu0 %v218
  %v3561 = vpop.f32.mrb[0].mxu0
  %v3562 = vadd.f32 0.0, %v3561
  %v3563 = vpop.f32.mrb[0].mxu0
  %v3564 = vpop.f32.mrb[0].mxu0
  %v3565 = vadd.f32 0.0, %v3564
  %v3566 = vpop.f32.mrb[0].mxu0
  %3567 = vmatprep.mubr.bf16.mxu0 %v221
  %3568 = vmatmul.mubr.bf16.gmra.mrb[0].mxu0 %v220
  %v3569 = vpop.f32.mrb[0].mxu0
  %v3570 = vadd.f32 0.0, %v3569
  %v3571 = vpop.f32.mrb[0].mxu0
  %v3572 = vpop.f32.mrb[0].mxu0
  %v3573 = vadd.f32 0.0, %v3572
  %v3574 = vpop.f32.mrb[0].mxu0
  %3575 = vmatprep.mubr.bf16.mxu0 %v223
  %3576 = vmatmul.mubr.bf16.gmra.mrb[0].mxu0 %v222
  %v3577 = vpop.f32.mrb[0].mxu0
  %v3578 = vadd.f32 0.0, %v3577
  %v3579 = vpop.f32.mrb[0].mxu0
  %v3580 = vpop.f32.mrb[0].mxu0
  %v3581 = vadd.f32 0.0, %v3580
  %v3582 = vpop.f32.mrb[0].mxu0
  %3583 = vmatprep.mubr.bf16.mxu0 %v225
  %3584 = vmatmul.mubr.bf16.gmra.mrb[0].mxu0 %v224
  %v3585 = vpop.f32.mrb[0].mxu0
  %v3586 = vadd.f32 0.0, %v3585
  %v3587 = vpop.f32.mrb[0].mxu0
  %v3588 = vpop.f32.mrb[0].mxu0
  %v3589 = vadd.f32 0.0, %v3588
  %v3590 = vpop.f32.mrb[0].mxu0
  %3591 = vmatprep.mubr.bf16.mxu0 %v227
  %3592 = vmatmul.mubr.bf16.gmra.mrb[0].mxu0 %v226
  %v3593 = vpop.f32.mrb[0].mxu0
  %v3594 = vadd.f32 0.0, %v3593
  %v3595 = vpop.f32.mrb[0].mxu0
  %v3596 = vpop.f32.mrb[0].mxu0
  %v3597 = vadd.f32 0.0, %v3596
  %v3598 = vpop.f32.mrb[0].mxu0
  %3599 = vmatprep.mubr.bf16.mxu0 %v229
  %3600 = vmatmul.mubr.bf16.gmra.mrb[0].mxu0 %v228
  %v3601 = vpop.f32.mrb[0].mxu0
  %v3602 = vadd.f32 0.0, %v3601
  %v3603 = vpop.f32.mrb[0].mxu0
  %v3604 = vpop.f32.mrb[0].mxu0
  %v3605 = vadd.f32 0.0, %v3604
  %v3606 = vpop.f32.mrb[0].mxu0
  %3607 = vmatprep.mubr.bf16.mxu0 %v231
  %3608 = vmatmul.mubr.bf16.gmra.mrb[0].mxu0 %v230
  %v3609 = vpop.f32.mrb[0].mxu0
  %v3610 = vadd.f32 0.0, %v3609
  %v3611 = vpop.f32.mrb[0].mxu0
  %v3612 = vpop.f32.mrb[0].mxu0
  %v3613 = vadd.f32 0.0, %v3612
  %v3614 = vpop.f32.mrb[0].mxu0
  %3615 = vmatprep.mubr.bf16.mxu0 %v233
  %3616 = vmatmul.mubr.bf16.gmra.mrb[0].mxu0 %v232
  %v3617 = vpop.f32.mrb[0].mxu0
  %v3618 = vadd.f32 0.0, %v3617
  %v3619 = vpop.f32.mrb[0].mxu0
  %v3620 = vpop.f32.mrb[0].mxu0
  %v3621 = vadd.f32 0.0, %v3620
  %v3622 = vpop.f32.mrb[0].mxu0
  %3623 = vmatprep.mubr.bf16.mxu0 %v235
  %3624 = vmatmul.mubr.bf16.gmra.mrb[0].mxu0 %v234
  %v3625 = vpop.f32.mrb[0].mxu0
  %v3626 = vadd.f32 0.0, %v3625
  %v3627 = vpop.f32.mrb[0].mxu0
  %v3628 = vpop.f32.mrb[0].mxu0
  %v3629 = vadd.f32 0.0, %v3628
  %v3630 = vpop.f32.mrb[0].mxu0
  %3631 = vmatprep.mubr.bf16.mxu0 %v237
  %3632 = vmatmul.mubr.bf16.gmra.mrb[0].mxu0 %v236
  %v3633 = vpop.f32.mrb[0].mxu0
  %v3634 = vadd.f32 0.0, %v3633
  %v3635 = vpop.f32.mrb[0].mxu0
  %v3636 = vpop.f32.mrb[0].mxu0
  %v3637 = vadd.f32 0.0, %v3636
  %v3638 = vpop.f32.mrb[0].mxu0
  %3639 = vmatprep.mubr.bf16.mxu0 %v239
  %3640 = vmatmul.mubr.bf16.gmra.mrb[0].mxu0 %v238
  %v3641 = vpop.f32.mrb[0].mxu0
  %v3642 = vadd.f32 0.0, %v3641
  %v3643 = vpop.f32.mrb[0].mxu0
  %v3644 = vpop.f32.mrb[0].mxu0
  %v3645 = vadd.f32 0.0, %v3644
  %v3646 = vpop.f32.mrb[0].mxu0
  %3647 = vmatprep.mubr.bf16.mxu0 %v241
  %3648 = vmatmul.mubr.bf16.gmra.mrb[0].mxu0 %v240
  %v3649 = vpop.f32.mrb[0].mxu0
  %v3650 = vadd.f32 0.0, %v3649
  %v3651 = vpop.f32.mrb[0].mxu0
  %v3652 = vpop.f32.mrb[0].mxu0
  %v3653 = vadd.f32 0.0, %v3652
  %v3654 = vpop.f32.mrb[0].mxu0
  %3655 = vmatprep.mubr.bf16.mxu0 %v243
  %3656 = vmatmul.mubr.bf16.gmra.mrb[0].mxu0 %v242
  %v3657 = vpop.f32.mrb[0].mxu0
  %v3658 = vadd.f32 0.0, %v3657
  %v3659 = vpop.f32.mrb[0].mxu0
  %v3660 = vpop.f32.mrb[0].mxu0
  %v3661 = vadd.f32 0.0, %v3660
  %v3662 = vpop.f32.mrb[0].mxu0
  %3663 = vmatprep.mubr.bf16.mxu0 %v245
  %3664 = vmatmul.mubr.bf16.gmra.mrb[0].mxu0 %v244
  %v3665 = vpop.f32.mrb[0].mxu0
  %v3666 = vadd.f32 0.0, %v3665
  %v3667 = vpop.f32.mrb[0].mxu0
  %v3668 = vpop.f32.mrb[0].mxu0
  %v3669 = vadd.f32 0.0, %v3668
  %v3670 = vpop.f32.mrb[0].mxu0
  %3671 = vmatprep.mubr.bf16.mxu0 %v247
  %3672 = vmatmul.mubr.bf16.gmra.mrb[0].mxu0 %v246
  %v3673 = vpop.f32.mrb[0].mxu0
  %v3674 = vadd.f32 0.0, %v3673
  %v3675 = vpop.f32.mrb[0].mxu0
  %v3676 = vpop.f32.mrb[0].mxu0
  %v3677 = vadd.f32 0.0, %v3676
  %v3678 = vpop.f32.mrb[0].mxu0
  %3679 = vmatprep.mubr.bf16.mxu0 %v249
  %3680 = vmatmul.mubr.bf16.gmra.mrb[0].mxu0 %v248
  %v3681 = vpop.f32.mrb[0].mxu0
  %v3682 = vadd.f32 0.0, %v3681
  %v3683 = vpop.f32.mrb[0].mxu0
  %v3684 = vpop.f32.mrb[0].mxu0
  %v3685 = vadd.f32 0.0, %v3684
  %v3686 = vpop.f32.mrb[0].mxu0
  %3687 = vdwg.mxu0
  %v3688 = vpack.c.bf16 %v3565, %v3562
  %v3689 = vpack.c.bf16 %v3573, %v3570
  %v3690 = vpack.c.bf16 %v3581, %v3578
  %v3691 = vpack.c.bf16 %v3589, %v3586
  %v3692 = vpack.c.bf16 %v3597, %v3594
  %v3693 = vpack.c.bf16 %v3605, %v3602
  %v3694 = vpack.c.bf16 %v3613, %v3610
  %v3695 = vpack.c.bf16 %v3621, %v3618
  %v3696 = vpack.c.bf16 %v3629, %v3626
  %v3697 = vpack.c.bf16 %v3637, %v3634
  %v3698 = vpack.c.bf16 %v3645, %v3642
  %v3699 = vpack.c.bf16 %v3653, %v3650
  %v3700 = vpack.c.bf16 %v3661, %v3658
  %v3701 = vpack.c.bf16 %v3669, %v3666
  %v3702 = vpack.c.bf16 %v3677, %v3674
  %v3703 = vpack.c.bf16 %v3685, %v3682
  %3704 = vmatprep.subr.bf16.mxu0 0
  %3705 = vmatpush1.bf16.msra.mxu0 %v593
  %3706 = vmatprep.subr.bf16.mxu0 0
  %3707 = vmatpush1.bf16.msra.mxu0 %v594
  %3708 = vmatprep.subr.bf16.mxu0 0
  %3709 = vmatpush1.bf16.msra.mxu0 %v595
  %3710 = vmatprep.subr.bf16.mxu0 0
  %3711 = vmatpush1.bf16.msra.mxu0 %v596
  %3712 = vmatprep.subr.bf16.mxu0 0
  %3713 = vmatpush1.bf16.msra.mxu0 %v597
  %3714 = vmatprep.subr.bf16.mxu0 0
  %3715 = vmatpush1.bf16.msra.mxu0 %v598
  %3716 = vmatprep.subr.bf16.mxu0 0
  %3717 = vmatpush1.bf16.msra.mxu0 %v599
  %3718 = vmatprep.subr.bf16.mxu0 0
  %3719 = vmatpush1.bf16.msra.mxu0 %v600
  %3720 = vmatprep.subr.bf16.mxu0 0
  %3721 = vmatpush1.bf16.msra.mxu0 0
  %3722 = vmatprep.subr.bf16.mxu0 0
  %3723 = vmatpush1.bf16.msra.mxu0 0
  %3724 = vmatprep.subr.bf16.mxu0 0
  %3725 = vmatpush1.bf16.msra.mxu0 0
  %3726 = vmatprep.subr.bf16.mxu0 0
  %3727 = vmatpush1.bf16.msra.mxu0 0
  %3728 = vmatprep.subr.bf16.mxu0 0
  %3729 = vmatpush1.bf16.msra.mxu0 0
  %3730 = vmatprep.subr.bf16.mxu0 0
  %3731 = vmatpush1.bf16.msra.mxu0 0
  %3732 = vmatprep.subr.bf16.mxu0 0
  %3733 = vmatpush1.bf16.msra.mxu0 0
  %3734 = vmatprep.subr.bf16.mxu0 0
  %3735 = vmatpush1.bf16.msra.mxu0 0
  %3736 = vmatprep.mubr.bf16.mxu0 0
  %3737 = vmatmul.mubr.bf16.gmra.mrb[0].mxu0 %v3688
  %v3738 = vpop.f32.mrb[0].mxu0
  %v3739 = vadd.f32 %v559, %v3738
  %v3740 = vpop.f32.mrb[0].mxu0
  %v3741 = vpop.f32.mrb[0].mxu0
  %v3742 = vadd.f32 %v559, %v3741
  %v3743 = vpop.f32.mrb[0].mxu0
  %3744 = vmatprep.mubr.bf16.mxu0 0
  %3745 = vmatmul.mubr.bf16.gmra.mrb[0].mxu0 %v3689
  %v3746 = vpop.f32.mrb[0].mxu0
  %v3747 = vadd.f32 %v559, %v3746
  %v3748 = vpop.f32.mrb[0].mxu0
  %v3749 = vpop.f32.mrb[0].mxu0
  %v3750 = vadd.f32 %v559, %v3749
  %v3751 = vpop.f32.mrb[0].mxu0
  %3752 = vmatprep.mubr.bf16.mxu0 0
  %3753 = vmatmul.mubr.bf16.gmra.mrb[0].mxu0 %v3690
  %v3754 = vpop.f32.mrb[0].mxu0
  %v3755 = vadd.f32 %v559, %v3754
  %v3756 = vpop.f32.mrb[0].mxu0
  %v3757 = vpop.f32.mrb[0].mxu0
  %v3758 = vadd.f32 %v559, %v3757
  %v3759 = vpop.f32.mrb[0].mxu0
  %3760 = vmatprep.mubr.bf16.mxu0 0
  %3761 = vmatmul.mubr.bf16.gmra.mrb[0].mxu0 %v3691
  %v3762 = vpop.f32.mrb[0].mxu0
  %v3763 = vadd.f32 %v559, %v3762
  %v3764 = vpop.f32.mrb[0].mxu0
  %v3765 = vpop.f32.mrb[0].mxu0
  %v3766 = vadd.f32 %v559, %v3765
  %v3767 = vpop.f32.mrb[0].mxu0
  %3768 = vmatprep.mubr.bf16.mxu0 0
  %3769 = vmatmul.mubr.bf16.gmra.mrb[0].mxu0 %v3692
  %v3770 = vpop.f32.mrb[0].mxu0
  %v3771 = vadd.f32 %v559, %v3770
  %v3772 = vpop.f32.mrb[0].mxu0
  %v3773 = vpop.f32.mrb[0].mxu0
  %v3774 = vadd.f32 %v559, %v3773
  %v3775 = vpop.f32.mrb[0].mxu0
  %3776 = vmatprep.mubr.bf16.mxu0 0
  %3777 = vmatmul.mubr.bf16.gmra.mrb[0].mxu0 %v3693
  %v3778 = vpop.f32.mrb[0].mxu0
  %v3779 = vadd.f32 %v559, %v3778
  %v3780 = vpop.f32.mrb[0].mxu0
  %v3781 = vpop.f32.mrb[0].mxu0
  %v3782 = vadd.f32 %v559, %v3781
  %v3783 = vpop.f32.mrb[0].mxu0
  %3784 = vmatprep.mubr.bf16.mxu0 0
  %3785 = vmatmul.mubr.bf16.gmra.mrb[0].mxu0 %v3694
  %v3786 = vpop.f32.mrb[0].mxu0
  %v3787 = vadd.f32 %v559, %v3786
  %v3788 = vpop.f32.mrb[0].mxu0
  %v3789 = vpop.f32.mrb[0].mxu0
  %v3790 = vadd.f32 %v559, %v3789
  %v3791 = vpop.f32.mrb[0].mxu0
  %3792 = vmatprep.mubr.bf16.mxu0 0
  %3793 = vmatmul.mubr.bf16.gmra.mrb[0].mxu0 %v3695
  %v3794 = vpop.f32.mrb[0].mxu0
  %v3795 = vadd.f32 %v559, %v3794
  %v3796 = vpop.f32.mrb[0].mxu0
  %v3797 = vpop.f32.mrb[0].mxu0
  %v3798 = vadd.f32 %v559, %v3797
  %v3799 = vpop.f32.mrb[0].mxu0
  %3800 = vmatprep.mubr.bf16.mxu0 0
  %3801 = vmatmul.mubr.bf16.gmra.mrb[0].mxu0 %v3696
  %v3802 = vpop.f32.mrb[0].mxu0
  %v3803 = vadd.f32 %v559, %v3802
  %v3804 = vpop.f32.mrb[0].mxu0
  %v3805 = vpop.f32.mrb[0].mxu0
  %v3806 = vadd.f32 %v559, %v3805
  %v3807 = vpop.f32.mrb[0].mxu0
  %3808 = vmatprep.mubr.bf16.mxu0 0
  %3809 = vmatmul.mubr.bf16.gmra.mrb[0].mxu0 %v3697
  %v3810 = vpop.f32.mrb[0].mxu0
  %v3811 = vadd.f32 %v559, %v3810
  %v3812 = vpop.f32.mrb[0].mxu0
  %v3813 = vpop.f32.mrb[0].mxu0
  %v3814 = vadd.f32 %v559, %v3813
  %v3815 = vpop.f32.mrb[0].mxu0
  %3816 = vmatprep.mubr.bf16.mxu0 0
  %3817 = vmatmul.mubr.bf16.gmra.mrb[0].mxu0 %v3698
  %v3818 = vpop.f32.mrb[0].mxu0
  %v3819 = vadd.f32 %v559, %v3818
  %v3820 = vpop.f32.mrb[0].mxu0
  %v3821 = vpop.f32.mrb[0].mxu0
  %v3822 = vadd.f32 %v559, %v3821
  %v3823 = vpop.f32.mrb[0].mxu0
  %3824 = vmatprep.mubr.bf16.mxu0 0
  %3825 = vmatmul.mubr.bf16.gmra.mrb[0].mxu0 %v3699
  %v3826 = vpop.f32.mrb[0].mxu0
  %v3827 = vadd.f32 %v559, %v3826
  %v3828 = vpop.f32.mrb[0].mxu0
  %v3829 = vpop.f32.mrb[0].mxu0
  %v3830 = vadd.f32 %v559, %v3829
  %v3831 = vpop.f32.mrb[0].mxu0
  %3832 = vmatprep.mubr.bf16.mxu0 0
  %3833 = vmatmul.mubr.bf16.gmra.mrb[0].mxu0 %v3700
  %v3834 = vpop.f32.mrb[0].mxu0
  %v3835 = vadd.f32 %v559, %v3834
  %v3836 = vpop.f32.mrb[0].mxu0
  %v3837 = vpop.f32.mrb[0].mxu0
  %v3838 = vadd.f32 %v559, %v3837
  %v3839 = vpop.f32.mrb[0].mxu0
  %3840 = vmatprep.mubr.bf16.mxu0 0
  %3841 = vmatmul.mubr.bf16.gmra.mrb[0].mxu0 %v3701
  %v3842 = vpop.f32.mrb[0].mxu0
  %v3843 = vadd.f32 %v559, %v3842
  %v3844 = vpop.f32.mrb[0].mxu0
  %v3845 = vpop.f32.mrb[0].mxu0
  %v3846 = vadd.f32 %v559, %v3845
  %v3847 = vpop.f32.mrb[0].mxu0
  %3848 = vmatprep.mubr.bf16.mxu0 0
  %3849 = vmatmul.mubr.bf16.gmra.mrb[0].mxu0 %v3702
  %v3850 = vpop.f32.mrb[0].mxu0
  %v3851 = vadd.f32 %v559, %v3850
  %v3852 = vpop.f32.mrb[0].mxu0
  %v3853 = vpop.f32.mrb[0].mxu0
  %v3854 = vadd.f32 %v559, %v3853
  %v3855 = vpop.f32.mrb[0].mxu0
  %3856 = vmatprep.mubr.bf16.mxu0 0
  %3857 = vmatmul.mubr.bf16.gmra.mrb[0].mxu0 %v3703
  %v3858 = vpop.f32.mrb[0].mxu0
  %v3859 = vadd.f32 %v559, %v3858
  %v3860 = vpop.f32.mrb[0].mxu0
  %v3861 = vpop.f32.mrb[0].mxu0
  %v3862 = vadd.f32 %v559, %v3861
  %v3863 = vpop.f32.mrb[0].mxu0
  %3864 = vdwg.mxu0
  %v3865 = vmax.f32 %v3739, 0.0
  %v3866 = vmax.f32 %v3742, 0.0
  %v3867 = vmax.f32 %v3747, 0.0
  %v3868 = vmax.f32 %v3750, 0.0
  %v3869 = vmax.f32 %v3755, 0.0
  %v3870 = vmax.f32 %v3758, 0.0
  %v3871 = vmax.f32 %v3763, 0.0
  %v3872 = vmax.f32 %v3766, 0.0
  %v3873 = vmax.f32 %v3771, 0.0
  %v3874 = vmax.f32 %v3774, 0.0
  %v3875 = vmax.f32 %v3779, 0.0
  %v3876 = vmax.f32 %v3782, 0.0
  %v3877 = vmax.f32 %v3787, 0.0
  %v3878 = vmax.f32 %v3790, 0.0
  %v3879 = vmax.f32 %v3795, 0.0
  %v3880 = vmax.f32 %v3798, 0.0
  %v3881 = vmax.f32 %v3803, 0.0
  %v3882 = vmax.f32 %v3806, 0.0
  %v3883 = vmax.f32 %v3811, 0.0
  %v3884 = vmax.f32 %v3814, 0.0
  %v3885 = vmax.f32 %v3819, 0.0
  %v3886 = vmax.f32 %v3822, 0.0
  %v3887 = vmax.f32 %v3827, 0.0
  %v3888 = vmax.f32 %v3830, 0.0
  %v3889 = vmax.f32 %v3835, 0.0
  %v3890 = vmax.f32 %v3838, 0.0
  %v3891 = vmax.f32 %v3843, 0.0
  %v3892 = vmax.f32 %v3846, 0.0
  %v3893 = vmax.f32 %v3851, 0.0
  %v3894 = vmax.f32 %v3854, 0.0
  %v3895 = vmax.f32 %v3859, 0.0
  %v3896 = vmax.f32 %v3862, 0.0
  %v3897 = vpack.c.bf16 %v3866, %v3865
  %v3898 = vpack.c.bf16 %v3868, %v3867
  %v3899 = vpack.c.bf16 %v3870, %v3869
  %v3900 = vpack.c.bf16 %v3872, %v3871
  %v3901 = vpack.c.bf16 %v3874, %v3873
  %v3902 = vpack.c.bf16 %v3876, %v3875
  %v3903 = vpack.c.bf16 %v3878, %v3877
  %v3904 = vpack.c.bf16 %v3880, %v3879
  %v3905 = vpack.c.bf16 %v3882, %v3881
  %v3906 = vpack.c.bf16 %v3884, %v3883
  %v3907 = vpack.c.bf16 %v3886, %v3885
  %v3908 = vpack.c.bf16 %v3888, %v3887
  %v3909 = vpack.c.bf16 %v3890, %v3889
  %v3910 = vpack.c.bf16 %v3892, %v3891
  %v3911 = vpack.c.bf16 %v3894, %v3893
  %v3912 = vpack.c.bf16 %v3896, %v3895
  %3913 = vmatprep.subr.bf16.mxu0 0
  %3914 = vmatpush1.bf16.msra.mxu0 %v3897
  %3915 = vmatprep.subr.bf16.mxu0 0
  %3916 = vmatpush1.bf16.msra.mxu0 %v3898
  %3917 = vmatprep.subr.bf16.mxu0 0
  %3918 = vmatpush1.bf16.msra.mxu0 %v3899
  %3919 = vmatprep.subr.bf16.mxu0 0
  %3920 = vmatpush1.bf16.msra.mxu0 %v3900
  %3921 = vmatprep.subr.bf16.mxu0 0
  %3922 = vmatpush1.bf16.msra.mxu0 %v3901
  %3923 = vmatprep.subr.bf16.mxu0 0
  %3924 = vmatpush1.bf16.msra.mxu0 %v3902
  %3925 = vmatprep.subr.bf16.mxu0 0
  %3926 = vmatpush1.bf16.msra.mxu0 %v3903
  %3927 = vmatprep.subr.bf16.mxu0 0
  %3928 = vmatpush1.bf16.msra.mxu0 %v3904
  %3929 = vmatprep.subr.bf16.mxu0 0
  %3930 = vmatpush1.bf16.msra.mxu0 %v3905
  %3931 = vmatprep.subr.bf16.mxu0 0
  %3932 = vmatpush1.bf16.msra.mxu0 %v3906
  %3933 = vmatprep.subr.bf16.mxu0 0
  %3934 = vmatpush1.bf16.msra.mxu0 %v3907
  %3935 = vmatprep.subr.bf16.mxu0 0
  %3936 = vmatpush1.bf16.msra.mxu0 %v3908
  %3937 = vmatprep.subr.bf16.mxu0 0
  %3938 = vmatpush1.bf16.msra.mxu0 %v3909
  %3939 = vmatprep.subr.bf16.mxu0 0
  %3940 = vmatpush1.bf16.msra.mxu0 %v3910
  %3941 = vmatprep.subr.bf16.mxu0 0
  %3942 = vmatpush1.bf16.msra.mxu0 %v3911
  %3943 = vmatprep.subr.bf16.mxu0 0
  %3944 = vmatpush1.bf16.msra.mxu0 %v3912
  %3945 = vmatprep.mubr.bf16.mxu0 %v219
  %3946 = vmatmul.mubr.bf16.gmra.mrb[0].mxu0 %v218
  %v3947 = vpop.f32.mrb[0].mxu0
  %v3948 = vadd.f32 0.0, %v3947
  %v3949 = vpop.f32.mrb[0].mxu0
  %v3950 = vpop.f32.mrb[0].mxu0
  %v3951 = vadd.f32 0.0, %v3950
  %v3952 = vpop.f32.mrb[0].mxu0
  %3953 = vmatprep.mubr.bf16.mxu0 %v221
  %3954 = vmatmul.mubr.bf16.gmra.mrb[0].mxu0 %v220
  %v3955 = vpop.f32.mrb[0].mxu0
  %v3956 = vadd.f32 0.0, %v3955
  %v3957 = vpop.f32.mrb[0].mxu0
  %v3958 = vpop.f32.mrb[0].mxu0
  %v3959 = vadd.f32 0.0, %v3958
  %v3960 = vpop.f32.mrb[0].mxu0
  %3961 = vmatprep.mubr.bf16.mxu0 %v223
  %3962 = vmatmul.mubr.bf16.gmra.mrb[0].mxu0 %v222
  %v3963 = vpop.f32.mrb[0].mxu0
  %v3964 = vadd.f32 0.0, %v3963
  %v3965 = vpop.f32.mrb[0].mxu0
  %v3966 = vpop.f32.mrb[0].mxu0
  %v3967 = vadd.f32 0.0, %v3966
  %v3968 = vpop.f32.mrb[0].mxu0
  %3969 = vmatprep.mubr.bf16.mxu0 %v225
  %3970 = vmatmul.mubr.bf16.gmra.mrb[0].mxu0 %v224
  %v3971 = vpop.f32.mrb[0].mxu0
  %v3972 = vadd.f32 0.0, %v3971
  %v3973 = vpop.f32.mrb[0].mxu0
  %v3974 = vpop.f32.mrb[0].mxu0
  %v3975 = vadd.f32 0.0, %v3974
  %v3976 = vpop.f32.mrb[0].mxu0
  %3977 = vmatprep.mubr.bf16.mxu0 %v227
  %3978 = vmatmul.mubr.bf16.gmra.mrb[0].mxu0 %v226
  %v3979 = vpop.f32.mrb[0].mxu0
  %v3980 = vadd.f32 0.0, %v3979
  %v3981 = vpop.f32.mrb[0].mxu0
  %v3982 = vpop.f32.mrb[0].mxu0
  %v3983 = vadd.f32 0.0, %v3982
  %v3984 = vpop.f32.mrb[0].mxu0
  %3985 = vmatprep.mubr.bf16.mxu0 %v229
  %3986 = vmatmul.mubr.bf16.gmra.mrb[0].mxu0 %v228
  %v3987 = vpop.f32.mrb[0].mxu0
  %v3988 = vadd.f32 0.0, %v3987
  %v3989 = vpop.f32.mrb[0].mxu0
  %v3990 = vpop.f32.mrb[0].mxu0
  %v3991 = vadd.f32 0.0, %v3990
  %v3992 = vpop.f32.mrb[0].mxu0
  %3993 = vmatprep.mubr.bf16.mxu0 %v231
  %3994 = vmatmul.mubr.bf16.gmra.mrb[0].mxu0 %v230
  %v3995 = vpop.f32.mrb[0].mxu0
  %v3996 = vadd.f32 0.0, %v3995
  %v3997 = vpop.f32.mrb[0].mxu0
  %v3998 = vpop.f32.mrb[0].mxu0
  %v3999 = vadd.f32 0.0, %v3998
  %v4000 = vpop.f32.mrb[0].mxu0
  %4001 = vmatprep.mubr.bf16.mxu0 %v233
  %4002 = vmatmul.mubr.bf16.gmra.mrb[0].mxu0 %v232
  %v4003 = vpop.f32.mrb[0].mxu0
  %v4004 = vadd.f32 0.0, %v4003
  %v4005 = vpop.f32.mrb[0].mxu0
  %v4006 = vpop.f32.mrb[0].mxu0
  %v4007 = vadd.f32 0.0, %v4006
  %v4008 = vpop.f32.mrb[0].mxu0
  %4009 = vmatprep.mubr.bf16.mxu0 %v235
  %4010 = vmatmul.mubr.bf16.gmra.mrb[0].mxu0 %v234
  %v4011 = vpop.f32.mrb[0].mxu0
  %v4012 = vadd.f32 0.0, %v4011
  %v4013 = vpop.f32.mrb[0].mxu0
  %v4014 = vpop.f32.mrb[0].mxu0
  %v4015 = vadd.f32 0.0, %v4014
  %v4016 = vpop.f32.mrb[0].mxu0
  %4017 = vmatprep.mubr.bf16.mxu0 %v237
  %4018 = vmatmul.mubr.bf16.gmra.mrb[0].mxu0 %v236
  %v4019 = vpop.f32.mrb[0].mxu0
  %v4020 = vadd.f32 0.0, %v4019
  %v4021 = vpop.f32.mrb[0].mxu0
  %v4022 = vpop.f32.mrb[0].mxu0
  %v4023 = vadd.f32 0.0, %v4022
  %v4024 = vpop.f32.mrb[0].mxu0
  %4025 = vmatprep.mubr.bf16.mxu0 %v239
  %4026 = vmatmul.mubr.bf16.gmra.mrb[0].mxu0 %v238
  %v4027 = vpop.f32.mrb[0].mxu0
  %v4028 = vadd.f32 0.0, %v4027
  %v4029 = vpop.f32.mrb[0].mxu0
  %v4030 = vpop.f32.mrb[0].mxu0
  %v4031 = vadd.f32 0.0, %v4030
  %v4032 = vpop.f32.mrb[0].mxu0
  %4033 = vmatprep.mubr.bf16.mxu0 %v241
  %4034 = vmatmul.mubr.bf16.gmra.mrb[0].mxu0 %v240
  %v4035 = vpop.f32.mrb[0].mxu0
  %v4036 = vadd.f32 0.0, %v4035
  %v4037 = vpop.f32.mrb[0].mxu0
  %v4038 = vpop.f32.mrb[0].mxu0
  %v4039 = vadd.f32 0.0, %v4038
  %v4040 = vpop.f32.mrb[0].mxu0
  %4041 = vmatprep.mubr.bf16.mxu0 %v243
  %4042 = vmatmul.mubr.bf16.gmra.mrb[0].mxu0 %v242
  %v4043 = vpop.f32.mrb[0].mxu0
  %v4044 = vadd.f32 0.0, %v4043
  %v4045 = vpop.f32.mrb[0].mxu0
  %v4046 = vpop.f32.mrb[0].mxu0
  %v4047 = vadd.f32 0.0, %v4046
  %v4048 = vpop.f32.mrb[0].mxu0
  %4049 = vmatprep.mubr.bf16.mxu0 %v245
  %4050 = vmatmul.mubr.bf16.gmra.mrb[0].mxu0 %v244
  %v4051 = vpop.f32.mrb[0].mxu0
  %v4052 = vadd.f32 0.0, %v4051
  %v4053 = vpop.f32.mrb[0].mxu0
  %v4054 = vpop.f32.mrb[0].mxu0
  %v4055 = vadd.f32 0.0, %v4054
  %v4056 = vpop.f32.mrb[0].mxu0
  %4057 = vmatprep.mubr.bf16.mxu0 %v247
  %4058 = vmatmul.mubr.bf16.gmra.mrb[0].mxu0 %v246
  %v4059 = vpop.f32.mrb[0].mxu0
  %v4060 = vadd.f32 0.0, %v4059
  %v4061 = vpop.f32.mrb[0].mxu0
  %v4062 = vpop.f32.mrb[0].mxu0
  %v4063 = vadd.f32 0.0, %v4062
  %v4064 = vpop.f32.mrb[0].mxu0
  %4065 = vmatprep.mubr.bf16.mxu0 %v249
  %4066 = vmatmul.mubr.bf16.gmra.mrb[0].mxu0 %v248
  %v4067 = vpop.f32.mrb[0].mxu0
  %v4068 = vadd.f32 0.0, %v4067
  %v4069 = vpop.f32.mrb[0].mxu0
  %v4070 = vpop.f32.mrb[0].mxu0
  %v4071 = vadd.f32 0.0, %v4070
  %v4072 = vpop.f32.mrb[0].mxu0
  %4073 = vdwg.mxu0
  %v4074 = vpack.c.bf16 %v3951, %v3948
  %v4075 = vpack.c.bf16 %v3959, %v3956
  %v4076 = vpack.c.bf16 %v3967, %v3964
  %v4077 = vpack.c.bf16 %v3975, %v3972
  %v4078 = vpack.c.bf16 %v3983, %v3980
  %v4079 = vpack.c.bf16 %v3991, %v3988
  %v4080 = vpack.c.bf16 %v3999, %v3996
  %v4081 = vpack.c.bf16 %v4007, %v4004
  %v4082 = vpack.c.bf16 %v4015, %v4012
  %v4083 = vpack.c.bf16 %v4023, %v4020
  %v4084 = vpack.c.bf16 %v4031, %v4028
  %v4085 = vpack.c.bf16 %v4039, %v4036
  %v4086 = vpack.c.bf16 %v4047, %v4044
  %v4087 = vpack.c.bf16 %v4055, %v4052
  %v4088 = vpack.c.bf16 %v4063, %v4060
  %v4089 = vpack.c.bf16 %v4071, %v4068
  %4090 = vmatprep.subr.bf16.mxu0 0
  %4091 = vmatpush1.bf16.msra.mxu0 %v1033
  %4092 = vmatprep.subr.bf16.mxu0 0
  %4093 = vmatpush1.bf16.msra.mxu0 %v1034
  %4094 = vmatprep.subr.bf16.mxu0 0
  %4095 = vmatpush1.bf16.msra.mxu0 %v1035
  %4096 = vmatprep.subr.bf16.mxu0 0
  %4097 = vmatpush1.bf16.msra.mxu0 %v1036
  %4098 = vmatprep.subr.bf16.mxu0 0
  %4099 = vmatpush1.bf16.msra.mxu0 %v1037
  %4100 = vmatprep.subr.bf16.mxu0 0
  %4101 = vmatpush1.bf16.msra.mxu0 %v1038
  %4102 = vmatprep.subr.bf16.mxu0 0
  %4103 = vmatpush1.bf16.msra.mxu0 %v1039
  %4104 = vmatprep.subr.bf16.mxu0 0
  %4105 = vmatpush1.bf16.msra.mxu0 %v1040
  %4106 = vmatprep.subr.bf16.mxu0 0
  %4107 = vmatpush1.bf16.msra.mxu0 0
  %4108 = vmatprep.subr.bf16.mxu0 0
  %4109 = vmatpush1.bf16.msra.mxu0 0
  %4110 = vmatprep.subr.bf16.mxu0 0
  %4111 = vmatpush1.bf16.msra.mxu0 0
  %4112 = vmatprep.subr.bf16.mxu0 0
  %4113 = vmatpush1.bf16.msra.mxu0 0
  %4114 = vmatprep.subr.bf16.mxu0 0
  %4115 = vmatpush1.bf16.msra.mxu0 0
  %4116 = vmatprep.subr.bf16.mxu0 0
  %4117 = vmatpush1.bf16.msra.mxu0 0
  %4118 = vmatprep.subr.bf16.mxu0 0
  %4119 = vmatpush1.bf16.msra.mxu0 0
  %4120 = vmatprep.subr.bf16.mxu0 0
  %4121 = vmatpush1.bf16.msra.mxu0 0
  %4122 = vmatprep.mubr.bf16.mxu0 0
  %4123 = vmatmul.mubr.bf16.gmra.mrb[0].mxu0 %v4074
  %v4124 = vpop.f32.mrb[0].mxu0
  %v4125 = vadd.f32 %v999, %v4124
  %v4126 = vpop.f32.mrb[0].mxu0
  %v4127 = vpop.f32.mrb[0].mxu0
  %v4128 = vadd.f32 %v999, %v4127
  %v4129 = vpop.f32.mrb[0].mxu0
  %4130 = vmatprep.mubr.bf16.mxu0 0
  %4131 = vmatmul.mubr.bf16.gmra.mrb[0].mxu0 %v4075
  %v4132 = vpop.f32.mrb[0].mxu0
  %v4133 = vadd.f32 %v999, %v4132
  %v4134 = vpop.f32.mrb[0].mxu0
  %v4135 = vpop.f32.mrb[0].mxu0
  %v4136 = vadd.f32 %v999, %v4135
  %v4137 = vpop.f32.mrb[0].mxu0
  %4138 = vmatprep.mubr.bf16.mxu0 0
  %4139 = vmatmul.mubr.bf16.gmra.mrb[0].mxu0 %v4076
  %v4140 = vpop.f32.mrb[0].mxu0
  %v4141 = vadd.f32 %v999, %v4140
  %v4142 = vpop.f32.mrb[0].mxu0
  %v4143 = vpop.f32.mrb[0].mxu0
  %v4144 = vadd.f32 %v999, %v4143
  %v4145 = vpop.f32.mrb[0].mxu0
  %4146 = vmatprep.mubr.bf16.mxu0 0
  %4147 = vmatmul.mubr.bf16.gmra.mrb[0].mxu0 %v4077
  %v4148 = vpop.f32.mrb[0].mxu0
  %v4149 = vadd.f32 %v999, %v4148
  %v4150 = vpop.f32.mrb[0].mxu0
  %v4151 = vpop.f32.mrb[0].mxu0
  %v4152 = vadd.f32 %v999, %v4151
  %v4153 = vpop.f32.mrb[0].mxu0
  %4154 = vmatprep.mubr.bf16.mxu0 0
  %4155 = vmatmul.mubr.bf16.gmra.mrb[0].mxu0 %v4078
  %v4156 = vpop.f32.mrb[0].mxu0
  %v4157 = vadd.f32 %v999, %v4156
  %v4158 = vpop.f32.mrb[0].mxu0
  %v4159 = vpop.f32.mrb[0].mxu0
  %v4160 = vadd.f32 %v999, %v4159
  %v4161 = vpop.f32.mrb[0].mxu0
  %4162 = vmatprep.mubr.bf16.mxu0 0
  %4163 = vmatmul.mubr.bf16.gmra.mrb[0].mxu0 %v4079
  %v4164 = vpop.f32.mrb[0].mxu0
  %v4165 = vadd.f32 %v999, %v4164
  %v4166 = vpop.f32.mrb[0].mxu0
  %v4167 = vpop.f32.mrb[0].mxu0
  %v4168 = vadd.f32 %v999, %v4167
  %v4169 = vpop.f32.mrb[0].mxu0
  %4170 = vmatprep.mubr.bf16.mxu0 0
  %4171 = vmatmul.mubr.bf16.gmra.mrb[0].mxu0 %v4080
  %v4172 = vpop.f32.mrb[0].mxu0
  %v4173 = vadd.f32 %v999, %v4172
  %v4174 = vpop.f32.mrb[0].mxu0
  %v4175 = vpop.f32.mrb[0].mxu0
  %v4176 = vadd.f32 %v999, %v4175
  %v4177 = vpop.f32.mrb[0].mxu0
  %4178 = vmatprep.mubr.bf16.mxu0 0
  %4179 = vmatmul.mubr.bf16.gmra.mrb[0].mxu0 %v4081
  %v4180 = vpop.f32.mrb[0].mxu0
  %v4181 = vadd.f32 %v999, %v4180
  %v4182 = vpop.f32.mrb[0].mxu0
  %v4183 = vpop.f32.mrb[0].mxu0
  %v4184 = vadd.f32 %v999, %v4183
  %v4185 = vpop.f32.mrb[0].mxu0
  %4186 = vmatprep.mubr.bf16.mxu0 0
  %4187 = vmatmul.mubr.bf16.gmra.mrb[0].mxu0 %v4082
  %v4188 = vpop.f32.mrb[0].mxu0
  %v4189 = vadd.f32 %v999, %v4188
  %v4190 = vpop.f32.mrb[0].mxu0
  %v4191 = vpop.f32.mrb[0].mxu0
  %v4192 = vadd.f32 %v999, %v4191
  %v4193 = vpop.f32.mrb[0].mxu0
  %4194 = vmatprep.mubr.bf16.mxu0 0
  %4195 = vmatmul.mubr.bf16.gmra.mrb[0].mxu0 %v4083
  %v4196 = vpop.f32.mrb[0].mxu0
  %v4197 = vadd.f32 %v999, %v4196
  %v4198 = vpop.f32.mrb[0].mxu0
  %v4199 = vpop.f32.mrb[0].mxu0
  %v4200 = vadd.f32 %v999, %v4199
  %v4201 = vpop.f32.mrb[0].mxu0
  %4202 = vmatprep.mubr.bf16.mxu0 0
  %4203 = vmatmul.mubr.bf16.gmra.mrb[0].mxu0 %v4084
  %v4204 = vpop.f32.mrb[0].mxu0
  %v4205 = vadd.f32 %v999, %v4204
  %v4206 = vpop.f32.mrb[0].mxu0
  %v4207 = vpop.f32.mrb[0].mxu0
  %v4208 = vadd.f32 %v999, %v4207
  %v4209 = vpop.f32.mrb[0].mxu0
  %4210 = vmatprep.mubr.bf16.mxu0 0
  %4211 = vmatmul.mubr.bf16.gmra.mrb[0].mxu0 %v4085
  %v4212 = vpop.f32.mrb[0].mxu0
  %v4213 = vadd.f32 %v999, %v4212
  %v4214 = vpop.f32.mrb[0].mxu0
  %v4215 = vpop.f32.mrb[0].mxu0
  %v4216 = vadd.f32 %v999, %v4215
  %v4217 = vpop.f32.mrb[0].mxu0
  %4218 = vmatprep.mubr.bf16.mxu0 0
  %4219 = vmatmul.mubr.bf16.gmra.mrb[0].mxu0 %v4086
  %v4220 = vpop.f32.mrb[0].mxu0
  %v4221 = vadd.f32 %v999, %v4220
  %v4222 = vpop.f32.mrb[0].mxu0
  %v4223 = vpop.f32.mrb[0].mxu0
  %v4224 = vadd.f32 %v999, %v4223
  %v4225 = vpop.f32.mrb[0].mxu0
  %4226 = vmatprep.mubr.bf16.mxu0 0
  %4227 = vmatmul.mubr.bf16.gmra.mrb[0].mxu0 %v4087
  %v4228 = vpop.f32.mrb[0].mxu0
  %v4229 = vadd.f32 %v999, %v4228
  %v4230 = vpop.f32.mrb[0].mxu0
  %v4231 = vpop.f32.mrb[0].mxu0
  %v4232 = vadd.f32 %v999, %v4231
  %v4233 = vpop.f32.mrb[0].mxu0
  %4234 = vmatprep.mubr.bf16.mxu0 0
  %4235 = vmatmul.mubr.bf16.gmra.mrb[0].mxu0 %v4088
  %v4236 = vpop.f32.mrb[0].mxu0
  %v4237 = vadd.f32 %v999, %v4236
  %v4238 = vpop.f32.mrb[0].mxu0
  %v4239 = vpop.f32.mrb[0].mxu0
  %v4240 = vadd.f32 %v999, %v4239
  %v4241 = vpop.f32.mrb[0].mxu0
  %4242 = vmatprep.mubr.bf16.mxu0 0
  %4243 = vmatmul.mubr.bf16.gmra.mrb[0].mxu0 %v4089
  %v4244 = vpop.f32.mrb[0].mxu0
  %v4245 = vadd.f32 %v999, %v4244
  %v4246 = vpop.f32.mrb[0].mxu0
  %v4247 = vpop.f32.mrb[0].mxu0
  %v4248 = vadd.f32 %v999, %v4247
  %v4249 = vpop.f32.mrb[0].mxu0
  %4250 = vdwg.mxu0
  %v4251 = vpack.c.bf16 %v4128, %v4125
  %v4252 = vpack.c.bf16 %v4136, %v4133
  %v4253 = vpack.c.bf16 %v4144, %v4141
  %v4254 = vpack.c.bf16 %v4152, %v4149
  %v4255 = vpack.c.bf16 %v4160, %v4157
  %v4256 = vpack.c.bf16 %v4168, %v4165
  %v4257 = vpack.c.bf16 %v4176, %v4173
  %v4258 = vpack.c.bf16 %v4184, %v4181
  %v4259 = vpack.c.bf16 %v4192, %v4189
  %v4260 = vpack.c.bf16 %v4200, %v4197
  %v4261 = vpack.c.bf16 %v4208, %v4205
  %v4262 = vpack.c.bf16 %v4216, %v4213
  %v4263 = vpack.c.bf16 %v4224, %v4221
  %v4264 = vpack.c.bf16 %v4232, %v4229
  %v4265 = vpack.c.bf16 %v4240, %v4237
  %v4266 = vpack.c.bf16 %v4248, %v4245
  %v4283 = vunpack.c.l.b16 %v4251
  %v4284 = vunpack.c.h.b16 %v4251
  %v4285 = vunpack.c.l.b16 %v4252
  %v4286 = vunpack.c.h.b16 %v4252
  %v4287 = vunpack.c.l.b16 %v4253
  %v4288 = vunpack.c.h.b16 %v4253
  %v4289 = vunpack.c.l.b16 %v4254
  %v4290 = vunpack.c.h.b16 %v4254
  %v4291 = vunpack.c.l.b16 %v4255
  %v4292 = vunpack.c.h.b16 %v4255
  %v4293 = vunpack.c.l.b16 %v4256
  %v4294 = vunpack.c.h.b16 %v4256
  %v4295 = vunpack.c.l.b16 %v4257
  %v4296 = vunpack.c.h.b16 %v4257
  %v4297 = vunpack.c.l.b16 %v4258
  %v4298 = vunpack.c.h.b16 %v4258
  %v4299 = vunpack.c.l.b16 %v4259
  %v4300 = vunpack.c.h.b16 %v4259
  %v4301 = vunpack.c.l.b16 %v4260
  %v4302 = vunpack.c.h.b16 %v4260
  %v4303 = vunpack.c.l.b16 %v4261
  %v4304 = vunpack.c.h.b16 %v4261
  %v4305 = vunpack.c.l.b16 %v4262
  %v4306 = vunpack.c.h.b16 %v4262
  %v4307 = vunpack.c.l.b16 %v4263
  %v4308 = vunpack.c.h.b16 %v4263
  %v4309 = vunpack.c.l.b16 %v4264
  %v4310 = vunpack.c.h.b16 %v4264
  %v4311 = vunpack.c.l.b16 %v4265
  %v4312 = vunpack.c.h.b16 %v4265
  %v4313 = vunpack.c.l.b16 %v4266
  %v4314 = vunpack.c.h.b16 %v4266
  %v4315 = vpack.c.b16 %v4283, %v4283
  %v4316 = vpack.c.b16 %v4284, %v4284
  %v4317 = vpack.c.b16 %v4285, %v4285
  %v4318 = vpack.c.b16 %v4286, %v4286
  %v4319 = vpack.c.b16 %v4287, %v4287
  %v4320 = vpack.c.b16 %v4288, %v4288
  %v4321 = vpack.c.b16 %v4289, %v4289
  %v4322 = vpack.c.b16 %v4290, %v4290
  %v4323 = vpack.c.b16 %v4291, %v4291
  %v4324 = vpack.c.b16 %v4292, %v4292
  %v4325 = vpack.c.b16 %v4293, %v4293
  %v4326 = vpack.c.b16 %v4294, %v4294
  %v4327 = vpack.c.b16 %v4295, %v4295
  %v4328 = vpack.c.b16 %v4296, %v4296
  %v4329 = vpack.c.b16 %v4297, %v4297
  %v4330 = vpack.c.b16 %v4298, %v4298
  %v4331 = vpack.c.b16 %v4299, %v4299
  %v4332 = vpack.c.b16 %v4300, %v4300
  %v4333 = vpack.c.b16 %v4301, %v4301
  %v4334 = vpack.c.b16 %v4302, %v4302
  %v4335 = vpack.c.b16 %v4303, %v4303
  %v4336 = vpack.c.b16 %v4304, %v4304
  %v4337 = vpack.c.b16 %v4305, %v4305
  %v4338 = vpack.c.b16 %v4306, %v4306
  %v4339 = vpack.c.b16 %v4307, %v4307
  %v4340 = vpack.c.b16 %v4308, %v4308
  %v4341 = vpack.c.b16 %v4309, %v4309
  %v4342 = vpack.c.b16 %v4310, %v4310
  %v4343 = vpack.c.b16 %v4311, %v4311
  %v4344 = vpack.c.b16 %v4312, %v4312
  %v4345 = vpack.c.b16 %v4313, %v4313
  %v4346 = vpack.c.b16 %v4314, %v4314
  %s4379 = scalar_lea.vmem %s6, 24
  %4380 = vst [vmem:[%s4379] sm:$0xf] %v4315
  %4381 = vst [vmem:[%s4379 + $0x4] sm:$0xf] %v4316
  %4382 = vst [vmem:[%s4379 + $0x20] sm:$0xf] %v4317
  %4383 = vst [vmem:[%s4379 + $0x24] sm:$0xf] %v4318
  %4384 = vst [vmem:[%s4379 + $0x40] sm:$0xf] %v4319
  %4385 = vst [vmem:[%s4379 + $0x44] sm:$0xf] %v4320
  %4386 = vst [vmem:[%s4379 + $0x60] sm:$0xf] %v4321
  %4387 = vst [vmem:[%s4379 + $0x64] sm:$0xf] %v4322
  %4388 = vst [vmem:[%s4379 + $0x80] sm:$0xf] %v4323
  %4389 = vst [vmem:[%s4379 + $0x84] sm:$0xf] %v4324
  %4390 = vst [vmem:[%s4379 + $0xa0] sm:$0xf] %v4325
  %4391 = vst [vmem:[%s4379 + $0xa4] sm:$0xf] %v4326
  %4392 = vst [vmem:[%s4379 + $0xc0] sm:$0xf] %v4327
  %4393 = vst [vmem:[%s4379 + $0xc4] sm:$0xf] %v4328
  %4394 = vst [vmem:[%s4379 + $0xe0] sm:$0xf] %v4329
  %4395 = vst [vmem:[%s4379 + $0xe4] sm:$0xf] %v4330
  %4396 = vst [vmem:[%s4379 + $0x100] sm:$0xf] %v4331
  %4397 = vst [vmem:[%s4379 + $0x104] sm:$0xf] %v4332
  %4398 = vst [vmem:[%s4379 + $0x120] sm:$0xf] %v4333
  %4399 = vst [vmem:[%s4379 + $0x124] sm:$0xf] %v4334
  %4400 = vst [vmem:[%s4379 + $0x140] sm:$0xf] %v4335
  %4401 = vst [vmem:[%s4379 + $0x144] sm:$0xf] %v4336
  %4402 = vst [vmem:[%s4379 + $0x160] sm:$0xf] %v4337
  %4403 = vst [vmem:[%s4379 + $0x164] sm:$0xf] %v4338
  %4404 = vst [vmem:[%s4379 + $0x180] sm:$0xf] %v4339
  %4405 = vst [vmem:[%s4379 + $0x184] sm:$0xf] %v4340
  %4406 = vst [vmem:[%s4379 + $0x1a0] sm:$0xf] %v4341
  %4407 = vst [vmem:[%s4379 + $0x1a4] sm:$0xf] %v4342
  %4408 = vst [vmem:[%s4379 + $0x1c0] sm:$0xf] %v4343
  %4409 = vst [vmem:[%s4379 + $0x1c4] sm:$0xf] %v4344
  %4410 = vst [vmem:[%s4379 + $0x1e0] sm:$0xf] %v4345
  %4411 = vst [vmem:[%s4379 + $0x1e4] sm:$0xf] %v4346
  // Predicated region
  $region26: #{temporal_gnn_forward.1} parent=0 // pred_check
    _
  $region27: #{temporal_gnn_forward.1} parent=0 // pred_check_branch
    %4413 = sbr.rel (0) target = $region29
  $region28: #{temporal_gnn_forward.1} parent=0 // pred_region
    _
  $region29: #{temporal_gnn_forward.1} parent=0 // pred_fallthru
    _
  // Predicated region
  $region30: #{temporal_gnn_forward.1} parent=0 // pred_check
    _
  $region31: #{temporal_gnn_forward.1} parent=0 // pred_check_branch
    %4415 = sbr.rel (0) target = $region33
  $region32: #{temporal_gnn_forward.1} parent=0 // pred_region
    _
  $region33: #{temporal_gnn_forward.1} parent=0 // pred_fallthru
    _

</llo_original>
